<compile_context>
chip_gen: v7x
topology: tpu7x:2x2x1
jax: 0.10.0
libtpu: 0.0.40
codegen_flags: <defaults>
</compile_context>

<pallas_src>
import jax
import jax.numpy as jnp
import numpy as np
from jax.experimental import pallas as pl
from jax.experimental.pallas import tpu as pltpu

# ---- SSIM constants (pytorch_msssim defaults: win_size=11, sigma=1.5, K=(0.01, 0.03)) ----
WIN_SIZE = 11
_SIGMA = 1.5
_coords = np.arange(WIN_SIZE, dtype=np.float64) - WIN_SIZE // 2
_g = np.exp(-(_coords ** 2) / (2.0 * _SIGMA ** 2))
_g = _g / _g.sum()
WVALS = tuple(float(v) for v in _g)           # 1-D gaussian window (static constants)

DATA_RANGE = 1.0
C1 = (0.01 * DATA_RANGE) ** 2
C2 = (0.03 * DATA_RANGE) ** 2

_VMEM_LIMIT_BYTES = 32 * 1024 * 1024          # safe on v5e/v6e (128 MiB) and v7x (64 MiB physical)
_VMEM_BLOCK_BUDGET = 6 * 1024 * 1024          # target per-block footprint (leaves double-buffer headroom)


def _pick_tb(bc, h, w):
    """Largest divisor of bc whose per-block VMEM footprint fits the budget."""
    h_pad = ((h + 7) // 8) * 8
    w_pad = ((w + 127) // 128) * 128
    # rough f32 bytes/image: 2 inputs double-buffered + 5-way stack + filter temporaries
    per_img = 120 * h_pad * w_pad
    cap = max(1, _VMEM_BLOCK_BUDGET // per_img)
    tb = 1
    for d in range(1, bc + 1):
        if bc % d == 0 and d <= cap:
            tb = d
    # NOTE: for very large H*W one would additionally tile rows with a
    # (WIN_SIZE-1)-row halo; block-per-image is sufficient at these sizes.
    return tb


def _loss_kernel(pred_ref, targ_ref, gwt_ref, abs_ref, ssim_ref):
    # pred_ref / targ_ref : (TB, H, W) VMEM tiles (TB images per grid step)
    # gwt_ref             : (W, w_out) static banded gaussian matrix (W-axis pass on the MXU)
    # abs_ref / ssim_ref  : (1, 1, 1) per-block partial sums (grid axis is "parallel")
    x = pred_ref[...].astype(jnp.float32)
    y = targ_ref[...].astype(jnp.float32)
    tb, h, w = x.shape
    h_out = h - WIN_SIZE + 1
    w_out = gwt_ref.shape[1]

    # ---- L1 partial sum over the whole block ----
    abs_partial = jnp.sum(jnp.abs(x - y))

    # ---- stack the 5 gaussian-filter inputs so the separable filter runs once ----
    x2d = x.reshape(tb * h, w)
    y2d = y.reshape(tb * h, w)
    stack = jnp.concatenate(
        [x2d, y2d, x2d * x2d, y2d * y2d, x2d * y2d], axis=0)          # (5*TB*H, W)

    # ---- W-axis (lane) gaussian pass as one lane-aligned MXU matmul ----
    tmp = jnp.dot(stack, gwt_ref[...],
                  preferred_element_type=jnp.float32,
                  precision=jax.lax.Precision.HIGHEST)                # (5*TB*H, w_out)
    tmp = tmp.reshape(5 * tb, h, w_out)

    # ---- H-axis gaussian pass: 11 static sublane taps on the stacked tensor ----
    f = WVALS[0] * tmp[:, 0:h_out, :]
    for k in range(1, WIN_SIZE):
        f = f + WVALS[k] * tmp[:, k:k + h_out, :]                     # (5*TB, h_out, w_out)

    mu1 = f[0 * tb:1 * tb]
    mu2 = f[1 * tb:2 * tb]
    ex2 = f[2 * tb:3 * tb]
    ey2 = f[3 * tb:4 * tb]
    exy = f[4 * tb:5 * tb]

    mu1_sq = mu1 * mu1
    mu2_sq = mu2 * mu2
    mu1_mu2 = mu1 * mu2
    sigma1_sq = ex2 - mu1_sq
    sigma2_sq = ey2 - mu2_sq
    sigma12 = exy - mu1_mu2

    # fused single (exact) division: one reciprocal per output element instead of two
    num = (2.0 * mu1_mu2 + C1) * (2.0 * sigma12 + C2)
    den = (mu1_sq + mu2_sq + C1) * (sigma1_sq + sigma2_sq + C2)
    ssim_partial = jnp.sum(num / den)

    abs_ref[...] = jnp.broadcast_to(abs_partial, abs_ref.shape)
    ssim_ref[...] = jnp.broadcast_to(ssim_partial, ssim_ref.shape)


@jax.jit
def generator_loss(pred, target):
    """F.l1_loss(pred, target) + (1 - ssim(pred, target, data_range=1, size_average=True))."""
    B, C, H, W = pred.shape
    if H < WIN_SIZE or W < WIN_SIZE:
        raise ValueError(f"SSIM requires spatial dims >= {WIN_SIZE}, got {(H, W)}")
    BC = B * C
    h_out = H - WIN_SIZE + 1
    w_out = W - WIN_SIZE + 1

    # no wrapper-side dtype cast: DMA the original dtype, cast to f32 inside the kernel
    p = pred.reshape(BC, H, W)
    t = target.reshape(BC, H, W)

    TB = _pick_tb(BC, H, W)
    G = BC // TB

    # static banded gaussian matrix for the W (lane) axis:  filt_W(img) = img @ gw_t
    gw_np = np.zeros((W, w_out), np.float32)
    for j in range(w_out):
        gw_np[j:j + WIN_SIZE, j] = np.asarray(WVALS, np.float32)
    gw_t = jnp.asarray(gw_np)

    abs_parts, ssim_parts = pl.pallas_call(
        _loss_kernel,
        out_shape=(
            jax.ShapeDtypeStruct((G, 1, 1), jnp.float32),
            jax.ShapeDtypeStruct((G, 1, 1), jnp.float32),
        ),
        grid_spec=pltpu.PrefetchScalarGridSpec(
            num_scalar_prefetch=0,
            grid=(G,),
            in_specs=[
                pl.BlockSpec((TB, H, W), lambda i: (i, 0, 0)),
                pl.BlockSpec((TB, H, W), lambda i: (i, 0, 0)),
                pl.BlockSpec((W, w_out), lambda i: (0, 0)),   # constant block -> DMA'd once
            ],
            out_specs=[
                pl.BlockSpec((1, 1, 1), lambda i: (i, 0, 0)),
                pl.BlockSpec((1, 1, 1), lambda i: (i, 0, 0)),
            ],
        ),
        compiler_params=pltpu.CompilerParams(
            dimension_semantics=("parallel",),   # independent per-block partials -> megacore on v7x
            vmem_limit_bytes=_VMEM_LIMIT_BYTES,
        ),
    )(p, t, gw_t)

    mae = jnp.sum(abs_parts) / (BC * H * W)
    ssim_mean = jnp.sum(ssim_parts) / (BC * h_out * w_out)
    return mae + (1.0 - ssim_mean)


def _reference_loss(pred, target):
    """Pure-JAX reference matching F.l1_loss + (1 - pytorch_msssim.ssim)."""
    w1d = jnp.asarray(WVALS, jnp.float32)

    def filt(img4):  # (B, C, H, W) valid separable gaussian
        x = jnp.stack([img4[:, :, k:k + img4.shape[2] - WIN_SIZE + 1, :] * w1d[k]
                       for k in range(WIN_SIZE)]).sum(0)
        x = jnp.stack([x[:, :, :, k:k + img4.shape[3] - WIN_SIZE + 1] * w1d[k]
                       for k in range(WIN_SIZE)]).sum(0)
        return x

    x, y = pred.astype(jnp.float32), target.astype(jnp.float32)
    mae = jnp.mean(jnp.abs(x - y))
    mu1, mu2 = filt(x), filt(y)
    s11 = filt(x * x) - mu1 * mu1
    s22 = filt(y * y) - mu2 * mu2
    s12 = filt(x * y) - mu1 * mu2
    cs = (2 * s12 + C2) / (s11 + s22 + C2)
    ssim_map = ((2 * mu1 * mu2 + C1) / (mu1 * mu1 + mu2 * mu2 + C1)) * cs
    return mae + (1.0 - jnp.mean(ssim_map))


if __name__ == "__main__":
    key = jax.random.PRNGKey(0)
    k1, k2 = jax.random.split(key)
    # small NCHW inputs in [0, 1] (data_range=1); H, W >= 11 required by the SSIM window
    pred = jax.random.uniform(k1, (2, 4, 16, 16), dtype=jnp.float32)
    target = jax.random.uniform(k2, (2, 4, 16, 16), dtype=jnp.float32)

    loss = generator_loss(pred, target)
    jax.block_until_ready(loss)

    ref = _reference_loss(pred, target)
    # tolerance allows for MXU multi-pass f32 accumulation-order differences vs the
    # pure-JAX reference (tap ordering / fused division); well below any semantic error.
    assert jnp.allclose(loss, ref, rtol=1e-3, atol=1e-3), (loss, ref)

    print("KERNEL_OK")
</pallas_src>

<mosaic_0001>
module attributes {stable_mosaic.version = 11 : i64} {
  func.func @_loss_kernel(%arg0: i32, %arg1: memref<8x16x16xf32, #tpu.memory_space<vmem>>, %arg2: memref<8x16x16xf32, #tpu.memory_space<vmem>>, %arg3: memref<16x6xf32, #tpu.memory_space<vmem>>, %arg4: memref<1x1x1xf32, #tpu.memory_space<vmem>>, %arg5: memref<1x1x1xf32, #tpu.memory_space<vmem>>) attributes {dimension_semantics = [#tpu.dimension_semantics<parallel>], iteration_bounds = array<i64: 1>, scalar_prefetch = 0 : i64, scratch_operands = 0 : i64, tpu.core_type = #tpu.core_type<tc>, window_params = [{transform_indices = @transform_0, window_bounds = array<i64: 8, 16, 16>}, {transform_indices = @transform_1, window_bounds = array<i64: 8, 16, 16>}, {pipeline_mode = #tpu.pipeline_mode<synchronous>, transform_indices = @transform_2, window_bounds = array<i64: 16, 6>}, {transform_indices = @transform_3, window_bounds = array<i64: 1, 1, 1>}, {transform_indices = @transform_4, window_bounds = array<i64: 1, 1, 1>}]} {
    %c0 = arith.constant 0 : index
    %c0_0 = arith.constant 0 : index
    %c0_1 = arith.constant 0 : index
    %0 = vector.load %arg1[%c0, %c0_0, %c0_1] : memref<8x16x16xf32, #tpu.memory_space<vmem>>, vector<8x16x16xf32>
    %c0_2 = arith.constant 0 : index
    %c0_3 = arith.constant 0 : index
    %c0_4 = arith.constant 0 : index
    %1 = vector.load %arg2[%c0_2, %c0_3, %c0_4] : memref<8x16x16xf32, #tpu.memory_space<vmem>>, vector<8x16x16xf32>
    %2 = arith.subf %0, %1 : vector<8x16x16xf32>
    %3 = math.absf %2 : vector<8x16x16xf32>
    %4 = vector.shape_cast %3 : vector<8x16x16xf32> to vector<1x8x16x16xf32>
    %cst = arith.constant dense<0.000000e+00> : vector<1xf32>
    %5 = vector.multi_reduction <add>, %4, %cst [1, 2, 3] : vector<1x8x16x16xf32> to vector<1xf32>
    %6 = vector.shape_cast %5 : vector<1xf32> to vector<1x1x1x1xf32>
    %7 = vector.extract %6[0, 0, 0, 0] : f32 from vector<1x1x1x1xf32>
    %8 = vector.shape_cast %0 : vector<8x16x16xf32> to vector<128x16xf32>
    %9 = vector.shape_cast %1 : vector<8x16x16xf32> to vector<128x16xf32>
    %10 = arith.mulf %8, %8 : vector<128x16xf32>
    %11 = arith.mulf %9, %9 : vector<128x16xf32>
    %12 = arith.mulf %8, %9 : vector<128x16xf32>
    %13 = tpu.concatenate %8, %9, %10, %11, %12 in 0 : vector<128x16xf32>, vector<128x16xf32>, vector<128x16xf32>, vector<128x16xf32>, vector<128x16xf32> -> vector<640x16xf32>
    %c0_5 = arith.constant 0 : index
    %c0_6 = arith.constant 0 : index
    %14 = vector.load %arg3[%c0_5, %c0_6] : memref<16x6xf32, #tpu.memory_space<vmem>>, vector<16x6xf32>
    %cst_7 = arith.constant dense<0.000000e+00> : vector<640x6xf32>
    %15 = tpu.matmul %13, %14, %cst_7 {dimension_numbers = #tpu.dot_dimension_numbers<[1], [0], [0], [1], [0, 0, 1, 1], [], []>, precision = #tpu.contract_precision<fp32>} : vector<640x16xf32>, vector<16x6xf32>, vector<640x6xf32> -> vector<640x6xf32>
    %16 = vector.shape_cast %15 : vector<640x6xf32> to vector<40x16x6xf32>
    %17 = vector.extract_strided_slice %16 {offsets = [0, 0, 0], sizes = [40, 6, 6], strides = [1, 1, 1]} : vector<40x16x6xf32> to vector<40x6x6xf32>
    %cst_8 = arith.constant 0.00102838012 : f32
    %18 = vector.broadcast %cst_8 : f32 to vector<40x6x6xf32>
    %19 = arith.mulf %18, %17 : vector<40x6x6xf32>
    %20 = vector.extract_strided_slice %16 {offsets = [0, 1, 0], sizes = [40, 6, 6], strides = [1, 1, 1]} : vector<40x16x6xf32> to vector<40x6x6xf32>
    %cst_9 = arith.constant 0.00759875821 : f32
    %21 = vector.broadcast %cst_9 : f32 to vector<40x6x6xf32>
    %22 = arith.mulf %21, %20 : vector<40x6x6xf32>
    %23 = arith.addf %19, %22 : vector<40x6x6xf32>
    %24 = vector.extract_strided_slice %16 {offsets = [0, 2, 0], sizes = [40, 6, 6], strides = [1, 1, 1]} : vector<40x16x6xf32> to vector<40x6x6xf32>
    %cst_10 = arith.constant 0.0360007733 : f32
    %25 = vector.broadcast %cst_10 : f32 to vector<40x6x6xf32>
    %26 = arith.mulf %25, %24 : vector<40x6x6xf32>
    %27 = arith.addf %23, %26 : vector<40x6x6xf32>
    %28 = vector.extract_strided_slice %16 {offsets = [0, 3, 0], sizes = [40, 6, 6], strides = [1, 1, 1]} : vector<40x16x6xf32> to vector<40x6x6xf32>
    %cst_11 = arith.constant 0.109360687 : f32
    %29 = vector.broadcast %cst_11 : f32 to vector<40x6x6xf32>
    %30 = arith.mulf %29, %28 : vector<40x6x6xf32>
    %31 = arith.addf %27, %30 : vector<40x6x6xf32>
    %32 = vector.extract_strided_slice %16 {offsets = [0, 4, 0], sizes = [40, 6, 6], strides = [1, 1, 1]} : vector<40x16x6xf32> to vector<40x6x6xf32>
    %cst_12 = arith.constant 0.213005543 : f32
    %33 = vector.broadcast %cst_12 : f32 to vector<40x6x6xf32>
    %34 = arith.mulf %33, %32 : vector<40x6x6xf32>
    %35 = arith.addf %31, %34 : vector<40x6x6xf32>
    %36 = vector.extract_strided_slice %16 {offsets = [0, 5, 0], sizes = [40, 6, 6], strides = [1, 1, 1]} : vector<40x16x6xf32> to vector<40x6x6xf32>
    %cst_13 = arith.constant 0.266011715 : f32
    %37 = vector.broadcast %cst_13 : f32 to vector<40x6x6xf32>
    %38 = arith.mulf %37, %36 : vector<40x6x6xf32>
    %39 = arith.addf %35, %38 : vector<40x6x6xf32>
    %40 = vector.extract_strided_slice %16 {offsets = [0, 6, 0], sizes = [40, 6, 6], strides = [1, 1, 1]} : vector<40x16x6xf32> to vector<40x6x6xf32>
    %cst_14 = arith.constant 0.213005543 : f32
    %41 = vector.broadcast %cst_14 : f32 to vector<40x6x6xf32>
    %42 = arith.mulf %41, %40 : vector<40x6x6xf32>
    %43 = arith.addf %39, %42 : vector<40x6x6xf32>
    %44 = vector.extract_strided_slice %16 {offsets = [0, 7, 0], sizes = [40, 6, 6], strides = [1, 1, 1]} : vector<40x16x6xf32> to vector<40x6x6xf32>
    %cst_15 = arith.constant 0.109360687 : f32
    %45 = vector.broadcast %cst_15 : f32 to vector<40x6x6xf32>
    %46 = arith.mulf %45, %44 : vector<40x6x6xf32>
    %47 = arith.addf %43, %46 : vector<40x6x6xf32>
    %48 = vector.extract_strided_slice %16 {offsets = [0, 8, 0], sizes = [40, 6, 6], strides = [1, 1, 1]} : vector<40x16x6xf32> to vector<40x6x6xf32>
    %cst_16 = arith.constant 0.0360007733 : f32
    %49 = vector.broadcast %cst_16 : f32 to vector<40x6x6xf32>
    %50 = arith.mulf %49, %48 : vector<40x6x6xf32>
    %51 = arith.addf %47, %50 : vector<40x6x6xf32>
    %52 = vector.extract_strided_slice %16 {offsets = [0, 9, 0], sizes = [40, 6, 6], strides = [1, 1, 1]} : vector<40x16x6xf32> to vector<40x6x6xf32>
    %cst_17 = arith.constant 0.00759875821 : f32
    %53 = vector.broadcast %cst_17 : f32 to vector<40x6x6xf32>
    %54 = arith.mulf %53, %52 : vector<40x6x6xf32>
    %55 = arith.addf %51, %54 : vector<40x6x6xf32>
    %56 = vector.extract_strided_slice %16 {offsets = [0, 10, 0], sizes = [40, 6, 6], strides = [1, 1, 1]} : vector<40x16x6xf32> to vector<40x6x6xf32>
    %cst_18 = arith.constant 0.00102838012 : f32
    %57 = vector.broadcast %cst_18 : f32 to vector<40x6x6xf32>
    %58 = arith.mulf %57, %56 : vector<40x6x6xf32>
    %59 = arith.addf %55, %58 : vector<40x6x6xf32>
    %60 = vector.extract_strided_slice %59 {offsets = [0, 0, 0], sizes = [8, 6, 6], strides = [1, 1, 1]} : vector<40x6x6xf32> to vector<8x6x6xf32>
    %61 = vector.extract_strided_slice %59 {offsets = [8, 0, 0], sizes = [8, 6, 6], strides = [1, 1, 1]} : vector<40x6x6xf32> to vector<8x6x6xf32>
    %62 = vector.extract_strided_slice %59 {offsets = [16, 0, 0], sizes = [8, 6, 6], strides = [1, 1, 1]} : vector<40x6x6xf32> to vector<8x6x6xf32>
    %63 = vector.extract_strided_slice %59 {offsets = [24, 0, 0], sizes = [8, 6, 6], strides = [1, 1, 1]} : vector<40x6x6xf32> to vector<8x6x6xf32>
    %64 = vector.extract_strided_slice %59 {offsets = [32, 0, 0], sizes = [8, 6, 6], strides = [1, 1, 1]} : vector<40x6x6xf32> to vector<8x6x6xf32>
    %65 = arith.mulf %60, %60 : vector<8x6x6xf32>
    %66 = arith.mulf %61, %61 : vector<8x6x6xf32>
    %67 = arith.mulf %60, %61 : vector<8x6x6xf32>
    %68 = arith.subf %62, %65 : vector<8x6x6xf32>
    %69 = arith.subf %63, %66 : vector<8x6x6xf32>
    %70 = arith.subf %64, %67 : vector<8x6x6xf32>
    %cst_19 = arith.constant 2.000000e+00 : f32
    %71 = vector.broadcast %cst_19 : f32 to vector<8x6x6xf32>
    %72 = arith.mulf %71, %67 : vector<8x6x6xf32>
    %cst_20 = arith.constant 9.99999974E-5 : f32
    %73 = vector.broadcast %cst_20 : f32 to vector<8x6x6xf32>
    %74 = arith.addf %72, %73 : vector<8x6x6xf32>
    %cst_21 = arith.constant 2.000000e+00 : f32
    %75 = vector.broadcast %cst_21 : f32 to vector<8x6x6xf32>
    %76 = arith.mulf %75, %70 : vector<8x6x6xf32>
    %cst_22 = arith.constant 8.99999984E-4 : f32
    %77 = vector.broadcast %cst_22 : f32 to vector<8x6x6xf32>
    %78 = arith.addf %76, %77 : vector<8x6x6xf32>
    %79 = arith.mulf %74, %78 : vector<8x6x6xf32>
    %80 = arith.addf %65, %66 : vector<8x6x6xf32>
    %cst_23 = arith.constant 9.99999974E-5 : f32
    %81 = vector.broadcast %cst_23 : f32 to vector<8x6x6xf32>
    %82 = arith.addf %80, %81 : vector<8x6x6xf32>
    %83 = arith.addf %68, %69 : vector<8x6x6xf32>
    %cst_24 = arith.constant 8.99999984E-4 : f32
    %84 = vector.broadcast %cst_24 : f32 to vector<8x6x6xf32>
    %85 = arith.addf %83, %84 : vector<8x6x6xf32>
    %86 = arith.mulf %82, %85 : vector<8x6x6xf32>
    %87 = arith.divf %79, %86 : vector<8x6x6xf32>
    %88 = vector.shape_cast %87 : vector<8x6x6xf32> to vector<1x8x6x6xf32>
    %cst_25 = arith.constant dense<0.000000e+00> : vector<1xf32>
    %89 = vector.multi_reduction <add>, %88, %cst_25 [1, 2, 3] : vector<1x8x6x6xf32> to vector<1xf32>
    %90 = vector.shape_cast %89 : vector<1xf32> to vector<1x1x1x1xf32>
    %91 = vector.extract %90[0, 0, 0, 0] : f32 from vector<1x1x1x1xf32>
    %92 = vector.broadcast %7 : f32 to vector<1x1x1xf32>
    %c0_26 = arith.constant 0 : index
    %c0_27 = arith.constant 0 : index
    %c0_28 = arith.constant 0 : index
    %93 = vector.load %arg4[%c0_26, %c0_27, %c0_28] : memref<1x1x1xf32, #tpu.memory_space<vmem>>, vector<1x1x1xf32>
    tpu.vector_store %arg4[%c0_26, %c0_27, %c0_28], %92 {strides = array<i32>} : memref<1x1x1xf32, #tpu.memory_space<vmem>>, vector<1x1x1xf32>,
    %94 = vector.broadcast %91 : f32 to vector<1x1x1xf32>
    %c0_29 = arith.constant 0 : index
    %c0_30 = arith.constant 0 : index
    %c0_31 = arith.constant 0 : index
    %95 = vector.load %arg5[%c0_29, %c0_30, %c0_31] : memref<1x1x1xf32, #tpu.memory_space<vmem>>, vector<1x1x1xf32>
    tpu.vector_store %arg5[%c0_29, %c0_30, %c0_31], %94 {strides = array<i32>} : memref<1x1x1xf32, #tpu.memory_space<vmem>>, vector<1x1x1xf32>,
    return
  }
  func.func @transform_0(%arg0: i32) -> (i32, i32, i32) {
    %c0_i32 = arith.constant 0 : i32
    %c0_i32_0 = arith.constant 0 : i32
    %c0_i32_1 = arith.constant 0 : i32
    return %arg0, %c0_i32, %c0_i32_0 : i32, i32, i32
  }
  func.func @transform_1(%arg0: i32) -> (i32, i32, i32) {
    %c0_i32 = arith.constant 0 : i32
    %c0_i32_0 = arith.constant 0 : i32
    %c0_i32_1 = arith.constant 0 : i32
    return %arg0, %c0_i32, %c0_i32_0 : i32, i32, i32
  }
  func.func @transform_2(%arg0: i32) -> (i32, i32) {
    %c0_i32 = arith.constant 0 : i32
    %c0_i32_0 = arith.constant 0 : i32
    %c0_i32_1 = arith.constant 0 : i32
    return %c0_i32, %c0_i32_0 : i32, i32
  }
  func.func @transform_3(%arg0: i32) -> (i32, i32, i32) {
    %c0_i32 = arith.constant 0 : i32
    %c0_i32_0 = arith.constant 0 : i32
    %c0_i32_1 = arith.constant 0 : i32
    return %arg0, %c0_i32, %c0_i32_0 : i32, i32, i32
  }
  func.func @transform_4(%arg0: i32) -> (i32, i32, i32) {
    %c0_i32 = arith.constant 0 : i32
    %c0_i32_0 = arith.constant 0 : i32
    %c0_i32_1 = arith.constant 0 : i32
    return %arg0, %c0_i32, %c0_i32_0 : i32, i32, i32
  }
}

</mosaic_0001>

<llo_original>
// kernel: generator_loss.1
$region0: #{generator_loss.1}
  #allocation0 [shape = 'u32[]', space=smem, size = 0x4, offset = 0x4, fixed_abs, tag = 'smem constant byte address 0x4 - core index']
  #allocation1 [shape = 'u32[144,128]{1,0:T(1,128)}', space=vmem, size = 0x12000, scoped, tag = 'internal scratch']
  %s0 = inlined_call_operand.hbm [shape: f32[8,16,16], index: 0, kind: input, shape index: {}]
  %s1 = inlined_call_operand.hbm [shape: f32[8,16,16], index: 1, kind: input, shape index: {}]
  %s2 = inlined_call_operand.vmem [shape: f32[16,6], index: 2, kind: input, shape index: {}]
  %s3 = inlined_call_operand.hbm [shape: f32[1,1,1], index: 3, kind: output, shape index: {0}]
  %s4 = inlined_call_operand.hbm [shape: f32[1,1,1], index: 4, kind: output, shape index: {1}]
  %5 = xla_tuple %s3, %s4
  %s6 = sld [smem:[#allocation0]]
  $region38: #{generator_loss.1} parent=0
    _
  %s8 = ssub.s32 1, %s6
  %s9 = scalar_select 0, %s8, %s6
  $region1: #{generator_loss.1} parent=0
    #allocation2 [shape = 'u8[65536]{0}', space=vmem, size = 0x10000, scoped, tag = 'input window, operand 0, single buffered']
    #allocation3 [shape = 's32[1]{0}', space=sflag, size = 0x4, scoped, tag = 'scoped memory for generator_loss.1']
    #allocation4 [shape = 's32[1]{0}', space=sflag, size = 0x4, scoped, tag = 'scoped memory for generator_loss.1']
    #allocation5 [shape = 'u8[65536]{0}', space=vmem, size = 0x10000, scoped, tag = 'input window, operand 1, single buffered']
    #allocation6 [shape = 's32[1]{0}', space=sflag, size = 0x4, scoped, tag = 'scoped memory for generator_loss.1']
    #allocation7 [shape = 'u8[512]{0}', space=vmem, size = 0x400, scoped, tag = 'output window, operand 0, single buffered']
    #allocation8 [shape = 'u8[512]{0}', space=vmem, size = 0x400, scoped, tag = 'output window, operand 1, single buffered']
    #allocation9 [shape = 's32[1]{0}', space=sflag, size = 0x4, scoped, tag = 'scoped memory for generator_loss.1']
    %10 = vsyncpa [#allocation3], 0
    %11 = vsyncpa [#allocation6], 0
    %12 = vsyncpa [#allocation4], 0
    %13 = vsyncpa [#allocation9], 0
    // Predicated region
    $region2: #{generator_loss.1} parent=1 // pred_check
      _
    $region3: #{generator_loss.1} parent=1 // pred_check_branch
      %15 = sbr.rel (0) target = $region5
    $region4: #{generator_loss.1} parent=1 // pred_region
      %s17 = ssub.s32 2048, 2048
      %18 = vsyncadd [#allocation3], %s17
      %s19 = sshll.u32 [#allocation2], 4
      %s20 = int_to_ptr.vmem [resolvable:$true] %s19
      %25 = dma.hbm_to_vmem [thread:$0]  %s0, 2048, %s20, [#allocation3], 128, 128, 8
    $region5: #{generator_loss.1} parent=1 // pred_fallthru
      _
    // Predicated region
    $region6: #{generator_loss.1} parent=1 // pred_check
      _
    $region7: #{generator_loss.1} parent=1 // pred_check_branch
      %27 = sbr.rel (0) target = $region9
    $region8: #{generator_loss.1} parent=1 // pred_region
      %s29 = ssub.s32 2048, 2048
      %30 = vsyncadd [#allocation6], %s29
      %s31 = sshll.u32 [#allocation5], 4
      %s32 = int_to_ptr.vmem [resolvable:$true] %s31
      %37 = dma.hbm_to_vmem [thread:$0]  %s1, 2048, %s32, [#allocation6], 128, 128, 8
    $region9: #{generator_loss.1} parent=1 // pred_fallthru
      _
    // Predicated region
    $region10: #{generator_loss.1} parent=1 // pred_check
      _
    $region11: #{generator_loss.1} parent=1 // pred_check_branch
      %39 = sbr.rel (0) target = $region13
    $region12: #{generator_loss.1} parent=1 // pred_region
      _
    $region13: #{generator_loss.1} parent=1 // pred_fallthru
      _
    // Predicated region
    $region14: #{generator_loss.1} parent=1 // pred_check
      _
    $region15: #{generator_loss.1} parent=1 // pred_check_branch
      %41 = sbr.rel (0) target = $region17
    $region16: #{generator_loss.1} parent=1 // pred_region
      %42 = dma.done [#allocation3], 2048
    $region17: #{generator_loss.1} parent=1 // pred_fallthru
      _
    // Predicated region
    $region18: #{generator_loss.1} parent=1 // pred_check
      _
    $region19: #{generator_loss.1} parent=1 // pred_check_branch
      %44 = sbr.rel (0) target = $region21
    $region20: #{generator_loss.1} parent=1 // pred_region
      %45 = dma.done [#allocation6], 2048
    $region21: #{generator_loss.1} parent=1 // pred_fallthru
      _
    %v46 = vld [vmem:[#allocation2] sm:$0xff]
    %v47 = vld [vmem:[#allocation2 + $0x8] sm:$0xff]
    %v48 = vld [vmem:[#allocation2 + $0x10] sm:$0xff]
    %v49 = vld [vmem:[#allocation2 + $0x18] sm:$0xff]
    %v50 = vld [vmem:[#allocation2 + $0x20] sm:$0xff]
    %v51 = vld [vmem:[#allocation2 + $0x28] sm:$0xff]
    %v52 = vld [vmem:[#allocation2 + $0x30] sm:$0xff]
    %v53 = vld [vmem:[#allocation2 + $0x38] sm:$0xff]
    %v54 = vld [vmem:[#allocation2 + $0x40] sm:$0xff]
    %v55 = vld [vmem:[#allocation2 + $0x48] sm:$0xff]
    %v56 = vld [vmem:[#allocation2 + $0x50] sm:$0xff]
    %v57 = vld [vmem:[#allocation2 + $0x58] sm:$0xff]
    %v58 = vld [vmem:[#allocation2 + $0x60] sm:$0xff]
    %v59 = vld [vmem:[#allocation2 + $0x68] sm:$0xff]
    %v60 = vld [vmem:[#allocation2 + $0x70] sm:$0xff]
    %v61 = vld [vmem:[#allocation2 + $0x78] sm:$0xff]
    %v62 = vld [vmem:[#allocation5] sm:$0xff]
    %v63 = vld [vmem:[#allocation5 + $0x8] sm:$0xff]
    %v64 = vld [vmem:[#allocation5 + $0x10] sm:$0xff]
    %v65 = vld [vmem:[#allocation5 + $0x18] sm:$0xff]
    %v66 = vld [vmem:[#allocation5 + $0x20] sm:$0xff]
    %v67 = vld [vmem:[#allocation5 + $0x28] sm:$0xff]
    %v68 = vld [vmem:[#allocation5 + $0x30] sm:$0xff]
    %v69 = vld [vmem:[#allocation5 + $0x38] sm:$0xff]
    %v70 = vld [vmem:[#allocation5 + $0x40] sm:$0xff]
    %v71 = vld [vmem:[#allocation5 + $0x48] sm:$0xff]
    %v72 = vld [vmem:[#allocation5 + $0x50] sm:$0xff]
    %v73 = vld [vmem:[#allocation5 + $0x58] sm:$0xff]
    %v74 = vld [vmem:[#allocation5 + $0x60] sm:$0xff]
    %v75 = vld [vmem:[#allocation5 + $0x68] sm:$0xff]
    %v76 = vld [vmem:[#allocation5 + $0x70] sm:$0xff]
    %v77 = vld [vmem:[#allocation5 + $0x78] sm:$0xff]
    %v78 = vsub.f32 %v46, %v62
    %v79 = vsub.f32 %v47, %v63
    %v80 = vsub.f32 %v48, %v64
    %v81 = vsub.f32 %v49, %v65
    %v82 = vsub.f32 %v50, %v66
    %v83 = vsub.f32 %v51, %v67
    %v84 = vsub.f32 %v52, %v68
    %v85 = vsub.f32 %v53, %v69
    %v86 = vsub.f32 %v54, %v70
    %v87 = vsub.f32 %v55, %v71
    %v88 = vsub.f32 %v56, %v72
    %v89 = vsub.f32 %v57, %v73
    %v90 = vsub.f32 %v58, %v74
    %v91 = vsub.f32 %v59, %v75
    %v92 = vsub.f32 %v60, %v76
    %v93 = vsub.f32 %v61, %v77
    %v94 = vand.u32 2147483647, %v78
    %v95 = vand.u32 2147483647, %v79
    %v96 = vand.u32 2147483647, %v80
    %v97 = vand.u32 2147483647, %v81
    %v98 = vand.u32 2147483647, %v82
    %v99 = vand.u32 2147483647, %v83
    %v100 = vand.u32 2147483647, %v84
    %v101 = vand.u32 2147483647, %v85
    %v102 = vand.u32 2147483647, %v86
    %v103 = vand.u32 2147483647, %v87
    %v104 = vand.u32 2147483647, %v88
    %v105 = vand.u32 2147483647, %v89
    %v106 = vand.u32 2147483647, %v90
    %v107 = vand.u32 2147483647, %v91
    %v108 = vand.u32 2147483647, %v92
    %v109 = vand.u32 2147483647, %v93
    %vm110 = vcmask 130048
    %v111 = vsel %vm110, %v94, 0.0
    %v112 = vsel %vm110, %v95, 0.0
    %v113 = vadd.f32 %v111, %v112
    %v114 = vsel %vm110, %v96, 0.0
    %v115 = vadd.f32 %v113, %v114
    %v116 = vsel %vm110, %v97, 0.0
    %v117 = vadd.f32 %v115, %v116
    %v118 = vsel %vm110, %v98, 0.0
    %v119 = vadd.f32 %v117, %v118
    %v120 = vsel %vm110, %v99, 0.0
    %v121 = vadd.f32 %v119, %v120
    %v122 = vsel %vm110, %v100, 0.0
    %v123 = vadd.f32 %v121, %v122
    %v124 = vsel %vm110, %v101, 0.0
    %v125 = vadd.f32 %v123, %v124
    %v126 = vsel %vm110, %v102, 0.0
    %v127 = vadd.f32 %v125, %v126
    %v128 = vsel %vm110, %v103, 0.0
    %v129 = vadd.f32 %v127, %v128
    %v130 = vsel %vm110, %v104, 0.0
    %v131 = vadd.f32 %v129, %v130
    %v132 = vsel %vm110, %v105, 0.0
    %v133 = vadd.f32 %v131, %v132
    %v134 = vsel %vm110, %v106, 0.0
    %v135 = vadd.f32 %v133, %v134
    %v136 = vsel %vm110, %v107, 0.0
    %v137 = vadd.f32 %v135, %v136
    %v138 = vsel %vm110, %v108, 0.0
    %v139 = vadd.f32 %v137, %v138
    %v140 = vsel %vm110, %v109, 0.0
    %v141 = vadd.f32 %v139, %v140
    %142 = vadd.xlane.f32.xlu0 %v141
    %v143 = vpop.xlane.xlu0 %142
    %v144 = vrot.slane %v143, 4
    %v145 = vadd.f32 %v143, %v144
    %v146 = vrot.slane %v145, 2
    %v147 = vadd.f32 %v145, %v146
    %v148 = vrot.slane %v147, 1
    %v149 = vadd.f32 %v147, %v148
    %s150 = vtos %v149
    %v151 = vmul.f32 %v46, %v46
    %v152 = vmul.f32 %v47, %v47
    %v153 = vmul.f32 %v48, %v48
    %v154 = vmul.f32 %v49, %v49
    %v155 = vmul.f32 %v50, %v50
    %v156 = vmul.f32 %v51, %v51
    %v157 = vmul.f32 %v52, %v52
    %v158 = vmul.f32 %v53, %v53
    %v159 = vmul.f32 %v54, %v54
    %v160 = vmul.f32 %v55, %v55
    %v161 = vmul.f32 %v56, %v56
    %v162 = vmul.f32 %v57, %v57
    %v163 = vmul.f32 %v58, %v58
    %v164 = vmul.f32 %v59, %v59
    %v165 = vmul.f32 %v60, %v60
    %v166 = vmul.f32 %v61, %v61
    %v167 = vmul.f32 %v62, %v62
    %v168 = vmul.f32 %v63, %v63
    %v169 = vmul.f32 %v64, %v64
    %v170 = vmul.f32 %v65, %v65
    %v171 = vmul.f32 %v66, %v66
    %v172 = vmul.f32 %v67, %v67
    %v173 = vmul.f32 %v68, %v68
    %v174 = vmul.f32 %v69, %v69
    %v175 = vmul.f32 %v70, %v70
    %v176 = vmul.f32 %v71, %v71
    %v177 = vmul.f32 %v72, %v72
    %v178 = vmul.f32 %v73, %v73
    %v179 = vmul.f32 %v74, %v74
    %v180 = vmul.f32 %v75, %v75
    %v181 = vmul.f32 %v76, %v76
    %v182 = vmul.f32 %v77, %v77
    %v183 = vmul.f32 %v46, %v62
    %v184 = vmul.f32 %v47, %v63
    %v185 = vmul.f32 %v48, %v64
    %v186 = vmul.f32 %v49, %v65
    %v187 = vmul.f32 %v50, %v66
    %v188 = vmul.f32 %v51, %v67
    %v189 = vmul.f32 %v52, %v68
    %v190 = vmul.f32 %v53, %v69
    %v191 = vmul.f32 %v54, %v70
    %v192 = vmul.f32 %v55, %v71
    %v193 = vmul.f32 %v56, %v72
    %v194 = vmul.f32 %v57, %v73
    %v195 = vmul.f32 %v58, %v74
    %v196 = vmul.f32 %v59, %v75
    %v197 = vmul.f32 %v60, %v76
    %v198 = vmul.f32 %v61, %v77
    %v199 = vld [vmem:[%s2] sm:$0xff]
    %v200 = vld [vmem:[%s2 + $0x8] sm:$0xff]
    %v202 = vsel %vm110, %v46, 0
    %v205 = vsel %vm110, %v47, 0
    %v208 = vsel %vm110, %v48, 0
    %v211 = vsel %vm110, %v49, 0
    %v214 = vsel %vm110, %v50, 0
    %v217 = vsel %vm110, %v51, 0
    %v220 = vsel %vm110, %v52, 0
    %v223 = vsel %vm110, %v53, 0
    %v226 = vsel %vm110, %v54, 0
    %v229 = vsel %vm110, %v55, 0
    %v232 = vsel %vm110, %v56, 0
    %v235 = vsel %vm110, %v57, 0
    %v238 = vsel %vm110, %v58, 0
    %v241 = vsel %vm110, %v59, 0
    %v244 = vsel %vm110, %v60, 0
    %v247 = vsel %vm110, %v61, 0
    %v250 = vsel %vm110, %v62, 0
    %v253 = vsel %vm110, %v63, 0
    %v256 = vsel %vm110, %v64, 0
    %v259 = vsel %vm110, %v65, 0
    %v262 = vsel %vm110, %v66, 0
    %v265 = vsel %vm110, %v67, 0
    %v268 = vsel %vm110, %v68, 0
    %v271 = vsel %vm110, %v69, 0
    %v274 = vsel %vm110, %v70, 0
    %v277 = vsel %vm110, %v71, 0
    %v280 = vsel %vm110, %v72, 0
    %v283 = vsel %vm110, %v73, 0
    %v286 = vsel %vm110, %v74, 0
    %v289 = vsel %vm110, %v75, 0
    %v292 = vsel %vm110, %v76, 0
    %v295 = vsel %vm110, %v77, 0
    %v298 = vsel %vm110, %v151, 0
    %v301 = vsel %vm110, %v152, 0
    %v304 = vsel %vm110, %v153, 0
    %v307 = vsel %vm110, %v154, 0
    %v310 = vsel %vm110, %v155, 0
    %v313 = vsel %vm110, %v156, 0
    %v316 = vsel %vm110, %v157, 0
    %v319 = vsel %vm110, %v158, 0
    %v322 = vsel %vm110, %v159, 0
    %v325 = vsel %vm110, %v160, 0
    %v328 = vsel %vm110, %v161, 0
    %v331 = vsel %vm110, %v162, 0
    %v334 = vsel %vm110, %v163, 0
    %v337 = vsel %vm110, %v164, 0
    %v340 = vsel %vm110, %v165, 0
    %v343 = vsel %vm110, %v166, 0
    %v346 = vsel %vm110, %v167, 0
    %v349 = vsel %vm110, %v168, 0
    %v352 = vsel %vm110, %v169, 0
    %v355 = vsel %vm110, %v170, 0
    %v358 = vsel %vm110, %v171, 0
    %v361 = vsel %vm110, %v172, 0
    %v364 = vsel %vm110, %v173, 0
    %v367 = vsel %vm110, %v174, 0
    %v370 = vsel %vm110, %v175, 0
    %v373 = vsel %vm110, %v176, 0
    %v376 = vsel %vm110, %v177, 0
    %v379 = vsel %vm110, %v178, 0
    %v382 = vsel %vm110, %v179, 0
    %v385 = vsel %vm110, %v180, 0
    %v388 = vsel %vm110, %v181, 0
    %v391 = vsel %vm110, %v182, 0
    %v394 = vsel %vm110, %v183, 0
    %v397 = vsel %vm110, %v184, 0
    %v400 = vsel %vm110, %v185, 0
    %v403 = vsel %vm110, %v186, 0
    %v406 = vsel %vm110, %v187, 0
    %v409 = vsel %vm110, %v188, 0
    %v412 = vsel %vm110, %v189, 0
    %v415 = vsel %vm110, %v190, 0
    %v418 = vsel %vm110, %v191, 0
    %v421 = vsel %vm110, %v192, 0
    %v424 = vsel %vm110, %v193, 0
    %v427 = vsel %vm110, %v194, 0
    %v430 = vsel %vm110, %v195, 0
    %v433 = vsel %vm110, %v196, 0
    %v436 = vsel %vm110, %v197, 0
    %v439 = vsel %vm110, %v198, 0
    %441 = vmatprep.subr.mxu0 0.0
    %v442 = vand.u32 %v199, 4294901760
    %443 = vmatpush1.msra.mxu0 %v442
    %444 = vmatprep.subr.mxu0 0.0
    %v445 = vand.u32 %v200, 4294901760
    %446 = vmatpush1.msra.mxu0 %v445
    %447 = vmatprep.subr.mxu0 0.0
    %448 = vmatpush1.msra.mxu0 0.0
    %449 = vmatprep.subr.mxu0 0.0
    %450 = vmatpush1.msra.mxu0 0.0
    %451 = vmatprep.subr.mxu0 0.0
    %452 = vmatpush1.msra.mxu0 0.0
    %453 = vmatprep.subr.mxu0 0.0
    %454 = vmatpush1.msra.mxu0 0.0
    %455 = vmatprep.subr.mxu0 0.0
    %456 = vmatpush1.msra.mxu0 0.0
    %457 = vmatprep.subr.mxu0 0.0
    %458 = vmatpush1.msra.mxu0 0.0
    %459 = vmatprep.subr.mxu0 0.0
    %460 = vmatpush1.msra.mxu0 0.0
    %461 = vmatprep.subr.mxu0 0.0
    %462 = vmatpush1.msra.mxu0 0.0
    %463 = vmatprep.subr.mxu0 0.0
    %464 = vmatpush1.msra.mxu0 0.0
    %465 = vmatprep.subr.mxu0 0.0
    %466 = vmatpush1.msra.mxu0 0.0
    %467 = vmatprep.subr.mxu0 0.0
    %468 = vmatpush1.msra.mxu0 0.0
    %469 = vmatprep.subr.mxu0 0.0
    %470 = vmatpush1.msra.mxu0 0.0
    %471 = vmatprep.subr.mxu0 0.0
    %472 = vmatpush1.msra.mxu0 0.0
    %473 = vmatprep.subr.mxu0 0.0
    %474 = vmatpush1.msra.mxu0 0.0
    %475 = vmatprep.subr.mxu0 0.0
    %476 = vmatpush1.msra.mxu0 0.0
    %477 = vmatprep.subr.mxu0 0.0
    %478 = vmatpush1.msra.mxu0 0.0
    %479 = vmatprep.subr.mxu0 0.0
    %480 = vmatpush1.msra.mxu0 0.0
    %481 = vmatprep.subr.mxu0 0.0
    %482 = vmatpush1.msra.mxu0 0.0
    %483 = vmatprep.subr.mxu0 0.0
    %484 = vmatpush1.msra.mxu0 0.0
    %485 = vmatprep.subr.mxu0 0.0
    %486 = vmatpush1.msra.mxu0 0.0
    %487 = vmatprep.subr.mxu0 0.0
    %488 = vmatpush1.msra.mxu0 0.0
    %489 = vmatprep.subr.mxu0 0.0
    %490 = vmatpush1.msra.mxu0 0.0
    %491 = vmatprep.subr.mxu0 0.0
    %492 = vmatpush1.msra.mxu0 0.0
    %493 = vmatprep.subr.mxu0 0.0
    %494 = vmatpush1.msra.mxu0 0.0
    %495 = vmatprep.subr.mxu0 0.0
    %496 = vmatpush1.msra.mxu0 0.0
    %497 = vmatprep.subr.mxu0 0.0
    %498 = vmatpush1.msra.mxu0 0.0
    %499 = vmatprep.subr.mxu0 0.0
    %500 = vmatpush1.msra.mxu0 0.0
    %501 = vmatprep.subr.mxu0 0.0
    %502 = vmatpush1.msra.mxu0 0.0
    %503 = vmatprep.subr.mxu0 0.0
    %504 = vmatpush1.msra.mxu0 0.0
    %505 = vmatprep.subr.mxu0 0.0
    %506 = vmatpush1.msra.mxu0 0.0
    %507 = vmatprep.mubr.f32.mxu0 0.0
    %v508 = vand.u32 %v202, 4294901760
    %v509 = vsub.f32 %v202, %v508
    %v510 = vand.u32 %v509, 4294901760
    %v511 = vsub.f32 %v509, %v510
    %v512 = vand.u32 %v511, 4294901760
    %513 = vmatmul.mubr.f32.gmra.mrb[0].mxu0 %v512
    %v514 = vpop.f32.mrb[0].mxu0
    %v515 = vadd.f32 0.0, %v514
    %v516 = vpop.f32.mrb[0].mxu0
    %517 = vmatprep.mubr.f32.mxu0 0.0
    %v518 = vand.u32 %v205, 4294901760
    %v519 = vsub.f32 %v205, %v518
    %v520 = vand.u32 %v519, 4294901760
    %v521 = vsub.f32 %v519, %v520
    %v522 = vand.u32 %v521, 4294901760
    %523 = vmatmul.mubr.f32.gmra.mrb[0].mxu0 %v522
    %v524 = vpop.f32.mrb[0].mxu0
    %v525 = vadd.f32 0.0, %v524
    %v526 = vpop.f32.mrb[0].mxu0
    %527 = vmatprep.mubr.f32.mxu0 0.0
    %v528 = vand.u32 %v208, 4294901760
    %v529 = vsub.f32 %v208, %v528
    %v530 = vand.u32 %v529, 4294901760
    %v531 = vsub.f32 %v529, %v530
    %v532 = vand.u32 %v531, 4294901760
    %533 = vmatmul.mubr.f32.gmra.mrb[0].mxu0 %v532
    %v534 = vpop.f32.mrb[0].mxu0
    %v535 = vadd.f32 0.0, %v534
    %v536 = vpop.f32.mrb[0].mxu0
    %537 = vmatprep.mubr.f32.mxu0 0.0
    %v538 = vand.u32 %v211, 4294901760
    %v539 = vsub.f32 %v211, %v538
    %v540 = vand.u32 %v539, 4294901760
    %v541 = vsub.f32 %v539, %v540
    %v542 = vand.u32 %v541, 4294901760
    %543 = vmatmul.mubr.f32.gmra.mrb[0].mxu0 %v542
    %v544 = vpop.f32.mrb[0].mxu0
    %v545 = vadd.f32 0.0, %v544
    %v546 = vpop.f32.mrb[0].mxu0
    %547 = vmatprep.mubr.f32.mxu0 0.0
    %v548 = vand.u32 %v214, 4294901760
    %v549 = vsub.f32 %v214, %v548
    %v550 = vand.u32 %v549, 4294901760
    %v551 = vsub.f32 %v549, %v550
    %v552 = vand.u32 %v551, 4294901760
    %553 = vmatmul.mubr.f32.gmra.mrb[0].mxu0 %v552
    %v554 = vpop.f32.mrb[0].mxu0
    %v555 = vadd.f32 0.0, %v554
    %v556 = vpop.f32.mrb[0].mxu0
    %557 = vmatprep.mubr.f32.mxu0 0.0
    %v558 = vand.u32 %v217, 4294901760
    %v559 = vsub.f32 %v217, %v558
    %v560 = vand.u32 %v559, 4294901760
    %v561 = vsub.f32 %v559, %v560
    %v562 = vand.u32 %v561, 4294901760
    %563 = vmatmul.mubr.f32.gmra.mrb[0].mxu0 %v562
    %v564 = vpop.f32.mrb[0].mxu0
    %v565 = vadd.f32 0.0, %v564
    %v566 = vpop.f32.mrb[0].mxu0
    %567 = vmatprep.mubr.f32.mxu0 0.0
    %v568 = vand.u32 %v220, 4294901760
    %v569 = vsub.f32 %v220, %v568
    %v570 = vand.u32 %v569, 4294901760
    %v571 = vsub.f32 %v569, %v570
    %v572 = vand.u32 %v571, 4294901760
    %573 = vmatmul.mubr.f32.gmra.mrb[0].mxu0 %v572
    %v574 = vpop.f32.mrb[0].mxu0
    %v575 = vadd.f32 0.0, %v574
    %v576 = vpop.f32.mrb[0].mxu0
    %577 = vmatprep.mubr.f32.mxu0 0.0
    %v578 = vand.u32 %v223, 4294901760
    %v579 = vsub.f32 %v223, %v578
    %v580 = vand.u32 %v579, 4294901760
    %v581 = vsub.f32 %v579, %v580
    %v582 = vand.u32 %v581, 4294901760
    %583 = vmatmul.mubr.f32.gmra.mrb[0].mxu0 %v582
    %v584 = vpop.f32.mrb[0].mxu0
    %v585 = vadd.f32 0.0, %v584
    %v586 = vpop.f32.mrb[0].mxu0
    %587 = vmatprep.mubr.f32.mxu0 0.0
    %v588 = vand.u32 %v226, 4294901760
    %v589 = vsub.f32 %v226, %v588
    %v590 = vand.u32 %v589, 4294901760
    %v591 = vsub.f32 %v589, %v590
    %v592 = vand.u32 %v591, 4294901760
    %593 = vmatmul.mubr.f32.gmra.mrb[0].mxu0 %v592
    %v594 = vpop.f32.mrb[0].mxu0
    %v595 = vadd.f32 0.0, %v594
    %v596 = vpop.f32.mrb[0].mxu0
    %597 = vmatprep.mubr.f32.mxu0 0.0
    %v598 = vand.u32 %v229, 4294901760
    %v599 = vsub.f32 %v229, %v598
    %v600 = vand.u32 %v599, 4294901760
    %v601 = vsub.f32 %v599, %v600
    %v602 = vand.u32 %v601, 4294901760
    %603 = vmatmul.mubr.f32.gmra.mrb[0].mxu0 %v602
    %v604 = vpop.f32.mrb[0].mxu0
    %v605 = vadd.f32 0.0, %v604
    %v606 = vpop.f32.mrb[0].mxu0
    %607 = vmatprep.mubr.f32.mxu0 0.0
    %v608 = vand.u32 %v232, 4294901760
    %v609 = vsub.f32 %v232, %v608
    %v610 = vand.u32 %v609, 4294901760
    %v611 = vsub.f32 %v609, %v610
    %v612 = vand.u32 %v611, 4294901760
    %613 = vmatmul.mubr.f32.gmra.mrb[0].mxu0 %v612
    %v614 = vpop.f32.mrb[0].mxu0
    %v615 = vadd.f32 0.0, %v614
    %v616 = vpop.f32.mrb[0].mxu0
    %617 = vmatprep.mubr.f32.mxu0 0.0
    %v618 = vand.u32 %v235, 4294901760
    %v619 = vsub.f32 %v235, %v618
    %v620 = vand.u32 %v619, 4294901760
    %v621 = vsub.f32 %v619, %v620
    %v622 = vand.u32 %v621, 4294901760
    %623 = vmatmul.mubr.f32.gmra.mrb[0].mxu0 %v622
    %v624 = vpop.f32.mrb[0].mxu0
    %v625 = vadd.f32 0.0, %v624
    %v626 = vpop.f32.mrb[0].mxu0
    %627 = vmatprep.mubr.f32.mxu0 0.0
    %v628 = vand.u32 %v238, 4294901760
    %v629 = vsub.f32 %v238, %v628
    %v630 = vand.u32 %v629, 4294901760
    %v631 = vsub.f32 %v629, %v630
    %v632 = vand.u32 %v631, 4294901760
    %633 = vmatmul.mubr.f32.gmra.mrb[0].mxu0 %v632
    %v634 = vpop.f32.mrb[0].mxu0
    %v635 = vadd.f32 0.0, %v634
    %v636 = vpop.f32.mrb[0].mxu0
    %637 = vmatprep.mubr.f32.mxu0 0.0
    %v638 = vand.u32 %v241, 4294901760
    %v639 = vsub.f32 %v241, %v638
    %v640 = vand.u32 %v639, 4294901760
    %v641 = vsub.f32 %v639, %v640
    %v642 = vand.u32 %v641, 4294901760
    %643 = vmatmul.mubr.f32.gmra.mrb[0].mxu0 %v642
    %v644 = vpop.f32.mrb[0].mxu0
    %v645 = vadd.f32 0.0, %v644
    %v646 = vpop.f32.mrb[0].mxu0
    %647 = vmatprep.mubr.f32.mxu0 0.0
    %v648 = vand.u32 %v244, 4294901760
    %v649 = vsub.f32 %v244, %v648
    %v650 = vand.u32 %v649, 4294901760
    %v651 = vsub.f32 %v649, %v650
    %v652 = vand.u32 %v651, 4294901760
    %653 = vmatmul.mubr.f32.gmra.mrb[0].mxu0 %v652
    %v654 = vpop.f32.mrb[0].mxu0
    %v655 = vadd.f32 0.0, %v654
    %v656 = vpop.f32.mrb[0].mxu0
    %657 = vmatprep.mubr.f32.mxu0 0.0
    %v658 = vand.u32 %v247, 4294901760
    %v659 = vsub.f32 %v247, %v658
    %v660 = vand.u32 %v659, 4294901760
    %v661 = vsub.f32 %v659, %v660
    %v662 = vand.u32 %v661, 4294901760
    %663 = vmatmul.mubr.f32.gmra.mrb[0].mxu0 %v662
    %v664 = vpop.f32.mrb[0].mxu0
    %v665 = vadd.f32 0.0, %v664
    %v666 = vpop.f32.mrb[0].mxu0
    %667 = vmatprep.mubr.f32.mxu0 0.0
    %v668 = vand.u32 %v250, 4294901760
    %v669 = vsub.f32 %v250, %v668
    %v670 = vand.u32 %v669, 4294901760
    %v671 = vsub.f32 %v669, %v670
    %v672 = vand.u32 %v671, 4294901760
    %673 = vmatmul.mubr.f32.gmra.mrb[0].mxu0 %v672
    %v674 = vpop.f32.mrb[0].mxu0
    %v675 = vadd.f32 0.0, %v674
    %v676 = vpop.f32.mrb[0].mxu0
    %677 = vmatprep.mubr.f32.mxu0 0.0
    %v678 = vand.u32 %v253, 4294901760
    %v679 = vsub.f32 %v253, %v678
    %v680 = vand.u32 %v679, 4294901760
    %v681 = vsub.f32 %v679, %v680
    %v682 = vand.u32 %v681, 4294901760
    %683 = vmatmul.mubr.f32.gmra.mrb[0].mxu0 %v682
    %v684 = vpop.f32.mrb[0].mxu0
    %v685 = vadd.f32 0.0, %v684
    %v686 = vpop.f32.mrb[0].mxu0
    %687 = vmatprep.mubr.f32.mxu0 0.0
    %v688 = vand.u32 %v256, 4294901760
    %v689 = vsub.f32 %v256, %v688
    %v690 = vand.u32 %v689, 4294901760
    %v691 = vsub.f32 %v689, %v690
    %v692 = vand.u32 %v691, 4294901760
    %693 = vmatmul.mubr.f32.gmra.mrb[0].mxu0 %v692
    %v694 = vpop.f32.mrb[0].mxu0
    %v695 = vadd.f32 0.0, %v694
    %v696 = vpop.f32.mrb[0].mxu0
    %697 = vmatprep.mubr.f32.mxu0 0.0
    %v698 = vand.u32 %v259, 4294901760
    %v699 = vsub.f32 %v259, %v698
    %v700 = vand.u32 %v699, 4294901760
    %v701 = vsub.f32 %v699, %v700
    %v702 = vand.u32 %v701, 4294901760
    %703 = vmatmul.mubr.f32.gmra.mrb[0].mxu0 %v702
    %v704 = vpop.f32.mrb[0].mxu0
    %v705 = vadd.f32 0.0, %v704
    %v706 = vpop.f32.mrb[0].mxu0
    %707 = vmatprep.mubr.f32.mxu0 0.0
    %v708 = vand.u32 %v262, 4294901760
    %v709 = vsub.f32 %v262, %v708
    %v710 = vand.u32 %v709, 4294901760
    %v711 = vsub.f32 %v709, %v710
    %v712 = vand.u32 %v711, 4294901760
    %713 = vmatmul.mubr.f32.gmra.mrb[0].mxu0 %v712
    %v714 = vpop.f32.mrb[0].mxu0
    %v715 = vadd.f32 0.0, %v714
    %v716 = vpop.f32.mrb[0].mxu0
    %717 = vmatprep.mubr.f32.mxu0 0.0
    %v718 = vand.u32 %v265, 4294901760
    %v719 = vsub.f32 %v265, %v718
    %v720 = vand.u32 %v719, 4294901760
    %v721 = vsub.f32 %v719, %v720
    %v722 = vand.u32 %v721, 4294901760
    %723 = vmatmul.mubr.f32.gmra.mrb[0].mxu0 %v722
    %v724 = vpop.f32.mrb[0].mxu0
    %v725 = vadd.f32 0.0, %v724
    %v726 = vpop.f32.mrb[0].mxu0
    %727 = vmatprep.mubr.f32.mxu0 0.0
    %v728 = vand.u32 %v268, 4294901760
    %v729 = vsub.f32 %v268, %v728
    %v730 = vand.u32 %v729, 4294901760
    %v731 = vsub.f32 %v729, %v730
    %v732 = vand.u32 %v731, 4294901760
    %733 = vmatmul.mubr.f32.gmra.mrb[0].mxu0 %v732
    %v734 = vpop.f32.mrb[0].mxu0
    %v735 = vadd.f32 0.0, %v734
    %v736 = vpop.f32.mrb[0].mxu0
    %737 = vmatprep.mubr.f32.mxu0 0.0
    %v738 = vand.u32 %v271, 4294901760
    %v739 = vsub.f32 %v271, %v738
    %v740 = vand.u32 %v739, 4294901760
    %v741 = vsub.f32 %v739, %v740
    %v742 = vand.u32 %v741, 4294901760
    %743 = vmatmul.mubr.f32.gmra.mrb[0].mxu0 %v742
    %v744 = vpop.f32.mrb[0].mxu0
    %v745 = vadd.f32 0.0, %v744
    %v746 = vpop.f32.mrb[0].mxu0
    %747 = vmatprep.mubr.f32.mxu0 0.0
    %v748 = vand.u32 %v274, 4294901760
    %v749 = vsub.f32 %v274, %v748
    %v750 = vand.u32 %v749, 4294901760
    %v751 = vsub.f32 %v749, %v750
    %v752 = vand.u32 %v751, 4294901760
    %753 = vmatmul.mubr.f32.gmra.mrb[0].mxu0 %v752
    %v754 = vpop.f32.mrb[0].mxu0
    %v755 = vadd.f32 0.0, %v754
    %v756 = vpop.f32.mrb[0].mxu0
    %757 = vmatprep.mubr.f32.mxu0 0.0
    %v758 = vand.u32 %v277, 4294901760
    %v759 = vsub.f32 %v277, %v758
    %v760 = vand.u32 %v759, 4294901760
    %v761 = vsub.f32 %v759, %v760
    %v762 = vand.u32 %v761, 4294901760
    %763 = vmatmul.mubr.f32.gmra.mrb[0].mxu0 %v762
    %v764 = vpop.f32.mrb[0].mxu0
    %v765 = vadd.f32 0.0, %v764
    %v766 = vpop.f32.mrb[0].mxu0
    %767 = vmatprep.mubr.f32.mxu0 0.0
    %v768 = vand.u32 %v280, 4294901760
    %v769 = vsub.f32 %v280, %v768
    %v770 = vand.u32 %v769, 4294901760
    %v771 = vsub.f32 %v769, %v770
    %v772 = vand.u32 %v771, 4294901760
    %773 = vmatmul.mubr.f32.gmra.mrb[0].mxu0 %v772
    %v774 = vpop.f32.mrb[0].mxu0
    %v775 = vadd.f32 0.0, %v774
    %v776 = vpop.f32.mrb[0].mxu0
    %777 = vmatprep.mubr.f32.mxu0 0.0
    %v778 = vand.u32 %v283, 4294901760
    %v779 = vsub.f32 %v283, %v778
    %v780 = vand.u32 %v779, 4294901760
    %v781 = vsub.f32 %v779, %v780
    %v782 = vand.u32 %v781, 4294901760
    %783 = vmatmul.mubr.f32.gmra.mrb[0].mxu0 %v782
    %v784 = vpop.f32.mrb[0].mxu0
    %v785 = vadd.f32 0.0, %v784
    %v786 = vpop.f32.mrb[0].mxu0
    %787 = vmatprep.mubr.f32.mxu0 0.0
    %v788 = vand.u32 %v286, 4294901760
    %v789 = vsub.f32 %v286, %v788
    %v790 = vand.u32 %v789, 4294901760
    %v791 = vsub.f32 %v789, %v790
    %v792 = vand.u32 %v791, 4294901760
    %793 = vmatmul.mubr.f32.gmra.mrb[0].mxu0 %v792
    %v794 = vpop.f32.mrb[0].mxu0
    %v795 = vadd.f32 0.0, %v794
    %v796 = vpop.f32.mrb[0].mxu0
    %797 = vmatprep.mubr.f32.mxu0 0.0
    %v798 = vand.u32 %v289, 4294901760
    %v799 = vsub.f32 %v289, %v798
    %v800 = vand.u32 %v799, 4294901760
    %v801 = vsub.f32 %v799, %v800
    %v802 = vand.u32 %v801, 4294901760
    %803 = vmatmul.mubr.f32.gmra.mrb[0].mxu0 %v802
    %v804 = vpop.f32.mrb[0].mxu0
    %v805 = vadd.f32 0.0, %v804
    %v806 = vpop.f32.mrb[0].mxu0
    %807 = vmatprep.mubr.f32.mxu0 0.0
    %v808 = vand.u32 %v292, 4294901760
    %v809 = vsub.f32 %v292, %v808
    %v810 = vand.u32 %v809, 4294901760
    %v811 = vsub.f32 %v809, %v810
    %v812 = vand.u32 %v811, 4294901760
    %813 = vmatmul.mubr.f32.gmra.mrb[0].mxu0 %v812
    %v814 = vpop.f32.mrb[0].mxu0
    %v815 = vadd.f32 0.0, %v814
    %v816 = vpop.f32.mrb[0].mxu0
    %817 = vmatprep.mubr.f32.mxu0 0.0
    %v818 = vand.u32 %v295, 4294901760
    %v819 = vsub.f32 %v295, %v818
    %v820 = vand.u32 %v819, 4294901760
    %v821 = vsub.f32 %v819, %v820
    %v822 = vand.u32 %v821, 4294901760
    %823 = vmatmul.mubr.f32.gmra.mrb[0].mxu0 %v822
    %v824 = vpop.f32.mrb[0].mxu0
    %v825 = vadd.f32 0.0, %v824
    %v826 = vpop.f32.mrb[0].mxu0
    %827 = vmatprep.mubr.f32.mxu0 0.0
    %v828 = vand.u32 %v298, 4294901760
    %v829 = vsub.f32 %v298, %v828
    %v830 = vand.u32 %v829, 4294901760
    %v831 = vsub.f32 %v829, %v830
    %v832 = vand.u32 %v831, 4294901760
    %833 = vmatmul.mubr.f32.gmra.mrb[0].mxu0 %v832
    %v834 = vpop.f32.mrb[0].mxu0
    %v835 = vadd.f32 0.0, %v834
    %v836 = vpop.f32.mrb[0].mxu0
    %837 = vmatprep.mubr.f32.mxu0 0.0
    %v838 = vand.u32 %v301, 4294901760
    %v839 = vsub.f32 %v301, %v838
    %v840 = vand.u32 %v839, 4294901760
    %v841 = vsub.f32 %v839, %v840
    %v842 = vand.u32 %v841, 4294901760
    %843 = vmatmul.mubr.f32.gmra.mrb[0].mxu0 %v842
    %v844 = vpop.f32.mrb[0].mxu0
    %v845 = vadd.f32 0.0, %v844
    %v846 = vpop.f32.mrb[0].mxu0
    %847 = vmatprep.mubr.f32.mxu0 0.0
    %v848 = vand.u32 %v304, 4294901760
    %v849 = vsub.f32 %v304, %v848
    %v850 = vand.u32 %v849, 4294901760
    %v851 = vsub.f32 %v849, %v850
    %v852 = vand.u32 %v851, 4294901760
    %853 = vmatmul.mubr.f32.gmra.mrb[0].mxu0 %v852
    %v854 = vpop.f32.mrb[0].mxu0
    %v855 = vadd.f32 0.0, %v854
    %v856 = vpop.f32.mrb[0].mxu0
    %857 = vmatprep.mubr.f32.mxu0 0.0
    %v858 = vand.u32 %v307, 4294901760
    %v859 = vsub.f32 %v307, %v858
    %v860 = vand.u32 %v859, 4294901760
    %v861 = vsub.f32 %v859, %v860
    %v862 = vand.u32 %v861, 4294901760
    %863 = vmatmul.mubr.f32.gmra.mrb[0].mxu0 %v862
    %v864 = vpop.f32.mrb[0].mxu0
    %v865 = vadd.f32 0.0, %v864
    %v866 = vpop.f32.mrb[0].mxu0
    %867 = vmatprep.mubr.f32.mxu0 0.0
    %v868 = vand.u32 %v310, 4294901760
    %v869 = vsub.f32 %v310, %v868
    %v870 = vand.u32 %v869, 4294901760
    %v871 = vsub.f32 %v869, %v870
    %v872 = vand.u32 %v871, 4294901760
    %873 = vmatmul.mubr.f32.gmra.mrb[0].mxu0 %v872
    %v874 = vpop.f32.mrb[0].mxu0
    %v875 = vadd.f32 0.0, %v874
    %v876 = vpop.f32.mrb[0].mxu0
    %877 = vmatprep.mubr.f32.mxu0 0.0
    %v878 = vand.u32 %v313, 4294901760
    %v879 = vsub.f32 %v313, %v878
    %v880 = vand.u32 %v879, 4294901760
    %v881 = vsub.f32 %v879, %v880
    %v882 = vand.u32 %v881, 4294901760
    %883 = vmatmul.mubr.f32.gmra.mrb[0].mxu0 %v882
    %v884 = vpop.f32.mrb[0].mxu0
    %v885 = vadd.f32 0.0, %v884
    %v886 = vpop.f32.mrb[0].mxu0
    %887 = vmatprep.mubr.f32.mxu0 0.0
    %v888 = vand.u32 %v316, 4294901760
    %v889 = vsub.f32 %v316, %v888
    %v890 = vand.u32 %v889, 4294901760
    %v891 = vsub.f32 %v889, %v890
    %v892 = vand.u32 %v891, 4294901760
    %893 = vmatmul.mubr.f32.gmra.mrb[0].mxu0 %v892
    %v894 = vpop.f32.mrb[0].mxu0
    %v895 = vadd.f32 0.0, %v894
    %v896 = vpop.f32.mrb[0].mxu0
    %897 = vmatprep.mubr.f32.mxu0 0.0
    %v898 = vand.u32 %v319, 4294901760
    %v899 = vsub.f32 %v319, %v898
    %v900 = vand.u32 %v899, 4294901760
    %v901 = vsub.f32 %v899, %v900
    %v902 = vand.u32 %v901, 4294901760
    %903 = vmatmul.mubr.f32.gmra.mrb[0].mxu0 %v902
    %v904 = vpop.f32.mrb[0].mxu0
    %v905 = vadd.f32 0.0, %v904
    %v906 = vpop.f32.mrb[0].mxu0
    %907 = vmatprep.mubr.f32.mxu0 0.0
    %v908 = vand.u32 %v322, 4294901760
    %v909 = vsub.f32 %v322, %v908
    %v910 = vand.u32 %v909, 4294901760
    %v911 = vsub.f32 %v909, %v910
    %v912 = vand.u32 %v911, 4294901760
    %913 = vmatmul.mubr.f32.gmra.mrb[0].mxu0 %v912
    %v914 = vpop.f32.mrb[0].mxu0
    %v915 = vadd.f32 0.0, %v914
    %v916 = vpop.f32.mrb[0].mxu0
    %917 = vmatprep.mubr.f32.mxu0 0.0
    %v918 = vand.u32 %v325, 4294901760
    %v919 = vsub.f32 %v325, %v918
    %v920 = vand.u32 %v919, 4294901760
    %v921 = vsub.f32 %v919, %v920
    %v922 = vand.u32 %v921, 4294901760
    %923 = vmatmul.mubr.f32.gmra.mrb[0].mxu0 %v922
    %v924 = vpop.f32.mrb[0].mxu0
    %v925 = vadd.f32 0.0, %v924
    %v926 = vpop.f32.mrb[0].mxu0
    %927 = vmatprep.mubr.f32.mxu0 0.0
    %v928 = vand.u32 %v328, 4294901760
    %v929 = vsub.f32 %v328, %v928
    %v930 = vand.u32 %v929, 4294901760
    %v931 = vsub.f32 %v929, %v930
    %v932 = vand.u32 %v931, 4294901760
    %933 = vmatmul.mubr.f32.gmra.mrb[0].mxu0 %v932
    %v934 = vpop.f32.mrb[0].mxu0
    %v935 = vadd.f32 0.0, %v934
    %v936 = vpop.f32.mrb[0].mxu0
    %937 = vmatprep.mubr.f32.mxu0 0.0
    %v938 = vand.u32 %v331, 4294901760
    %v939 = vsub.f32 %v331, %v938
    %v940 = vand.u32 %v939, 4294901760
    %v941 = vsub.f32 %v939, %v940
    %v942 = vand.u32 %v941, 4294901760
    %943 = vmatmul.mubr.f32.gmra.mrb[0].mxu0 %v942
    %v944 = vpop.f32.mrb[0].mxu0
    %v945 = vadd.f32 0.0, %v944
    %v946 = vpop.f32.mrb[0].mxu0
    %947 = vmatprep.mubr.f32.mxu0 0.0
    %v948 = vand.u32 %v334, 4294901760
    %v949 = vsub.f32 %v334, %v948
    %v950 = vand.u32 %v949, 4294901760
    %v951 = vsub.f32 %v949, %v950
    %v952 = vand.u32 %v951, 4294901760
    %953 = vmatmul.mubr.f32.gmra.mrb[0].mxu0 %v952
    %v954 = vpop.f32.mrb[0].mxu0
    %v955 = vadd.f32 0.0, %v954
    %v956 = vpop.f32.mrb[0].mxu0
    %957 = vmatprep.mubr.f32.mxu0 0.0
    %v958 = vand.u32 %v337, 4294901760
    %v959 = vsub.f32 %v337, %v958
    %v960 = vand.u32 %v959, 4294901760
    %v961 = vsub.f32 %v959, %v960
    %v962 = vand.u32 %v961, 4294901760
    %963 = vmatmul.mubr.f32.gmra.mrb[0].mxu0 %v962
    %v964 = vpop.f32.mrb[0].mxu0
    %v965 = vadd.f32 0.0, %v964
    %v966 = vpop.f32.mrb[0].mxu0
    %967 = vmatprep.mubr.f32.mxu0 0.0
    %v968 = vand.u32 %v340, 4294901760
    %v969 = vsub.f32 %v340, %v968
    %v970 = vand.u32 %v969, 4294901760
    %v971 = vsub.f32 %v969, %v970
    %v972 = vand.u32 %v971, 4294901760
    %973 = vmatmul.mubr.f32.gmra.mrb[0].mxu0 %v972
    %v974 = vpop.f32.mrb[0].mxu0
    %v975 = vadd.f32 0.0, %v974
    %v976 = vpop.f32.mrb[0].mxu0
    %977 = vmatprep.mubr.f32.mxu0 0.0
    %v978 = vand.u32 %v343, 4294901760
    %v979 = vsub.f32 %v343, %v978
    %v980 = vand.u32 %v979, 4294901760
    %v981 = vsub.f32 %v979, %v980
    %v982 = vand.u32 %v981, 4294901760
    %983 = vmatmul.mubr.f32.gmra.mrb[0].mxu0 %v982
    %v984 = vpop.f32.mrb[0].mxu0
    %v985 = vadd.f32 0.0, %v984
    %v986 = vpop.f32.mrb[0].mxu0
    %987 = vmatprep.mubr.f32.mxu0 0.0
    %v988 = vand.u32 %v346, 4294901760
    %v989 = vsub.f32 %v346, %v988
    %v990 = vand.u32 %v989, 4294901760
    %v991 = vsub.f32 %v989, %v990
    %v992 = vand.u32 %v991, 4294901760
    %993 = vmatmul.mubr.f32.gmra.mrb[0].mxu0 %v992
    %v994 = vpop.f32.mrb[0].mxu0
    %v995 = vadd.f32 0.0, %v994
    %v996 = vpop.f32.mrb[0].mxu0
    %997 = vmatprep.mubr.f32.mxu0 0.0
    %v998 = vand.u32 %v349, 4294901760
    %v999 = vsub.f32 %v349, %v998
    %v1000 = vand.u32 %v999, 4294901760
    %v1001 = vsub.f32 %v999, %v1000
    %v1002 = vand.u32 %v1001, 4294901760
    %1003 = vmatmul.mubr.f32.gmra.mrb[0].mxu0 %v1002
    %v1004 = vpop.f32.mrb[0].mxu0
    %v1005 = vadd.f32 0.0, %v1004
    %v1006 = vpop.f32.mrb[0].mxu0
    %1007 = vmatprep.mubr.f32.mxu0 0.0
    %v1008 = vand.u32 %v352, 4294901760
    %v1009 = vsub.f32 %v352, %v1008
    %v1010 = vand.u32 %v1009, 4294901760
    %v1011 = vsub.f32 %v1009, %v1010
    %v1012 = vand.u32 %v1011, 4294901760
    %1013 = vmatmul.mubr.f32.gmra.mrb[0].mxu0 %v1012
    %v1014 = vpop.f32.mrb[0].mxu0
    %v1015 = vadd.f32 0.0, %v1014
    %v1016 = vpop.f32.mrb[0].mxu0
    %1017 = vmatprep.mubr.f32.mxu0 0.0
    %v1018 = vand.u32 %v355, 4294901760
    %v1019 = vsub.f32 %v355, %v1018
    %v1020 = vand.u32 %v1019, 4294901760
    %v1021 = vsub.f32 %v1019, %v1020
    %v1022 = vand.u32 %v1021, 4294901760
    %1023 = vmatmul.mubr.f32.gmra.mrb[0].mxu0 %v1022
    %v1024 = vpop.f32.mrb[0].mxu0
    %v1025 = vadd.f32 0.0, %v1024
    %v1026 = vpop.f32.mrb[0].mxu0
    %1027 = vmatprep.mubr.f32.mxu0 0.0
    %v1028 = vand.u32 %v358, 4294901760
    %v1029 = vsub.f32 %v358, %v1028
    %v1030 = vand.u32 %v1029, 4294901760
    %v1031 = vsub.f32 %v1029, %v1030
    %v1032 = vand.u32 %v1031, 4294901760
    %1033 = vmatmul.mubr.f32.gmra.mrb[0].mxu0 %v1032
    %v1034 = vpop.f32.mrb[0].mxu0
    %v1035 = vadd.f32 0.0, %v1034
    %v1036 = vpop.f32.mrb[0].mxu0
    %1037 = vmatprep.mubr.f32.mxu0 0.0
    %v1038 = vand.u32 %v361, 4294901760
    %v1039 = vsub.f32 %v361, %v1038
    %v1040 = vand.u32 %v1039, 4294901760
    %v1041 = vsub.f32 %v1039, %v1040
    %v1042 = vand.u32 %v1041, 4294901760
    %1043 = vmatmul.mubr.f32.gmra.mrb[0].mxu0 %v1042
    %v1044 = vpop.f32.mrb[0].mxu0
    %v1045 = vadd.f32 0.0, %v1044
    %v1046 = vpop.f32.mrb[0].mxu0
    %1047 = vmatprep.mubr.f32.mxu0 0.0
    %v1048 = vand.u32 %v364, 4294901760
    %v1049 = vsub.f32 %v364, %v1048
    %v1050 = vand.u32 %v1049, 4294901760
    %v1051 = vsub.f32 %v1049, %v1050
    %v1052 = vand.u32 %v1051, 4294901760
    %1053 = vmatmul.mubr.f32.gmra.mrb[0].mxu0 %v1052
    %v1054 = vpop.f32.mrb[0].mxu0
    %v1055 = vadd.f32 0.0, %v1054
    %v1056 = vpop.f32.mrb[0].mxu0
    %1057 = vmatprep.mubr.f32.mxu0 0.0
    %v1058 = vand.u32 %v367, 4294901760
    %v1059 = vsub.f32 %v367, %v1058
    %v1060 = vand.u32 %v1059, 4294901760
    %v1061 = vsub.f32 %v1059, %v1060
    %v1062 = vand.u32 %v1061, 4294901760
    %1063 = vmatmul.mubr.f32.gmra.mrb[0].mxu0 %v1062
    %v1064 = vpop.f32.mrb[0].mxu0
    %v1065 = vadd.f32 0.0, %v1064
    %v1066 = vpop.f32.mrb[0].mxu0
    %1067 = vmatprep.mubr.f32.mxu0 0.0
    %v1068 = vand.u32 %v370, 4294901760
    %v1069 = vsub.f32 %v370, %v1068
    %v1070 = vand.u32 %v1069, 4294901760
    %v1071 = vsub.f32 %v1069, %v1070
    %v1072 = vand.u32 %v1071, 4294901760
    %1073 = vmatmul.mubr.f32.gmra.mrb[0].mxu0 %v1072
    %v1074 = vpop.f32.mrb[0].mxu0
    %v1075 = vadd.f32 0.0, %v1074
    %v1076 = vpop.f32.mrb[0].mxu0
    %1077 = vmatprep.mubr.f32.mxu0 0.0
    %v1078 = vand.u32 %v373, 4294901760
    %v1079 = vsub.f32 %v373, %v1078
    %v1080 = vand.u32 %v1079, 4294901760
    %v1081 = vsub.f32 %v1079, %v1080
    %v1082 = vand.u32 %v1081, 4294901760
    %1083 = vmatmul.mubr.f32.gmra.mrb[0].mxu0 %v1082
    %v1084 = vpop.f32.mrb[0].mxu0
    %v1085 = vadd.f32 0.0, %v1084
    %v1086 = vpop.f32.mrb[0].mxu0
    %1087 = vmatprep.mubr.f32.mxu0 0.0
    %v1088 = vand.u32 %v376, 4294901760
    %v1089 = vsub.f32 %v376, %v1088
    %v1090 = vand.u32 %v1089, 4294901760
    %v1091 = vsub.f32 %v1089, %v1090
    %v1092 = vand.u32 %v1091, 4294901760
    %1093 = vmatmul.mubr.f32.gmra.mrb[0].mxu0 %v1092
    %v1094 = vpop.f32.mrb[0].mxu0
    %v1095 = vadd.f32 0.0, %v1094
    %v1096 = vpop.f32.mrb[0].mxu0
    %1097 = vmatprep.mubr.f32.mxu0 0.0
    %v1098 = vand.u32 %v379, 4294901760
    %v1099 = vsub.f32 %v379, %v1098
    %v1100 = vand.u32 %v1099, 4294901760
    %v1101 = vsub.f32 %v1099, %v1100
    %v1102 = vand.u32 %v1101, 4294901760
    %1103 = vmatmul.mubr.f32.gmra.mrb[0].mxu0 %v1102
    %v1104 = vpop.f32.mrb[0].mxu0
    %v1105 = vadd.f32 0.0, %v1104
    %v1106 = vpop.f32.mrb[0].mxu0
    %1107 = vmatprep.mubr.f32.mxu0 0.0
    %v1108 = vand.u32 %v382, 4294901760
    %v1109 = vsub.f32 %v382, %v1108
    %v1110 = vand.u32 %v1109, 4294901760
    %v1111 = vsub.f32 %v1109, %v1110
    %v1112 = vand.u32 %v1111, 4294901760
    %1113 = vmatmul.mubr.f32.gmra.mrb[0].mxu0 %v1112
    %v1114 = vpop.f32.mrb[0].mxu0
    %v1115 = vadd.f32 0.0, %v1114
    %v1116 = vpop.f32.mrb[0].mxu0
    %1117 = vmatprep.mubr.f32.mxu0 0.0
    %v1118 = vand.u32 %v385, 4294901760
    %v1119 = vsub.f32 %v385, %v1118
    %v1120 = vand.u32 %v1119, 4294901760
    %v1121 = vsub.f32 %v1119, %v1120
    %v1122 = vand.u32 %v1121, 4294901760
    %1123 = vmatmul.mubr.f32.gmra.mrb[0].mxu0 %v1122
    %v1124 = vpop.f32.mrb[0].mxu0
    %v1125 = vadd.f32 0.0, %v1124
    %v1126 = vpop.f32.mrb[0].mxu0
    %1127 = vmatprep.mubr.f32.mxu0 0.0
    %v1128 = vand.u32 %v388, 4294901760
    %v1129 = vsub.f32 %v388, %v1128
    %v1130 = vand.u32 %v1129, 4294901760
    %v1131 = vsub.f32 %v1129, %v1130
    %v1132 = vand.u32 %v1131, 4294901760
    %1133 = vmatmul.mubr.f32.gmra.mrb[0].mxu0 %v1132
    %v1134 = vpop.f32.mrb[0].mxu0
    %v1135 = vadd.f32 0.0, %v1134
    %v1136 = vpop.f32.mrb[0].mxu0
    %1137 = vmatprep.mubr.f32.mxu0 0.0
    %v1138 = vand.u32 %v391, 4294901760
    %v1139 = vsub.f32 %v391, %v1138
    %v1140 = vand.u32 %v1139, 4294901760
    %v1141 = vsub.f32 %v1139, %v1140
    %v1142 = vand.u32 %v1141, 4294901760
    %1143 = vmatmul.mubr.f32.gmra.mrb[0].mxu0 %v1142
    %v1144 = vpop.f32.mrb[0].mxu0
    %v1145 = vadd.f32 0.0, %v1144
    %v1146 = vpop.f32.mrb[0].mxu0
    %1147 = vmatprep.mubr.f32.mxu0 0.0
    %v1148 = vand.u32 %v394, 4294901760
    %v1149 = vsub.f32 %v394, %v1148
    %v1150 = vand.u32 %v1149, 4294901760
    %v1151 = vsub.f32 %v1149, %v1150
    %v1152 = vand.u32 %v1151, 4294901760
    %1153 = vmatmul.mubr.f32.gmra.mrb[0].mxu0 %v1152
    %v1154 = vpop.f32.mrb[0].mxu0
    %v1155 = vadd.f32 0.0, %v1154
    %v1156 = vpop.f32.mrb[0].mxu0
    %1157 = vmatprep.mubr.f32.mxu0 0.0
    %v1158 = vand.u32 %v397, 4294901760
    %v1159 = vsub.f32 %v397, %v1158
    %v1160 = vand.u32 %v1159, 4294901760
    %v1161 = vsub.f32 %v1159, %v1160
    %v1162 = vand.u32 %v1161, 4294901760
    %1163 = vmatmul.mubr.f32.gmra.mrb[0].mxu0 %v1162
    %v1164 = vpop.f32.mrb[0].mxu0
    %v1165 = vadd.f32 0.0, %v1164
    %v1166 = vpop.f32.mrb[0].mxu0
    %1167 = vmatprep.mubr.f32.mxu0 0.0
    %v1168 = vand.u32 %v400, 4294901760
    %v1169 = vsub.f32 %v400, %v1168
    %v1170 = vand.u32 %v1169, 4294901760
    %v1171 = vsub.f32 %v1169, %v1170
    %v1172 = vand.u32 %v1171, 4294901760
    %1173 = vmatmul.mubr.f32.gmra.mrb[0].mxu0 %v1172
    %v1174 = vpop.f32.mrb[0].mxu0
    %v1175 = vadd.f32 0.0, %v1174
    %v1176 = vpop.f32.mrb[0].mxu0
    %1177 = vmatprep.mubr.f32.mxu0 0.0
    %v1178 = vand.u32 %v403, 4294901760
    %v1179 = vsub.f32 %v403, %v1178
    %v1180 = vand.u32 %v1179, 4294901760
    %v1181 = vsub.f32 %v1179, %v1180
    %v1182 = vand.u32 %v1181, 4294901760
    %1183 = vmatmul.mubr.f32.gmra.mrb[0].mxu0 %v1182
    %v1184 = vpop.f32.mrb[0].mxu0
    %v1185 = vadd.f32 0.0, %v1184
    %v1186 = vpop.f32.mrb[0].mxu0
    %1187 = vmatprep.mubr.f32.mxu0 0.0
    %v1188 = vand.u32 %v406, 4294901760
    %v1189 = vsub.f32 %v406, %v1188
    %v1190 = vand.u32 %v1189, 4294901760
    %v1191 = vsub.f32 %v1189, %v1190
    %v1192 = vand.u32 %v1191, 4294901760
    %1193 = vmatmul.mubr.f32.gmra.mrb[0].mxu0 %v1192
    %v1194 = vpop.f32.mrb[0].mxu0
    %v1195 = vadd.f32 0.0, %v1194
    %v1196 = vpop.f32.mrb[0].mxu0
    %1197 = vmatprep.mubr.f32.mxu0 0.0
    %v1198 = vand.u32 %v409, 4294901760
    %v1199 = vsub.f32 %v409, %v1198
    %v1200 = vand.u32 %v1199, 4294901760
    %v1201 = vsub.f32 %v1199, %v1200
    %v1202 = vand.u32 %v1201, 4294901760
    %1203 = vmatmul.mubr.f32.gmra.mrb[0].mxu0 %v1202
    %v1204 = vpop.f32.mrb[0].mxu0
    %v1205 = vadd.f32 0.0, %v1204
    %v1206 = vpop.f32.mrb[0].mxu0
    %1207 = vmatprep.mubr.f32.mxu0 0.0
    %v1208 = vand.u32 %v412, 4294901760
    %v1209 = vsub.f32 %v412, %v1208
    %v1210 = vand.u32 %v1209, 4294901760
    %v1211 = vsub.f32 %v1209, %v1210
    %v1212 = vand.u32 %v1211, 4294901760
    %1213 = vmatmul.mubr.f32.gmra.mrb[0].mxu0 %v1212
    %v1214 = vpop.f32.mrb[0].mxu0
    %v1215 = vadd.f32 0.0, %v1214
    %v1216 = vpop.f32.mrb[0].mxu0
    %1217 = vmatprep.mubr.f32.mxu0 0.0
    %v1218 = vand.u32 %v415, 4294901760
    %v1219 = vsub.f32 %v415, %v1218
    %v1220 = vand.u32 %v1219, 4294901760
    %v1221 = vsub.f32 %v1219, %v1220
    %v1222 = vand.u32 %v1221, 4294901760
    %1223 = vmatmul.mubr.f32.gmra.mrb[0].mxu0 %v1222
    %v1224 = vpop.f32.mrb[0].mxu0
    %v1225 = vadd.f32 0.0, %v1224
    %v1226 = vpop.f32.mrb[0].mxu0
    %1227 = vmatprep.mubr.f32.mxu0 0.0
    %v1228 = vand.u32 %v418, 4294901760
    %v1229 = vsub.f32 %v418, %v1228
    %v1230 = vand.u32 %v1229, 4294901760
    %v1231 = vsub.f32 %v1229, %v1230
    %v1232 = vand.u32 %v1231, 4294901760
    %1233 = vmatmul.mubr.f32.gmra.mrb[0].mxu0 %v1232
    %v1234 = vpop.f32.mrb[0].mxu0
    %v1235 = vadd.f32 0.0, %v1234
    %v1236 = vpop.f32.mrb[0].mxu0
    %1237 = vmatprep.mubr.f32.mxu0 0.0
    %v1238 = vand.u32 %v421, 4294901760
    %v1239 = vsub.f32 %v421, %v1238
    %v1240 = vand.u32 %v1239, 4294901760
    %v1241 = vsub.f32 %v1239, %v1240
    %v1242 = vand.u32 %v1241, 4294901760
    %1243 = vmatmul.mubr.f32.gmra.mrb[0].mxu0 %v1242
    %v1244 = vpop.f32.mrb[0].mxu0
    %v1245 = vadd.f32 0.0, %v1244
    %v1246 = vpop.f32.mrb[0].mxu0
    %1247 = vmatprep.mubr.f32.mxu0 0.0
    %v1248 = vand.u32 %v424, 4294901760
    %v1249 = vsub.f32 %v424, %v1248
    %v1250 = vand.u32 %v1249, 4294901760
    %v1251 = vsub.f32 %v1249, %v1250
    %v1252 = vand.u32 %v1251, 4294901760
    %1253 = vmatmul.mubr.f32.gmra.mrb[0].mxu0 %v1252
    %v1254 = vpop.f32.mrb[0].mxu0
    %v1255 = vadd.f32 0.0, %v1254
    %v1256 = vpop.f32.mrb[0].mxu0
    %1257 = vmatprep.mubr.f32.mxu0 0.0
    %v1258 = vand.u32 %v427, 4294901760
    %v1259 = vsub.f32 %v427, %v1258
    %v1260 = vand.u32 %v1259, 4294901760
    %v1261 = vsub.f32 %v1259, %v1260
    %v1262 = vand.u32 %v1261, 4294901760
    %1263 = vmatmul.mubr.f32.gmra.mrb[0].mxu0 %v1262
    %v1264 = vpop.f32.mrb[0].mxu0
    %v1265 = vadd.f32 0.0, %v1264
    %v1266 = vpop.f32.mrb[0].mxu0
    %1267 = vmatprep.mubr.f32.mxu0 0.0
    %v1268 = vand.u32 %v430, 4294901760
    %v1269 = vsub.f32 %v430, %v1268
    %v1270 = vand.u32 %v1269, 4294901760
    %v1271 = vsub.f32 %v1269, %v1270
    %v1272 = vand.u32 %v1271, 4294901760
    %1273 = vmatmul.mubr.f32.gmra.mrb[0].mxu0 %v1272
    %v1274 = vpop.f32.mrb[0].mxu0
    %v1275 = vadd.f32 0.0, %v1274
    %v1276 = vpop.f32.mrb[0].mxu0
    %1277 = vmatprep.mubr.f32.mxu0 0.0
    %v1278 = vand.u32 %v433, 4294901760
    %v1279 = vsub.f32 %v433, %v1278
    %v1280 = vand.u32 %v1279, 4294901760
    %v1281 = vsub.f32 %v1279, %v1280
    %v1282 = vand.u32 %v1281, 4294901760
    %1283 = vmatmul.mubr.f32.gmra.mrb[0].mxu0 %v1282
    %v1284 = vpop.f32.mrb[0].mxu0
    %v1285 = vadd.f32 0.0, %v1284
    %v1286 = vpop.f32.mrb[0].mxu0
    %1287 = vmatprep.mubr.f32.mxu0 0.0
    %v1288 = vand.u32 %v436, 4294901760
    %v1289 = vsub.f32 %v436, %v1288
    %v1290 = vand.u32 %v1289, 4294901760
    %v1291 = vsub.f32 %v1289, %v1290
    %v1292 = vand.u32 %v1291, 4294901760
    %1293 = vmatmul.mubr.f32.gmra.mrb[0].mxu0 %v1292
    %v1294 = vpop.f32.mrb[0].mxu0
    %v1295 = vadd.f32 0.0, %v1294
    %v1296 = vpop.f32.mrb[0].mxu0
    %1297 = vmatprep.mubr.f32.mxu0 0.0
    %v1298 = vand.u32 %v439, 4294901760
    %v1299 = vsub.f32 %v439, %v1298
    %v1300 = vand.u32 %v1299, 4294901760
    %v1301 = vsub.f32 %v1299, %v1300
    %v1302 = vand.u32 %v1301, 4294901760
    %1303 = vmatmul.mubr.f32.gmra.mrb[0].mxu0 %v1302
    %v1304 = vpop.f32.mrb[0].mxu0
    %v1305 = vadd.f32 0.0, %v1304
    %v1306 = vpop.f32.mrb[0].mxu0
    %1307 = vdwg.mxu0
    %1308 = vmatprep.subr.mxu0 0.0
    %v1309 = vand.u32 %v199, 4294901760
    %v1310 = vsub.f32 %v199, %v1309
    %v1311 = vand.u32 %v1310, 4294901760
    %v1312 = vsub.f32 %v1310, %v1311
    %v1313 = vand.u32 %v1312, 4294901760
    %1314 = vmatpush1.msra.mxu0 %v1313
    %1315 = vmatprep.subr.mxu0 0.0
    %v1316 = vand.u32 %v200, 4294901760
    %v1317 = vsub.f32 %v200, %v1316
    %v1318 = vand.u32 %v1317, 4294901760
    %v1319 = vsub.f32 %v1317, %v1318
    %v1320 = vand.u32 %v1319, 4294901760
    %1321 = vmatpush1.msra.mxu0 %v1320
    %1322 = vmatprep.subr.mxu0 0.0
    %1323 = vmatpush1.msra.mxu0 0.0
    %1324 = vmatprep.subr.mxu0 0.0
    %1325 = vmatpush1.msra.mxu0 0.0
    %1326 = vmatprep.subr.mxu0 0.0
    %1327 = vmatpush1.msra.mxu0 0.0
    %1328 = vmatprep.subr.mxu0 0.0
    %1329 = vmatpush1.msra.mxu0 0.0
    %1330 = vmatprep.subr.mxu0 0.0
    %1331 = vmatpush1.msra.mxu0 0.0
    %1332 = vmatprep.subr.mxu0 0.0
    %1333 = vmatpush1.msra.mxu0 0.0
    %1334 = vmatprep.subr.mxu0 0.0
    %1335 = vmatpush1.msra.mxu0 0.0
    %1336 = vmatprep.subr.mxu0 0.0
    %1337 = vmatpush1.msra.mxu0 0.0
    %1338 = vmatprep.subr.mxu0 0.0
    %1339 = vmatpush1.msra.mxu0 0.0
    %1340 = vmatprep.subr.mxu0 0.0
    %1341 = vmatpush1.msra.mxu0 0.0
    %1342 = vmatprep.subr.mxu0 0.0
    %1343 = vmatpush1.msra.mxu0 0.0
    %1344 = vmatprep.subr.mxu0 0.0
    %1345 = vmatpush1.msra.mxu0 0.0
    %1346 = vmatprep.subr.mxu0 0.0
    %1347 = vmatpush1.msra.mxu0 0.0
    %1348 = vmatprep.subr.mxu0 0.0
    %1349 = vmatpush1.msra.mxu0 0.0
    %1350 = vmatprep.subr.mxu0 0.0
    %1351 = vmatpush1.msra.mxu0 0.0
    %1352 = vmatprep.subr.mxu0 0.0
    %1353 = vmatpush1.msra.mxu0 0.0
    %1354 = vmatprep.subr.mxu0 0.0
    %1355 = vmatpush1.msra.mxu0 0.0
    %1356 = vmatprep.subr.mxu0 0.0
    %1357 = vmatpush1.msra.mxu0 0.0
    %1358 = vmatprep.subr.mxu0 0.0
    %1359 = vmatpush1.msra.mxu0 0.0
    %1360 = vmatprep.subr.mxu0 0.0
    %1361 = vmatpush1.msra.mxu0 0.0
    %1362 = vmatprep.subr.mxu0 0.0
    %1363 = vmatpush1.msra.mxu0 0.0
    %1364 = vmatprep.subr.mxu0 0.0
    %1365 = vmatpush1.msra.mxu0 0.0
    %1366 = vmatprep.subr.mxu0 0.0
    %1367 = vmatpush1.msra.mxu0 0.0
    %1368 = vmatprep.subr.mxu0 0.0
    %1369 = vmatpush1.msra.mxu0 0.0
    %1370 = vmatprep.subr.mxu0 0.0
    %1371 = vmatpush1.msra.mxu0 0.0
    %1372 = vmatprep.subr.mxu0 0.0
    %1373 = vmatpush1.msra.mxu0 0.0
    %1374 = vmatprep.subr.mxu0 0.0
    %1375 = vmatpush1.msra.mxu0 0.0
    %1376 = vmatprep.subr.mxu0 0.0
    %1377 = vmatpush1.msra.mxu0 0.0
    %1378 = vmatprep.subr.mxu0 0.0
    %1379 = vmatpush1.msra.mxu0 0.0
    %1380 = vmatprep.subr.mxu0 0.0
    %1381 = vmatpush1.msra.mxu0 0.0
    %1382 = vmatprep.mubr.f32.mxu0 0.0
    %v1383 = vand.u32 %v202, 4294901760
    %1384 = vmatmul.mubr.f32.gmra.mrb[0].mxu0 %v1383
    %v1385 = vpop.f32.mrb[0].mxu0
    %v1386 = vadd.f32 %v515, %v1385
    %v1387 = vpop.f32.mrb[0].mxu0
    %1388 = vmatprep.mubr.f32.mxu0 0.0
    %v1389 = vand.u32 %v205, 4294901760
    %1390 = vmatmul.mubr.f32.gmra.mrb[0].mxu0 %v1389
    %v1391 = vpop.f32.mrb[0].mxu0
    %v1392 = vadd.f32 %v525, %v1391
    %v1393 = vpop.f32.mrb[0].mxu0
    %1394 = vmatprep.mubr.f32.mxu0 0.0
    %v1395 = vand.u32 %v208, 4294901760
    %1396 = vmatmul.mubr.f32.gmra.mrb[0].mxu0 %v1395
    %v1397 = vpop.f32.mrb[0].mxu0
    %v1398 = vadd.f32 %v535, %v1397
    %v1399 = vpop.f32.mrb[0].mxu0
    %1400 = vmatprep.mubr.f32.mxu0 0.0
    %v1401 = vand.u32 %v211, 4294901760
    %1402 = vmatmul.mubr.f32.gmra.mrb[0].mxu0 %v1401
    %v1403 = vpop.f32.mrb[0].mxu0
    %v1404 = vadd.f32 %v545, %v1403
    %v1405 = vpop.f32.mrb[0].mxu0
    %1406 = vmatprep.mubr.f32.mxu0 0.0
    %v1407 = vand.u32 %v214, 4294901760
    %1408 = vmatmul.mubr.f32.gmra.mrb[0].mxu0 %v1407
    %v1409 = vpop.f32.mrb[0].mxu0
    %v1410 = vadd.f32 %v555, %v1409
    %v1411 = vpop.f32.mrb[0].mxu0
    %1412 = vmatprep.mubr.f32.mxu0 0.0
    %v1413 = vand.u32 %v217, 4294901760
    %1414 = vmatmul.mubr.f32.gmra.mrb[0].mxu0 %v1413
    %v1415 = vpop.f32.mrb[0].mxu0
    %v1416 = vadd.f32 %v565, %v1415
    %v1417 = vpop.f32.mrb[0].mxu0
    %1418 = vmatprep.mubr.f32.mxu0 0.0
    %v1419 = vand.u32 %v220, 4294901760
    %1420 = vmatmul.mubr.f32.gmra.mrb[0].mxu0 %v1419
    %v1421 = vpop.f32.mrb[0].mxu0
    %v1422 = vadd.f32 %v575, %v1421
    %v1423 = vpop.f32.mrb[0].mxu0
    %1424 = vmatprep.mubr.f32.mxu0 0.0
    %v1425 = vand.u32 %v223, 4294901760
    %1426 = vmatmul.mubr.f32.gmra.mrb[0].mxu0 %v1425
    %v1427 = vpop.f32.mrb[0].mxu0
    %v1428 = vadd.f32 %v585, %v1427
    %v1429 = vpop.f32.mrb[0].mxu0
    %1430 = vmatprep.mubr.f32.mxu0 0.0
    %v1431 = vand.u32 %v226, 4294901760
    %1432 = vmatmul.mubr.f32.gmra.mrb[0].mxu0 %v1431
    %v1433 = vpop.f32.mrb[0].mxu0
    %v1434 = vadd.f32 %v595, %v1433
    %v1435 = vpop.f32.mrb[0].mxu0
    %1436 = vmatprep.mubr.f32.mxu0 0.0
    %v1437 = vand.u32 %v229, 4294901760
    %1438 = vmatmul.mubr.f32.gmra.mrb[0].mxu0 %v1437
    %v1439 = vpop.f32.mrb[0].mxu0
    %v1440 = vadd.f32 %v605, %v1439
    %v1441 = vpop.f32.mrb[0].mxu0
    %1442 = vmatprep.mubr.f32.mxu0 0.0
    %v1443 = vand.u32 %v232, 4294901760
    %1444 = vmatmul.mubr.f32.gmra.mrb[0].mxu0 %v1443
    %v1445 = vpop.f32.mrb[0].mxu0
    %v1446 = vadd.f32 %v615, %v1445
    %v1447 = vpop.f32.mrb[0].mxu0
    %1448 = vmatprep.mubr.f32.mxu0 0.0
    %v1449 = vand.u32 %v235, 4294901760
    %1450 = vmatmul.mubr.f32.gmra.mrb[0].mxu0 %v1449
    %v1451 = vpop.f32.mrb[0].mxu0
    %v1452 = vadd.f32 %v625, %v1451
    %v1453 = vpop.f32.mrb[0].mxu0
    %1454 = vmatprep.mubr.f32.mxu0 0.0
    %v1455 = vand.u32 %v238, 4294901760
    %1456 = vmatmul.mubr.f32.gmra.mrb[0].mxu0 %v1455
    %v1457 = vpop.f32.mrb[0].mxu0
    %v1458 = vadd.f32 %v635, %v1457
    %v1459 = vpop.f32.mrb[0].mxu0
    %1460 = vmatprep.mubr.f32.mxu0 0.0
    %v1461 = vand.u32 %v241, 4294901760
    %1462 = vmatmul.mubr.f32.gmra.mrb[0].mxu0 %v1461
    %v1463 = vpop.f32.mrb[0].mxu0
    %v1464 = vadd.f32 %v645, %v1463
    %v1465 = vpop.f32.mrb[0].mxu0
    %1466 = vmatprep.mubr.f32.mxu0 0.0
    %v1467 = vand.u32 %v244, 4294901760
    %1468 = vmatmul.mubr.f32.gmra.mrb[0].mxu0 %v1467
    %v1469 = vpop.f32.mrb[0].mxu0
    %v1470 = vadd.f32 %v655, %v1469
    %v1471 = vpop.f32.mrb[0].mxu0
    %1472 = vmatprep.mubr.f32.mxu0 0.0
    %v1473 = vand.u32 %v247, 4294901760
    %1474 = vmatmul.mubr.f32.gmra.mrb[0].mxu0 %v1473
    %v1475 = vpop.f32.mrb[0].mxu0
    %v1476 = vadd.f32 %v665, %v1475
    %v1477 = vpop.f32.mrb[0].mxu0
    %1478 = vmatprep.mubr.f32.mxu0 0.0
    %v1479 = vand.u32 %v250, 4294901760
    %1480 = vmatmul.mubr.f32.gmra.mrb[0].mxu0 %v1479
    %v1481 = vpop.f32.mrb[0].mxu0
    %v1482 = vadd.f32 %v675, %v1481
    %v1483 = vpop.f32.mrb[0].mxu0
    %1484 = vmatprep.mubr.f32.mxu0 0.0
    %v1485 = vand.u32 %v253, 4294901760
    %1486 = vmatmul.mubr.f32.gmra.mrb[0].mxu0 %v1485
    %v1487 = vpop.f32.mrb[0].mxu0
    %v1488 = vadd.f32 %v685, %v1487
    %v1489 = vpop.f32.mrb[0].mxu0
    %1490 = vmatprep.mubr.f32.mxu0 0.0
    %v1491 = vand.u32 %v256, 4294901760
    %1492 = vmatmul.mubr.f32.gmra.mrb[0].mxu0 %v1491
    %v1493 = vpop.f32.mrb[0].mxu0
    %v1494 = vadd.f32 %v695, %v1493
    %v1495 = vpop.f32.mrb[0].mxu0
    %1496 = vmatprep.mubr.f32.mxu0 0.0
    %v1497 = vand.u32 %v259, 4294901760
    %1498 = vmatmul.mubr.f32.gmra.mrb[0].mxu0 %v1497
    %v1499 = vpop.f32.mrb[0].mxu0
    %v1500 = vadd.f32 %v705, %v1499
    %v1501 = vpop.f32.mrb[0].mxu0
    %1502 = vmatprep.mubr.f32.mxu0 0.0
    %v1503 = vand.u32 %v262, 4294901760
    %1504 = vmatmul.mubr.f32.gmra.mrb[0].mxu0 %v1503
    %v1505 = vpop.f32.mrb[0].mxu0
    %v1506 = vadd.f32 %v715, %v1505
    %v1507 = vpop.f32.mrb[0].mxu0
    %1508 = vmatprep.mubr.f32.mxu0 0.0
    %v1509 = vand.u32 %v265, 4294901760
    %1510 = vmatmul.mubr.f32.gmra.mrb[0].mxu0 %v1509
    %v1511 = vpop.f32.mrb[0].mxu0
    %v1512 = vadd.f32 %v725, %v1511
    %v1513 = vpop.f32.mrb[0].mxu0
    %1514 = vmatprep.mubr.f32.mxu0 0.0
    %v1515 = vand.u32 %v268, 4294901760
    %1516 = vmatmul.mubr.f32.gmra.mrb[0].mxu0 %v1515
    %v1517 = vpop.f32.mrb[0].mxu0
    %v1518 = vadd.f32 %v735, %v1517
    %v1519 = vpop.f32.mrb[0].mxu0
    %1520 = vmatprep.mubr.f32.mxu0 0.0
    %v1521 = vand.u32 %v271, 4294901760
    %1522 = vmatmul.mubr.f32.gmra.mrb[0].mxu0 %v1521
    %v1523 = vpop.f32.mrb[0].mxu0
    %v1524 = vadd.f32 %v745, %v1523
    %v1525 = vpop.f32.mrb[0].mxu0
    %1526 = vmatprep.mubr.f32.mxu0 0.0
    %v1527 = vand.u32 %v274, 4294901760
    %1528 = vmatmul.mubr.f32.gmra.mrb[0].mxu0 %v1527
    %v1529 = vpop.f32.mrb[0].mxu0
    %v1530 = vadd.f32 %v755, %v1529
    %v1531 = vpop.f32.mrb[0].mxu0
    %1532 = vmatprep.mubr.f32.mxu0 0.0
    %v1533 = vand.u32 %v277, 4294901760
    %1534 = vmatmul.mubr.f32.gmra.mrb[0].mxu0 %v1533
    %v1535 = vpop.f32.mrb[0].mxu0
    %v1536 = vadd.f32 %v765, %v1535
    %v1537 = vpop.f32.mrb[0].mxu0
    %1538 = vmatprep.mubr.f32.mxu0 0.0
    %v1539 = vand.u32 %v280, 4294901760
    %1540 = vmatmul.mubr.f32.gmra.mrb[0].mxu0 %v1539
    %v1541 = vpop.f32.mrb[0].mxu0
    %v1542 = vadd.f32 %v775, %v1541
    %v1543 = vpop.f32.mrb[0].mxu0
    %1544 = vmatprep.mubr.f32.mxu0 0.0
    %v1545 = vand.u32 %v283, 4294901760
    %1546 = vmatmul.mubr.f32.gmra.mrb[0].mxu0 %v1545
    %v1547 = vpop.f32.mrb[0].mxu0
    %v1548 = vadd.f32 %v785, %v1547
    %v1549 = vpop.f32.mrb[0].mxu0
    %1550 = vmatprep.mubr.f32.mxu0 0.0
    %v1551 = vand.u32 %v286, 4294901760
    %1552 = vmatmul.mubr.f32.gmra.mrb[0].mxu0 %v1551
    %v1553 = vpop.f32.mrb[0].mxu0
    %v1554 = vadd.f32 %v795, %v1553
    %v1555 = vpop.f32.mrb[0].mxu0
    %1556 = vmatprep.mubr.f32.mxu0 0.0
    %v1557 = vand.u32 %v289, 4294901760
    %1558 = vmatmul.mubr.f32.gmra.mrb[0].mxu0 %v1557
    %v1559 = vpop.f32.mrb[0].mxu0
    %v1560 = vadd.f32 %v805, %v1559
    %v1561 = vpop.f32.mrb[0].mxu0
    %1562 = vmatprep.mubr.f32.mxu0 0.0
    %v1563 = vand.u32 %v292, 4294901760
    %1564 = vmatmul.mubr.f32.gmra.mrb[0].mxu0 %v1563
    %v1565 = vpop.f32.mrb[0].mxu0
    %v1566 = vadd.f32 %v815, %v1565
    %v1567 = vpop.f32.mrb[0].mxu0
    %1568 = vmatprep.mubr.f32.mxu0 0.0
    %v1569 = vand.u32 %v295, 4294901760
    %1570 = vmatmul.mubr.f32.gmra.mrb[0].mxu0 %v1569
    %v1571 = vpop.f32.mrb[0].mxu0
    %v1572 = vadd.f32 %v825, %v1571
    %v1573 = vpop.f32.mrb[0].mxu0
    %1574 = vmatprep.mubr.f32.mxu0 0.0
    %v1575 = vand.u32 %v298, 4294901760
    %1576 = vmatmul.mubr.f32.gmra.mrb[0].mxu0 %v1575
    %v1577 = vpop.f32.mrb[0].mxu0
    %v1578 = vadd.f32 %v835, %v1577
    %v1579 = vpop.f32.mrb[0].mxu0
    %1580 = vmatprep.mubr.f32.mxu0 0.0
    %v1581 = vand.u32 %v301, 4294901760
    %1582 = vmatmul.mubr.f32.gmra.mrb[0].mxu0 %v1581
    %v1583 = vpop.f32.mrb[0].mxu0
    %v1584 = vadd.f32 %v845, %v1583
    %v1585 = vpop.f32.mrb[0].mxu0
    %1586 = vmatprep.mubr.f32.mxu0 0.0
    %v1587 = vand.u32 %v304, 4294901760
    %1588 = vmatmul.mubr.f32.gmra.mrb[0].mxu0 %v1587
    %v1589 = vpop.f32.mrb[0].mxu0
    %v1590 = vadd.f32 %v855, %v1589
    %v1591 = vpop.f32.mrb[0].mxu0
    %1592 = vmatprep.mubr.f32.mxu0 0.0
    %v1593 = vand.u32 %v307, 4294901760
    %1594 = vmatmul.mubr.f32.gmra.mrb[0].mxu0 %v1593
    %v1595 = vpop.f32.mrb[0].mxu0
    %v1596 = vadd.f32 %v865, %v1595
    %v1597 = vpop.f32.mrb[0].mxu0
    %1598 = vmatprep.mubr.f32.mxu0 0.0
    %v1599 = vand.u32 %v310, 4294901760
    %1600 = vmatmul.mubr.f32.gmra.mrb[0].mxu0 %v1599
    %v1601 = vpop.f32.mrb[0].mxu0
    %v1602 = vadd.f32 %v875, %v1601
    %v1603 = vpop.f32.mrb[0].mxu0
    %1604 = vmatprep.mubr.f32.mxu0 0.0
    %v1605 = vand.u32 %v313, 4294901760
    %1606 = vmatmul.mubr.f32.gmra.mrb[0].mxu0 %v1605
    %v1607 = vpop.f32.mrb[0].mxu0
    %v1608 = vadd.f32 %v885, %v1607
    %v1609 = vpop.f32.mrb[0].mxu0
    %1610 = vmatprep.mubr.f32.mxu0 0.0
    %v1611 = vand.u32 %v316, 4294901760
    %1612 = vmatmul.mubr.f32.gmra.mrb[0].mxu0 %v1611
    %v1613 = vpop.f32.mrb[0].mxu0
    %v1614 = vadd.f32 %v895, %v1613
    %v1615 = vpop.f32.mrb[0].mxu0
    %1616 = vmatprep.mubr.f32.mxu0 0.0
    %v1617 = vand.u32 %v319, 4294901760
    %1618 = vmatmul.mubr.f32.gmra.mrb[0].mxu0 %v1617
    %v1619 = vpop.f32.mrb[0].mxu0
    %v1620 = vadd.f32 %v905, %v1619
    %v1621 = vpop.f32.mrb[0].mxu0
    %1622 = vmatprep.mubr.f32.mxu0 0.0
    %v1623 = vand.u32 %v322, 4294901760
    %1624 = vmatmul.mubr.f32.gmra.mrb[0].mxu0 %v1623
    %v1625 = vpop.f32.mrb[0].mxu0
    %v1626 = vadd.f32 %v915, %v1625
    %v1627 = vpop.f32.mrb[0].mxu0
    %1628 = vmatprep.mubr.f32.mxu0 0.0
    %v1629 = vand.u32 %v325, 4294901760
    %1630 = vmatmul.mubr.f32.gmra.mrb[0].mxu0 %v1629
    %v1631 = vpop.f32.mrb[0].mxu0
    %v1632 = vadd.f32 %v925, %v1631
    %v1633 = vpop.f32.mrb[0].mxu0
    %1634 = vmatprep.mubr.f32.mxu0 0.0
    %v1635 = vand.u32 %v328, 4294901760
    %1636 = vmatmul.mubr.f32.gmra.mrb[0].mxu0 %v1635
    %v1637 = vpop.f32.mrb[0].mxu0
    %v1638 = vadd.f32 %v935, %v1637
    %v1639 = vpop.f32.mrb[0].mxu0
    %1640 = vmatprep.mubr.f32.mxu0 0.0
    %v1641 = vand.u32 %v331, 4294901760
    %1642 = vmatmul.mubr.f32.gmra.mrb[0].mxu0 %v1641
    %v1643 = vpop.f32.mrb[0].mxu0
    %v1644 = vadd.f32 %v945, %v1643
    %v1645 = vpop.f32.mrb[0].mxu0
    %1646 = vmatprep.mubr.f32.mxu0 0.0
    %v1647 = vand.u32 %v334, 4294901760
    %1648 = vmatmul.mubr.f32.gmra.mrb[0].mxu0 %v1647
    %v1649 = vpop.f32.mrb[0].mxu0
    %v1650 = vadd.f32 %v955, %v1649
    %v1651 = vpop.f32.mrb[0].mxu0
    %1652 = vmatprep.mubr.f32.mxu0 0.0
    %v1653 = vand.u32 %v337, 4294901760
    %1654 = vmatmul.mubr.f32.gmra.mrb[0].mxu0 %v1653
    %v1655 = vpop.f32.mrb[0].mxu0
    %v1656 = vadd.f32 %v965, %v1655
    %v1657 = vpop.f32.mrb[0].mxu0
    %1658 = vmatprep.mubr.f32.mxu0 0.0
    %v1659 = vand.u32 %v340, 4294901760
    %1660 = vmatmul.mubr.f32.gmra.mrb[0].mxu0 %v1659
    %v1661 = vpop.f32.mrb[0].mxu0
    %v1662 = vadd.f32 %v975, %v1661
    %v1663 = vpop.f32.mrb[0].mxu0
    %1664 = vmatprep.mubr.f32.mxu0 0.0
    %v1665 = vand.u32 %v343, 4294901760
    %1666 = vmatmul.mubr.f32.gmra.mrb[0].mxu0 %v1665
    %v1667 = vpop.f32.mrb[0].mxu0
    %v1668 = vadd.f32 %v985, %v1667
    %v1669 = vpop.f32.mrb[0].mxu0
    %1670 = vmatprep.mubr.f32.mxu0 0.0
    %v1671 = vand.u32 %v346, 4294901760
    %1672 = vmatmul.mubr.f32.gmra.mrb[0].mxu0 %v1671
    %v1673 = vpop.f32.mrb[0].mxu0
    %v1674 = vadd.f32 %v995, %v1673
    %v1675 = vpop.f32.mrb[0].mxu0
    %1676 = vmatprep.mubr.f32.mxu0 0.0
    %v1677 = vand.u32 %v349, 4294901760
    %1678 = vmatmul.mubr.f32.gmra.mrb[0].mxu0 %v1677
    %v1679 = vpop.f32.mrb[0].mxu0
    %v1680 = vadd.f32 %v1005, %v1679
    %v1681 = vpop.f32.mrb[0].mxu0
    %1682 = vmatprep.mubr.f32.mxu0 0.0
    %v1683 = vand.u32 %v352, 4294901760
    %1684 = vmatmul.mubr.f32.gmra.mrb[0].mxu0 %v1683
    %v1685 = vpop.f32.mrb[0].mxu0
    %v1686 = vadd.f32 %v1015, %v1685
    %v1687 = vpop.f32.mrb[0].mxu0
    %1688 = vmatprep.mubr.f32.mxu0 0.0
    %v1689 = vand.u32 %v355, 4294901760
    %1690 = vmatmul.mubr.f32.gmra.mrb[0].mxu0 %v1689
    %v1691 = vpop.f32.mrb[0].mxu0
    %v1692 = vadd.f32 %v1025, %v1691
    %v1693 = vpop.f32.mrb[0].mxu0
    %1694 = vmatprep.mubr.f32.mxu0 0.0
    %v1695 = vand.u32 %v358, 4294901760
    %1696 = vmatmul.mubr.f32.gmra.mrb[0].mxu0 %v1695
    %v1697 = vpop.f32.mrb[0].mxu0
    %v1698 = vadd.f32 %v1035, %v1697
    %v1699 = vpop.f32.mrb[0].mxu0
    %1700 = vmatprep.mubr.f32.mxu0 0.0
    %v1701 = vand.u32 %v361, 4294901760
    %1702 = vmatmul.mubr.f32.gmra.mrb[0].mxu0 %v1701
    %v1703 = vpop.f32.mrb[0].mxu0
    %v1704 = vadd.f32 %v1045, %v1703
    %v1705 = vpop.f32.mrb[0].mxu0
    %1706 = vmatprep.mubr.f32.mxu0 0.0
    %v1707 = vand.u32 %v364, 4294901760
    %1708 = vmatmul.mubr.f32.gmra.mrb[0].mxu0 %v1707
    %v1709 = vpop.f32.mrb[0].mxu0
    %v1710 = vadd.f32 %v1055, %v1709
    %v1711 = vpop.f32.mrb[0].mxu0
    %1712 = vmatprep.mubr.f32.mxu0 0.0
    %v1713 = vand.u32 %v367, 4294901760
    %1714 = vmatmul.mubr.f32.gmra.mrb[0].mxu0 %v1713
    %v1715 = vpop.f32.mrb[0].mxu0
    %v1716 = vadd.f32 %v1065, %v1715
    %v1717 = vpop.f32.mrb[0].mxu0
    %1718 = vmatprep.mubr.f32.mxu0 0.0
    %v1719 = vand.u32 %v370, 4294901760
    %1720 = vmatmul.mubr.f32.gmra.mrb[0].mxu0 %v1719
    %v1721 = vpop.f32.mrb[0].mxu0
    %v1722 = vadd.f32 %v1075, %v1721
    %v1723 = vpop.f32.mrb[0].mxu0
    %1724 = vmatprep.mubr.f32.mxu0 0.0
    %v1725 = vand.u32 %v373, 4294901760
    %1726 = vmatmul.mubr.f32.gmra.mrb[0].mxu0 %v1725
    %v1727 = vpop.f32.mrb[0].mxu0
    %v1728 = vadd.f32 %v1085, %v1727
    %v1729 = vpop.f32.mrb[0].mxu0
    %1730 = vmatprep.mubr.f32.mxu0 0.0
    %v1731 = vand.u32 %v376, 4294901760
    %1732 = vmatmul.mubr.f32.gmra.mrb[0].mxu0 %v1731
    %v1733 = vpop.f32.mrb[0].mxu0
    %v1734 = vadd.f32 %v1095, %v1733
    %v1735 = vpop.f32.mrb[0].mxu0
    %1736 = vmatprep.mubr.f32.mxu0 0.0
    %v1737 = vand.u32 %v379, 4294901760
    %1738 = vmatmul.mubr.f32.gmra.mrb[0].mxu0 %v1737
    %v1739 = vpop.f32.mrb[0].mxu0
    %v1740 = vadd.f32 %v1105, %v1739
    %v1741 = vpop.f32.mrb[0].mxu0
    %1742 = vmatprep.mubr.f32.mxu0 0.0
    %v1743 = vand.u32 %v382, 4294901760
    %1744 = vmatmul.mubr.f32.gmra.mrb[0].mxu0 %v1743
    %v1745 = vpop.f32.mrb[0].mxu0
    %v1746 = vadd.f32 %v1115, %v1745
    %v1747 = vpop.f32.mrb[0].mxu0
    %1748 = vmatprep.mubr.f32.mxu0 0.0
    %v1749 = vand.u32 %v385, 4294901760
    %1750 = vmatmul.mubr.f32.gmra.mrb[0].mxu0 %v1749
    %v1751 = vpop.f32.mrb[0].mxu0
    %v1752 = vadd.f32 %v1125, %v1751
    %v1753 = vpop.f32.mrb[0].mxu0
    %1754 = vmatprep.mubr.f32.mxu0 0.0
    %v1755 = vand.u32 %v388, 4294901760
    %1756 = vmatmul.mubr.f32.gmra.mrb[0].mxu0 %v1755
    %v1757 = vpop.f32.mrb[0].mxu0
    %v1758 = vadd.f32 %v1135, %v1757
    %v1759 = vpop.f32.mrb[0].mxu0
    %1760 = vmatprep.mubr.f32.mxu0 0.0
    %v1761 = vand.u32 %v391, 4294901760
    %1762 = vmatmul.mubr.f32.gmra.mrb[0].mxu0 %v1761
    %v1763 = vpop.f32.mrb[0].mxu0
    %v1764 = vadd.f32 %v1145, %v1763
    %v1765 = vpop.f32.mrb[0].mxu0
    %1766 = vmatprep.mubr.f32.mxu0 0.0
    %v1767 = vand.u32 %v394, 4294901760
    %1768 = vmatmul.mubr.f32.gmra.mrb[0].mxu0 %v1767
    %v1769 = vpop.f32.mrb[0].mxu0
    %v1770 = vadd.f32 %v1155, %v1769
    %v1771 = vpop.f32.mrb[0].mxu0
    %1772 = vmatprep.mubr.f32.mxu0 0.0
    %v1773 = vand.u32 %v397, 4294901760
    %1774 = vmatmul.mubr.f32.gmra.mrb[0].mxu0 %v1773
    %v1775 = vpop.f32.mrb[0].mxu0
    %v1776 = vadd.f32 %v1165, %v1775
    %v1777 = vpop.f32.mrb[0].mxu0
    %1778 = vmatprep.mubr.f32.mxu0 0.0
    %v1779 = vand.u32 %v400, 4294901760
    %1780 = vmatmul.mubr.f32.gmra.mrb[0].mxu0 %v1779
    %v1781 = vpop.f32.mrb[0].mxu0
    %v1782 = vadd.f32 %v1175, %v1781
    %v1783 = vpop.f32.mrb[0].mxu0
    %1784 = vmatprep.mubr.f32.mxu0 0.0
    %v1785 = vand.u32 %v403, 4294901760
    %1786 = vmatmul.mubr.f32.gmra.mrb[0].mxu0 %v1785
    %v1787 = vpop.f32.mrb[0].mxu0
    %v1788 = vadd.f32 %v1185, %v1787
    %v1789 = vpop.f32.mrb[0].mxu0
    %1790 = vmatprep.mubr.f32.mxu0 0.0
    %v1791 = vand.u32 %v406, 4294901760
    %1792 = vmatmul.mubr.f32.gmra.mrb[0].mxu0 %v1791
    %v1793 = vpop.f32.mrb[0].mxu0
    %v1794 = vadd.f32 %v1195, %v1793
    %v1795 = vpop.f32.mrb[0].mxu0
    %1796 = vmatprep.mubr.f32.mxu0 0.0
    %v1797 = vand.u32 %v409, 4294901760
    %1798 = vmatmul.mubr.f32.gmra.mrb[0].mxu0 %v1797
    %v1799 = vpop.f32.mrb[0].mxu0
    %v1800 = vadd.f32 %v1205, %v1799
    %v1801 = vpop.f32.mrb[0].mxu0
    %1802 = vmatprep.mubr.f32.mxu0 0.0
    %v1803 = vand.u32 %v412, 4294901760
    %1804 = vmatmul.mubr.f32.gmra.mrb[0].mxu0 %v1803
    %v1805 = vpop.f32.mrb[0].mxu0
    %v1806 = vadd.f32 %v1215, %v1805
    %v1807 = vpop.f32.mrb[0].mxu0
    %1808 = vmatprep.mubr.f32.mxu0 0.0
    %v1809 = vand.u32 %v415, 4294901760
    %1810 = vmatmul.mubr.f32.gmra.mrb[0].mxu0 %v1809
    %v1811 = vpop.f32.mrb[0].mxu0
    %v1812 = vadd.f32 %v1225, %v1811
    %v1813 = vpop.f32.mrb[0].mxu0
    %1814 = vmatprep.mubr.f32.mxu0 0.0
    %v1815 = vand.u32 %v418, 4294901760
    %1816 = vmatmul.mubr.f32.gmra.mrb[0].mxu0 %v1815
    %v1817 = vpop.f32.mrb[0].mxu0
    %v1818 = vadd.f32 %v1235, %v1817
    %v1819 = vpop.f32.mrb[0].mxu0
    %1820 = vmatprep.mubr.f32.mxu0 0.0
    %v1821 = vand.u32 %v421, 4294901760
    %1822 = vmatmul.mubr.f32.gmra.mrb[0].mxu0 %v1821
    %v1823 = vpop.f32.mrb[0].mxu0
    %v1824 = vadd.f32 %v1245, %v1823
    %v1825 = vpop.f32.mrb[0].mxu0
    %1826 = vmatprep.mubr.f32.mxu0 0.0
    %v1827 = vand.u32 %v424, 4294901760
    %1828 = vmatmul.mubr.f32.gmra.mrb[0].mxu0 %v1827
    %v1829 = vpop.f32.mrb[0].mxu0
    %v1830 = vadd.f32 %v1255, %v1829
    %v1831 = vpop.f32.mrb[0].mxu0
    %1832 = vmatprep.mubr.f32.mxu0 0.0
    %v1833 = vand.u32 %v427, 4294901760
    %1834 = vmatmul.mubr.f32.gmra.mrb[0].mxu0 %v1833
    %v1835 = vpop.f32.mrb[0].mxu0
    %v1836 = vadd.f32 %v1265, %v1835
    %v1837 = vpop.f32.mrb[0].mxu0
    %1838 = vmatprep.mubr.f32.mxu0 0.0
    %v1839 = vand.u32 %v430, 4294901760
    %1840 = vmatmul.mubr.f32.gmra.mrb[0].mxu0 %v1839
    %v1841 = vpop.f32.mrb[0].mxu0
    %v1842 = vadd.f32 %v1275, %v1841
    %v1843 = vpop.f32.mrb[0].mxu0
    %1844 = vmatprep.mubr.f32.mxu0 0.0
    %v1845 = vand.u32 %v433, 4294901760
    %1846 = vmatmul.mubr.f32.gmra.mrb[0].mxu0 %v1845
    %v1847 = vpop.f32.mrb[0].mxu0
    %v1848 = vadd.f32 %v1285, %v1847
    %v1849 = vpop.f32.mrb[0].mxu0
    %1850 = vmatprep.mubr.f32.mxu0 0.0
    %v1851 = vand.u32 %v436, 4294901760
    %1852 = vmatmul.mubr.f32.gmra.mrb[0].mxu0 %v1851
    %v1853 = vpop.f32.mrb[0].mxu0
    %v1854 = vadd.f32 %v1295, %v1853
    %v1855 = vpop.f32.mrb[0].mxu0
    %1856 = vmatprep.mubr.f32.mxu0 0.0
    %v1857 = vand.u32 %v439, 4294901760
    %1858 = vmatmul.mubr.f32.gmra.mrb[0].mxu0 %v1857
    %v1859 = vpop.f32.mrb[0].mxu0
    %v1860 = vadd.f32 %v1305, %v1859
    %v1861 = vpop.f32.mrb[0].mxu0
    %1862 = vdwg.mxu0
    %1863 = vmatprep.subr.mxu0 0.0
    %v1864 = vand.u32 %v199, 4294901760
    %v1865 = vsub.f32 %v199, %v1864
    %1866 = vmatpush1.msra.mxu0 %v1865
    %1867 = vmatprep.subr.mxu0 0.0
    %v1868 = vand.u32 %v200, 4294901760
    %v1869 = vsub.f32 %v200, %v1868
    %1870 = vmatpush1.msra.mxu0 %v1869
    %1871 = vmatprep.subr.mxu0 0.0
    %1872 = vmatpush1.msra.mxu0 0.0
    %1873 = vmatprep.subr.mxu0 0.0
    %1874 = vmatpush1.msra.mxu0 0.0
    %1875 = vmatprep.subr.mxu0 0.0
    %1876 = vmatpush1.msra.mxu0 0.0
    %1877 = vmatprep.subr.mxu0 0.0
    %1878 = vmatpush1.msra.mxu0 0.0
    %1879 = vmatprep.subr.mxu0 0.0
    %1880 = vmatpush1.msra.mxu0 0.0
    %1881 = vmatprep.subr.mxu0 0.0
    %1882 = vmatpush1.msra.mxu0 0.0
    %1883 = vmatprep.subr.mxu0 0.0
    %1884 = vmatpush1.msra.mxu0 0.0
    %1885 = vmatprep.subr.mxu0 0.0
    %1886 = vmatpush1.msra.mxu0 0.0
    %1887 = vmatprep.subr.mxu0 0.0
    %1888 = vmatpush1.msra.mxu0 0.0
    %1889 = vmatprep.subr.mxu0 0.0
    %1890 = vmatpush1.msra.mxu0 0.0
    %1891 = vmatprep.subr.mxu0 0.0
    %1892 = vmatpush1.msra.mxu0 0.0
    %1893 = vmatprep.subr.mxu0 0.0
    %1894 = vmatpush1.msra.mxu0 0.0
    %1895 = vmatprep.subr.mxu0 0.0
    %1896 = vmatpush1.msra.mxu0 0.0
    %1897 = vmatprep.subr.mxu0 0.0
    %1898 = vmatpush1.msra.mxu0 0.0
    %1899 = vmatprep.subr.mxu0 0.0
    %1900 = vmatpush1.msra.mxu0 0.0
    %1901 = vmatprep.subr.mxu0 0.0
    %1902 = vmatpush1.msra.mxu0 0.0
    %1903 = vmatprep.subr.mxu0 0.0
    %1904 = vmatpush1.msra.mxu0 0.0
    %1905 = vmatprep.subr.mxu0 0.0
    %1906 = vmatpush1.msra.mxu0 0.0
    %1907 = vmatprep.subr.mxu0 0.0
    %1908 = vmatpush1.msra.mxu0 0.0
    %1909 = vmatprep.subr.mxu0 0.0
    %1910 = vmatpush1.msra.mxu0 0.0
    %1911 = vmatprep.subr.mxu0 0.0
    %1912 = vmatpush1.msra.mxu0 0.0
    %1913 = vmatprep.subr.mxu0 0.0
    %1914 = vmatpush1.msra.mxu0 0.0
    %1915 = vmatprep.subr.mxu0 0.0
    %1916 = vmatpush1.msra.mxu0 0.0
    %1917 = vmatprep.subr.mxu0 0.0
    %1918 = vmatpush1.msra.mxu0 0.0
    %1919 = vmatprep.subr.mxu0 0.0
    %1920 = vmatpush1.msra.mxu0 0.0
    %1921 = vmatprep.subr.mxu0 0.0
    %1922 = vmatpush1.msra.mxu0 0.0
    %1923 = vmatprep.subr.mxu0 0.0
    %1924 = vmatpush1.msra.mxu0 0.0
    %1925 = vmatprep.subr.mxu0 0.0
    %1926 = vmatpush1.msra.mxu0 0.0
    %1927 = vmatprep.subr.mxu0 0.0
    %1928 = vmatpush1.msra.mxu0 0.0
    %1929 = vmatprep.subr.mxu0 0.0
    %1930 = vmatpush1.msra.mxu0 0.0
    %1931 = vmatprep.mubr.f32.mxu0 0.0
    %v1932 = vand.u32 %v202, 4294901760
    %v1933 = vsub.f32 %v202, %v1932
    %1934 = vmatmul.mubr.f32.gmra.mrb[0].mxu0 %v1933
    %v1935 = vpop.f32.mrb[0].mxu0
    %v1936 = vadd.f32 %v1386, %v1935
    %v1937 = vpop.f32.mrb[0].mxu0
    %1938 = vmatprep.mubr.f32.mxu0 0.0
    %v1939 = vand.u32 %v205, 4294901760
    %v1940 = vsub.f32 %v205, %v1939
    %1941 = vmatmul.mubr.f32.gmra.mrb[0].mxu0 %v1940
    %v1942 = vpop.f32.mrb[0].mxu0
    %v1943 = vadd.f32 %v1392, %v1942
    %v1944 = vpop.f32.mrb[0].mxu0
    %1945 = vmatprep.mubr.f32.mxu0 0.0
    %v1946 = vand.u32 %v208, 4294901760
    %v1947 = vsub.f32 %v208, %v1946
    %1948 = vmatmul.mubr.f32.gmra.mrb[0].mxu0 %v1947
    %v1949 = vpop.f32.mrb[0].mxu0
    %v1950 = vadd.f32 %v1398, %v1949
    %v1951 = vpop.f32.mrb[0].mxu0
    %1952 = vmatprep.mubr.f32.mxu0 0.0
    %v1953 = vand.u32 %v211, 4294901760
    %v1954 = vsub.f32 %v211, %v1953
    %1955 = vmatmul.mubr.f32.gmra.mrb[0].mxu0 %v1954
    %v1956 = vpop.f32.mrb[0].mxu0
    %v1957 = vadd.f32 %v1404, %v1956
    %v1958 = vpop.f32.mrb[0].mxu0
    %1959 = vmatprep.mubr.f32.mxu0 0.0
    %v1960 = vand.u32 %v214, 4294901760
    %v1961 = vsub.f32 %v214, %v1960
    %1962 = vmatmul.mubr.f32.gmra.mrb[0].mxu0 %v1961
    %v1963 = vpop.f32.mrb[0].mxu0
    %v1964 = vadd.f32 %v1410, %v1963
    %v1965 = vpop.f32.mrb[0].mxu0
    %1966 = vmatprep.mubr.f32.mxu0 0.0
    %v1967 = vand.u32 %v217, 4294901760
    %v1968 = vsub.f32 %v217, %v1967
    %1969 = vmatmul.mubr.f32.gmra.mrb[0].mxu0 %v1968
    %v1970 = vpop.f32.mrb[0].mxu0
    %v1971 = vadd.f32 %v1416, %v1970
    %v1972 = vpop.f32.mrb[0].mxu0
    %1973 = vmatprep.mubr.f32.mxu0 0.0
    %v1974 = vand.u32 %v220, 4294901760
    %v1975 = vsub.f32 %v220, %v1974
    %1976 = vmatmul.mubr.f32.gmra.mrb[0].mxu0 %v1975
    %v1977 = vpop.f32.mrb[0].mxu0
    %v1978 = vadd.f32 %v1422, %v1977
    %v1979 = vpop.f32.mrb[0].mxu0
    %1980 = vmatprep.mubr.f32.mxu0 0.0
    %v1981 = vand.u32 %v223, 4294901760
    %v1982 = vsub.f32 %v223, %v1981
    %1983 = vmatmul.mubr.f32.gmra.mrb[0].mxu0 %v1982
    %v1984 = vpop.f32.mrb[0].mxu0
    %v1985 = vadd.f32 %v1428, %v1984
    %v1986 = vpop.f32.mrb[0].mxu0
    %1987 = vmatprep.mubr.f32.mxu0 0.0
    %v1988 = vand.u32 %v226, 4294901760
    %v1989 = vsub.f32 %v226, %v1988
    %1990 = vmatmul.mubr.f32.gmra.mrb[0].mxu0 %v1989
    %v1991 = vpop.f32.mrb[0].mxu0
    %v1992 = vadd.f32 %v1434, %v1991
    %v1993 = vpop.f32.mrb[0].mxu0
    %1994 = vmatprep.mubr.f32.mxu0 0.0
    %v1995 = vand.u32 %v229, 4294901760
    %v1996 = vsub.f32 %v229, %v1995
    %1997 = vmatmul.mubr.f32.gmra.mrb[0].mxu0 %v1996
    %v1998 = vpop.f32.mrb[0].mxu0
    %v1999 = vadd.f32 %v1440, %v1998
    %v2000 = vpop.f32.mrb[0].mxu0
    %2001 = vmatprep.mubr.f32.mxu0 0.0
    %v2002 = vand.u32 %v232, 4294901760
    %v2003 = vsub.f32 %v232, %v2002
    %2004 = vmatmul.mubr.f32.gmra.mrb[0].mxu0 %v2003
    %v2005 = vpop.f32.mrb[0].mxu0
    %v2006 = vadd.f32 %v1446, %v2005
    %v2007 = vpop.f32.mrb[0].mxu0
    %2008 = vmatprep.mubr.f32.mxu0 0.0
    %v2009 = vand.u32 %v235, 4294901760
    %v2010 = vsub.f32 %v235, %v2009
    %2011 = vmatmul.mubr.f32.gmra.mrb[0].mxu0 %v2010
    %v2012 = vpop.f32.mrb[0].mxu0
    %v2013 = vadd.f32 %v1452, %v2012
    %v2014 = vpop.f32.mrb[0].mxu0
    %2015 = vmatprep.mubr.f32.mxu0 0.0
    %v2016 = vand.u32 %v238, 4294901760
    %v2017 = vsub.f32 %v238, %v2016
    %2018 = vmatmul.mubr.f32.gmra.mrb[0].mxu0 %v2017
    %v2019 = vpop.f32.mrb[0].mxu0
    %v2020 = vadd.f32 %v1458, %v2019
    %v2021 = vpop.f32.mrb[0].mxu0
    %2022 = vmatprep.mubr.f32.mxu0 0.0
    %v2023 = vand.u32 %v241, 4294901760
    %v2024 = vsub.f32 %v241, %v2023
    %2025 = vmatmul.mubr.f32.gmra.mrb[0].mxu0 %v2024
    %v2026 = vpop.f32.mrb[0].mxu0
    %v2027 = vadd.f32 %v1464, %v2026
    %v2028 = vpop.f32.mrb[0].mxu0
    %2029 = vmatprep.mubr.f32.mxu0 0.0
    %v2030 = vand.u32 %v244, 4294901760
    %v2031 = vsub.f32 %v244, %v2030
    %2032 = vmatmul.mubr.f32.gmra.mrb[0].mxu0 %v2031
    %v2033 = vpop.f32.mrb[0].mxu0
    %v2034 = vadd.f32 %v1470, %v2033
    %v2035 = vpop.f32.mrb[0].mxu0
    %2036 = vmatprep.mubr.f32.mxu0 0.0
    %v2037 = vand.u32 %v247, 4294901760
    %v2038 = vsub.f32 %v247, %v2037
    %2039 = vmatmul.mubr.f32.gmra.mrb[0].mxu0 %v2038
    %v2040 = vpop.f32.mrb[0].mxu0
    %v2041 = vadd.f32 %v1476, %v2040
    %v2042 = vpop.f32.mrb[0].mxu0
    %2043 = vmatprep.mubr.f32.mxu0 0.0
    %v2044 = vand.u32 %v250, 4294901760
    %v2045 = vsub.f32 %v250, %v2044
    %2046 = vmatmul.mubr.f32.gmra.mrb[0].mxu0 %v2045
    %v2047 = vpop.f32.mrb[0].mxu0
    %v2048 = vadd.f32 %v1482, %v2047
    %v2049 = vpop.f32.mrb[0].mxu0
    %2050 = vmatprep.mubr.f32.mxu0 0.0
    %v2051 = vand.u32 %v253, 4294901760
    %v2052 = vsub.f32 %v253, %v2051
    %2053 = vmatmul.mubr.f32.gmra.mrb[0].mxu0 %v2052
    %v2054 = vpop.f32.mrb[0].mxu0
    %v2055 = vadd.f32 %v1488, %v2054
    %v2056 = vpop.f32.mrb[0].mxu0
    %2057 = vmatprep.mubr.f32.mxu0 0.0
    %v2058 = vand.u32 %v256, 4294901760
    %v2059 = vsub.f32 %v256, %v2058
    %2060 = vmatmul.mubr.f32.gmra.mrb[0].mxu0 %v2059
    %v2061 = vpop.f32.mrb[0].mxu0
    %v2062 = vadd.f32 %v1494, %v2061
    %v2063 = vpop.f32.mrb[0].mxu0
    %2064 = vmatprep.mubr.f32.mxu0 0.0
    %v2065 = vand.u32 %v259, 4294901760
    %v2066 = vsub.f32 %v259, %v2065
    %2067 = vmatmul.mubr.f32.gmra.mrb[0].mxu0 %v2066
    %v2068 = vpop.f32.mrb[0].mxu0
    %v2069 = vadd.f32 %v1500, %v2068
    %v2070 = vpop.f32.mrb[0].mxu0
    %2071 = vmatprep.mubr.f32.mxu0 0.0
    %v2072 = vand.u32 %v262, 4294901760
    %v2073 = vsub.f32 %v262, %v2072
    %2074 = vmatmul.mubr.f32.gmra.mrb[0].mxu0 %v2073
    %v2075 = vpop.f32.mrb[0].mxu0
    %v2076 = vadd.f32 %v1506, %v2075
    %v2077 = vpop.f32.mrb[0].mxu0
    %2078 = vmatprep.mubr.f32.mxu0 0.0
    %v2079 = vand.u32 %v265, 4294901760
    %v2080 = vsub.f32 %v265, %v2079
    %2081 = vmatmul.mubr.f32.gmra.mrb[0].mxu0 %v2080
    %v2082 = vpop.f32.mrb[0].mxu0
    %v2083 = vadd.f32 %v1512, %v2082
    %v2084 = vpop.f32.mrb[0].mxu0
    %2085 = vmatprep.mubr.f32.mxu0 0.0
    %v2086 = vand.u32 %v268, 4294901760
    %v2087 = vsub.f32 %v268, %v2086
    %2088 = vmatmul.mubr.f32.gmra.mrb[0].mxu0 %v2087
    %v2089 = vpop.f32.mrb[0].mxu0
    %v2090 = vadd.f32 %v1518, %v2089
    %v2091 = vpop.f32.mrb[0].mxu0
    %2092 = vmatprep.mubr.f32.mxu0 0.0
    %v2093 = vand.u32 %v271, 4294901760
    %v2094 = vsub.f32 %v271, %v2093
    %2095 = vmatmul.mubr.f32.gmra.mrb[0].mxu0 %v2094
    %v2096 = vpop.f32.mrb[0].mxu0
    %v2097 = vadd.f32 %v1524, %v2096
    %v2098 = vpop.f32.mrb[0].mxu0
    %2099 = vmatprep.mubr.f32.mxu0 0.0
    %v2100 = vand.u32 %v274, 4294901760
    %v2101 = vsub.f32 %v274, %v2100
    %2102 = vmatmul.mubr.f32.gmra.mrb[0].mxu0 %v2101
    %v2103 = vpop.f32.mrb[0].mxu0
    %v2104 = vadd.f32 %v1530, %v2103
    %v2105 = vpop.f32.mrb[0].mxu0
    %2106 = vmatprep.mubr.f32.mxu0 0.0
    %v2107 = vand.u32 %v277, 4294901760
    %v2108 = vsub.f32 %v277, %v2107
    %2109 = vmatmul.mubr.f32.gmra.mrb[0].mxu0 %v2108
    %v2110 = vpop.f32.mrb[0].mxu0
    %v2111 = vadd.f32 %v1536, %v2110
    %v2112 = vpop.f32.mrb[0].mxu0
    %2113 = vmatprep.mubr.f32.mxu0 0.0
    %v2114 = vand.u32 %v280, 4294901760
    %v2115 = vsub.f32 %v280, %v2114
    %2116 = vmatmul.mubr.f32.gmra.mrb[0].mxu0 %v2115
    %v2117 = vpop.f32.mrb[0].mxu0
    %v2118 = vadd.f32 %v1542, %v2117
    %v2119 = vpop.f32.mrb[0].mxu0
    %2120 = vmatprep.mubr.f32.mxu0 0.0
    %v2121 = vand.u32 %v283, 4294901760
    %v2122 = vsub.f32 %v283, %v2121
    %2123 = vmatmul.mubr.f32.gmra.mrb[0].mxu0 %v2122
    %v2124 = vpop.f32.mrb[0].mxu0
    %v2125 = vadd.f32 %v1548, %v2124
    %v2126 = vpop.f32.mrb[0].mxu0
    %2127 = vmatprep.mubr.f32.mxu0 0.0
    %v2128 = vand.u32 %v286, 4294901760
    %v2129 = vsub.f32 %v286, %v2128
    %2130 = vmatmul.mubr.f32.gmra.mrb[0].mxu0 %v2129
    %v2131 = vpop.f32.mrb[0].mxu0
    %v2132 = vadd.f32 %v1554, %v2131
    %v2133 = vpop.f32.mrb[0].mxu0
    %2134 = vmatprep.mubr.f32.mxu0 0.0
    %v2135 = vand.u32 %v289, 4294901760
    %v2136 = vsub.f32 %v289, %v2135
    %2137 = vmatmul.mubr.f32.gmra.mrb[0].mxu0 %v2136
    %v2138 = vpop.f32.mrb[0].mxu0
    %v2139 = vadd.f32 %v1560, %v2138
    %v2140 = vpop.f32.mrb[0].mxu0
    %2141 = vmatprep.mubr.f32.mxu0 0.0
    %v2142 = vand.u32 %v292, 4294901760
    %v2143 = vsub.f32 %v292, %v2142
    %2144 = vmatmul.mubr.f32.gmra.mrb[0].mxu0 %v2143
    %v2145 = vpop.f32.mrb[0].mxu0
    %v2146 = vadd.f32 %v1566, %v2145
    %v2147 = vpop.f32.mrb[0].mxu0
    %2148 = vmatprep.mubr.f32.mxu0 0.0
    %v2149 = vand.u32 %v295, 4294901760
    %v2150 = vsub.f32 %v295, %v2149
    %2151 = vmatmul.mubr.f32.gmra.mrb[0].mxu0 %v2150
    %v2152 = vpop.f32.mrb[0].mxu0
    %v2153 = vadd.f32 %v1572, %v2152
    %v2154 = vpop.f32.mrb[0].mxu0
    %2155 = vmatprep.mubr.f32.mxu0 0.0
    %v2156 = vand.u32 %v298, 4294901760
    %v2157 = vsub.f32 %v298, %v2156
    %2158 = vmatmul.mubr.f32.gmra.mrb[0].mxu0 %v2157
    %v2159 = vpop.f32.mrb[0].mxu0
    %v2160 = vadd.f32 %v1578, %v2159
    %v2161 = vpop.f32.mrb[0].mxu0
    %2162 = vmatprep.mubr.f32.mxu0 0.0
    %v2163 = vand.u32 %v301, 4294901760
    %v2164 = vsub.f32 %v301, %v2163
    %2165 = vmatmul.mubr.f32.gmra.mrb[0].mxu0 %v2164
    %v2166 = vpop.f32.mrb[0].mxu0
    %v2167 = vadd.f32 %v1584, %v2166
    %v2168 = vpop.f32.mrb[0].mxu0
    %2169 = vmatprep.mubr.f32.mxu0 0.0
    %v2170 = vand.u32 %v304, 4294901760
    %v2171 = vsub.f32 %v304, %v2170
    %2172 = vmatmul.mubr.f32.gmra.mrb[0].mxu0 %v2171
    %v2173 = vpop.f32.mrb[0].mxu0
    %v2174 = vadd.f32 %v1590, %v2173
    %v2175 = vpop.f32.mrb[0].mxu0
    %2176 = vmatprep.mubr.f32.mxu0 0.0
    %v2177 = vand.u32 %v307, 4294901760
    %v2178 = vsub.f32 %v307, %v2177
    %2179 = vmatmul.mubr.f32.gmra.mrb[0].mxu0 %v2178
    %v2180 = vpop.f32.mrb[0].mxu0
    %v2181 = vadd.f32 %v1596, %v2180
    %v2182 = vpop.f32.mrb[0].mxu0
    %2183 = vmatprep.mubr.f32.mxu0 0.0
    %v2184 = vand.u32 %v310, 4294901760
    %v2185 = vsub.f32 %v310, %v2184
    %2186 = vmatmul.mubr.f32.gmra.mrb[0].mxu0 %v2185
    %v2187 = vpop.f32.mrb[0].mxu0
    %v2188 = vadd.f32 %v1602, %v2187
    %v2189 = vpop.f32.mrb[0].mxu0
    %2190 = vmatprep.mubr.f32.mxu0 0.0
    %v2191 = vand.u32 %v313, 4294901760
    %v2192 = vsub.f32 %v313, %v2191
    %2193 = vmatmul.mubr.f32.gmra.mrb[0].mxu0 %v2192
    %v2194 = vpop.f32.mrb[0].mxu0
    %v2195 = vadd.f32 %v1608, %v2194
    %v2196 = vpop.f32.mrb[0].mxu0
    %2197 = vmatprep.mubr.f32.mxu0 0.0
    %v2198 = vand.u32 %v316, 4294901760
    %v2199 = vsub.f32 %v316, %v2198
    %2200 = vmatmul.mubr.f32.gmra.mrb[0].mxu0 %v2199
    %v2201 = vpop.f32.mrb[0].mxu0
    %v2202 = vadd.f32 %v1614, %v2201
    %v2203 = vpop.f32.mrb[0].mxu0
    %2204 = vmatprep.mubr.f32.mxu0 0.0
    %v2205 = vand.u32 %v319, 4294901760
    %v2206 = vsub.f32 %v319, %v2205
    %2207 = vmatmul.mubr.f32.gmra.mrb[0].mxu0 %v2206
    %v2208 = vpop.f32.mrb[0].mxu0
    %v2209 = vadd.f32 %v1620, %v2208
    %v2210 = vpop.f32.mrb[0].mxu0
    %2211 = vmatprep.mubr.f32.mxu0 0.0
    %v2212 = vand.u32 %v322, 4294901760
    %v2213 = vsub.f32 %v322, %v2212
    %2214 = vmatmul.mubr.f32.gmra.mrb[0].mxu0 %v2213
    %v2215 = vpop.f32.mrb[0].mxu0
    %v2216 = vadd.f32 %v1626, %v2215
    %v2217 = vpop.f32.mrb[0].mxu0
    %2218 = vmatprep.mubr.f32.mxu0 0.0
    %v2219 = vand.u32 %v325, 4294901760
    %v2220 = vsub.f32 %v325, %v2219
    %2221 = vmatmul.mubr.f32.gmra.mrb[0].mxu0 %v2220
    %v2222 = vpop.f32.mrb[0].mxu0
    %v2223 = vadd.f32 %v1632, %v2222
    %v2224 = vpop.f32.mrb[0].mxu0
    %2225 = vmatprep.mubr.f32.mxu0 0.0
    %v2226 = vand.u32 %v328, 4294901760
    %v2227 = vsub.f32 %v328, %v2226
    %2228 = vmatmul.mubr.f32.gmra.mrb[0].mxu0 %v2227
    %v2229 = vpop.f32.mrb[0].mxu0
    %v2230 = vadd.f32 %v1638, %v2229
    %v2231 = vpop.f32.mrb[0].mxu0
    %2232 = vmatprep.mubr.f32.mxu0 0.0
    %v2233 = vand.u32 %v331, 4294901760
    %v2234 = vsub.f32 %v331, %v2233
    %2235 = vmatmul.mubr.f32.gmra.mrb[0].mxu0 %v2234
    %v2236 = vpop.f32.mrb[0].mxu0
    %v2237 = vadd.f32 %v1644, %v2236
    %v2238 = vpop.f32.mrb[0].mxu0
    %2239 = vmatprep.mubr.f32.mxu0 0.0
    %v2240 = vand.u32 %v334, 4294901760
    %v2241 = vsub.f32 %v334, %v2240
    %2242 = vmatmul.mubr.f32.gmra.mrb[0].mxu0 %v2241
    %v2243 = vpop.f32.mrb[0].mxu0
    %v2244 = vadd.f32 %v1650, %v2243
    %v2245 = vpop.f32.mrb[0].mxu0
    %2246 = vmatprep.mubr.f32.mxu0 0.0
    %v2247 = vand.u32 %v337, 4294901760
    %v2248 = vsub.f32 %v337, %v2247
    %2249 = vmatmul.mubr.f32.gmra.mrb[0].mxu0 %v2248
    %v2250 = vpop.f32.mrb[0].mxu0
    %v2251 = vadd.f32 %v1656, %v2250
    %v2252 = vpop.f32.mrb[0].mxu0
    %2253 = vmatprep.mubr.f32.mxu0 0.0
    %v2254 = vand.u32 %v340, 4294901760
    %v2255 = vsub.f32 %v340, %v2254
    %2256 = vmatmul.mubr.f32.gmra.mrb[0].mxu0 %v2255
    %v2257 = vpop.f32.mrb[0].mxu0
    %v2258 = vadd.f32 %v1662, %v2257
    %v2259 = vpop.f32.mrb[0].mxu0
    %2260 = vmatprep.mubr.f32.mxu0 0.0
    %v2261 = vand.u32 %v343, 4294901760
    %v2262 = vsub.f32 %v343, %v2261
    %2263 = vmatmul.mubr.f32.gmra.mrb[0].mxu0 %v2262
    %v2264 = vpop.f32.mrb[0].mxu0
    %v2265 = vadd.f32 %v1668, %v2264
    %v2266 = vpop.f32.mrb[0].mxu0
    %2267 = vmatprep.mubr.f32.mxu0 0.0
    %v2268 = vand.u32 %v346, 4294901760
    %v2269 = vsub.f32 %v346, %v2268
    %2270 = vmatmul.mubr.f32.gmra.mrb[0].mxu0 %v2269
    %v2271 = vpop.f32.mrb[0].mxu0
    %v2272 = vadd.f32 %v1674, %v2271
    %v2273 = vpop.f32.mrb[0].mxu0
    %2274 = vmatprep.mubr.f32.mxu0 0.0
    %v2275 = vand.u32 %v349, 4294901760
    %v2276 = vsub.f32 %v349, %v2275
    %2277 = vmatmul.mubr.f32.gmra.mrb[0].mxu0 %v2276
    %v2278 = vpop.f32.mrb[0].mxu0
    %v2279 = vadd.f32 %v1680, %v2278
    %v2280 = vpop.f32.mrb[0].mxu0
    %2281 = vmatprep.mubr.f32.mxu0 0.0
    %v2282 = vand.u32 %v352, 4294901760
    %v2283 = vsub.f32 %v352, %v2282
    %2284 = vmatmul.mubr.f32.gmra.mrb[0].mxu0 %v2283
    %v2285 = vpop.f32.mrb[0].mxu0
    %v2286 = vadd.f32 %v1686, %v2285
    %v2287 = vpop.f32.mrb[0].mxu0
    %2288 = vmatprep.mubr.f32.mxu0 0.0
    %v2289 = vand.u32 %v355, 4294901760
    %v2290 = vsub.f32 %v355, %v2289
    %2291 = vmatmul.mubr.f32.gmra.mrb[0].mxu0 %v2290
    %v2292 = vpop.f32.mrb[0].mxu0
    %v2293 = vadd.f32 %v1692, %v2292
    %v2294 = vpop.f32.mrb[0].mxu0
    %2295 = vmatprep.mubr.f32.mxu0 0.0
    %v2296 = vand.u32 %v358, 4294901760
    %v2297 = vsub.f32 %v358, %v2296
    %2298 = vmatmul.mubr.f32.gmra.mrb[0].mxu0 %v2297
    %v2299 = vpop.f32.mrb[0].mxu0
    %v2300 = vadd.f32 %v1698, %v2299
    %v2301 = vpop.f32.mrb[0].mxu0
    %2302 = vmatprep.mubr.f32.mxu0 0.0
    %v2303 = vand.u32 %v361, 4294901760
    %v2304 = vsub.f32 %v361, %v2303
    %2305 = vmatmul.mubr.f32.gmra.mrb[0].mxu0 %v2304
    %v2306 = vpop.f32.mrb[0].mxu0
    %v2307 = vadd.f32 %v1704, %v2306
    %v2308 = vpop.f32.mrb[0].mxu0
    %2309 = vmatprep.mubr.f32.mxu0 0.0
    %v2310 = vand.u32 %v364, 4294901760
    %v2311 = vsub.f32 %v364, %v2310
    %2312 = vmatmul.mubr.f32.gmra.mrb[0].mxu0 %v2311
    %v2313 = vpop.f32.mrb[0].mxu0
    %v2314 = vadd.f32 %v1710, %v2313
    %v2315 = vpop.f32.mrb[0].mxu0
    %2316 = vmatprep.mubr.f32.mxu0 0.0
    %v2317 = vand.u32 %v367, 4294901760
    %v2318 = vsub.f32 %v367, %v2317
    %2319 = vmatmul.mubr.f32.gmra.mrb[0].mxu0 %v2318
    %v2320 = vpop.f32.mrb[0].mxu0
    %v2321 = vadd.f32 %v1716, %v2320
    %v2322 = vpop.f32.mrb[0].mxu0
    %2323 = vmatprep.mubr.f32.mxu0 0.0
    %v2324 = vand.u32 %v370, 4294901760
    %v2325 = vsub.f32 %v370, %v2324
    %2326 = vmatmul.mubr.f32.gmra.mrb[0].mxu0 %v2325
    %v2327 = vpop.f32.mrb[0].mxu0
    %v2328 = vadd.f32 %v1722, %v2327
    %v2329 = vpop.f32.mrb[0].mxu0
    %2330 = vmatprep.mubr.f32.mxu0 0.0
    %v2331 = vand.u32 %v373, 4294901760
    %v2332 = vsub.f32 %v373, %v2331
    %2333 = vmatmul.mubr.f32.gmra.mrb[0].mxu0 %v2332
    %v2334 = vpop.f32.mrb[0].mxu0
    %v2335 = vadd.f32 %v1728, %v2334
    %v2336 = vpop.f32.mrb[0].mxu0
    %2337 = vmatprep.mubr.f32.mxu0 0.0
    %v2338 = vand.u32 %v376, 4294901760
    %v2339 = vsub.f32 %v376, %v2338
    %2340 = vmatmul.mubr.f32.gmra.mrb[0].mxu0 %v2339
    %v2341 = vpop.f32.mrb[0].mxu0
    %v2342 = vadd.f32 %v1734, %v2341
    %v2343 = vpop.f32.mrb[0].mxu0
    %2344 = vmatprep.mubr.f32.mxu0 0.0
    %v2345 = vand.u32 %v379, 4294901760
    %v2346 = vsub.f32 %v379, %v2345
    %2347 = vmatmul.mubr.f32.gmra.mrb[0].mxu0 %v2346
    %v2348 = vpop.f32.mrb[0].mxu0
    %v2349 = vadd.f32 %v1740, %v2348
    %v2350 = vpop.f32.mrb[0].mxu0
    %2351 = vmatprep.mubr.f32.mxu0 0.0
    %v2352 = vand.u32 %v382, 4294901760
    %v2353 = vsub.f32 %v382, %v2352
    %2354 = vmatmul.mubr.f32.gmra.mrb[0].mxu0 %v2353
    %v2355 = vpop.f32.mrb[0].mxu0
    %v2356 = vadd.f32 %v1746, %v2355
    %v2357 = vpop.f32.mrb[0].mxu0
    %2358 = vmatprep.mubr.f32.mxu0 0.0
    %v2359 = vand.u32 %v385, 4294901760
    %v2360 = vsub.f32 %v385, %v2359
    %2361 = vmatmul.mubr.f32.gmra.mrb[0].mxu0 %v2360
    %v2362 = vpop.f32.mrb[0].mxu0
    %v2363 = vadd.f32 %v1752, %v2362
    %v2364 = vpop.f32.mrb[0].mxu0
    %2365 = vmatprep.mubr.f32.mxu0 0.0
    %v2366 = vand.u32 %v388, 4294901760
    %v2367 = vsub.f32 %v388, %v2366
    %2368 = vmatmul.mubr.f32.gmra.mrb[0].mxu0 %v2367
    %v2369 = vpop.f32.mrb[0].mxu0
    %v2370 = vadd.f32 %v1758, %v2369
    %v2371 = vpop.f32.mrb[0].mxu0
    %2372 = vmatprep.mubr.f32.mxu0 0.0
    %v2373 = vand.u32 %v391, 4294901760
    %v2374 = vsub.f32 %v391, %v2373
    %2375 = vmatmul.mubr.f32.gmra.mrb[0].mxu0 %v2374
    %v2376 = vpop.f32.mrb[0].mxu0
    %v2377 = vadd.f32 %v1764, %v2376
    %v2378 = vpop.f32.mrb[0].mxu0
    %2379 = vmatprep.mubr.f32.mxu0 0.0
    %v2380 = vand.u32 %v394, 4294901760
    %v2381 = vsub.f32 %v394, %v2380
    %2382 = vmatmul.mubr.f32.gmra.mrb[0].mxu0 %v2381
    %v2383 = vpop.f32.mrb[0].mxu0
    %v2384 = vadd.f32 %v1770, %v2383
    %v2385 = vpop.f32.mrb[0].mxu0
    %2386 = vmatprep.mubr.f32.mxu0 0.0
    %v2387 = vand.u32 %v397, 4294901760
    %v2388 = vsub.f32 %v397, %v2387
    %2389 = vmatmul.mubr.f32.gmra.mrb[0].mxu0 %v2388
    %v2390 = vpop.f32.mrb[0].mxu0
    %v2391 = vadd.f32 %v1776, %v2390
    %v2392 = vpop.f32.mrb[0].mxu0
    %2393 = vmatprep.mubr.f32.mxu0 0.0
    %v2394 = vand.u32 %v400, 4294901760
    %v2395 = vsub.f32 %v400, %v2394
    %2396 = vmatmul.mubr.f32.gmra.mrb[0].mxu0 %v2395
    %v2397 = vpop.f32.mrb[0].mxu0
    %v2398 = vadd.f32 %v1782, %v2397
    %v2399 = vpop.f32.mrb[0].mxu0
    %2400 = vmatprep.mubr.f32.mxu0 0.0
    %v2401 = vand.u32 %v403, 4294901760
    %v2402 = vsub.f32 %v403, %v2401
    %2403 = vmatmul.mubr.f32.gmra.mrb[0].mxu0 %v2402
    %v2404 = vpop.f32.mrb[0].mxu0
    %v2405 = vadd.f32 %v1788, %v2404
    %v2406 = vpop.f32.mrb[0].mxu0
    %2407 = vmatprep.mubr.f32.mxu0 0.0
    %v2408 = vand.u32 %v406, 4294901760
    %v2409 = vsub.f32 %v406, %v2408
    %2410 = vmatmul.mubr.f32.gmra.mrb[0].mxu0 %v2409
    %v2411 = vpop.f32.mrb[0].mxu0
    %v2412 = vadd.f32 %v1794, %v2411
    %v2413 = vpop.f32.mrb[0].mxu0
    %2414 = vmatprep.mubr.f32.mxu0 0.0
    %v2415 = vand.u32 %v409, 4294901760
    %v2416 = vsub.f32 %v409, %v2415
    %2417 = vmatmul.mubr.f32.gmra.mrb[0].mxu0 %v2416
    %v2418 = vpop.f32.mrb[0].mxu0
    %v2419 = vadd.f32 %v1800, %v2418
    %v2420 = vpop.f32.mrb[0].mxu0
    %2421 = vmatprep.mubr.f32.mxu0 0.0
    %v2422 = vand.u32 %v412, 4294901760
    %v2423 = vsub.f32 %v412, %v2422
    %2424 = vmatmul.mubr.f32.gmra.mrb[0].mxu0 %v2423
    %v2425 = vpop.f32.mrb[0].mxu0
    %v2426 = vadd.f32 %v1806, %v2425
    %v2427 = vpop.f32.mrb[0].mxu0
    %2428 = vmatprep.mubr.f32.mxu0 0.0
    %v2429 = vand.u32 %v415, 4294901760
    %v2430 = vsub.f32 %v415, %v2429
    %2431 = vmatmul.mubr.f32.gmra.mrb[0].mxu0 %v2430
    %v2432 = vpop.f32.mrb[0].mxu0
    %v2433 = vadd.f32 %v1812, %v2432
    %v2434 = vpop.f32.mrb[0].mxu0
    %2435 = vmatprep.mubr.f32.mxu0 0.0
    %v2436 = vand.u32 %v418, 4294901760
    %v2437 = vsub.f32 %v418, %v2436
    %2438 = vmatmul.mubr.f32.gmra.mrb[0].mxu0 %v2437
    %v2439 = vpop.f32.mrb[0].mxu0
    %v2440 = vadd.f32 %v1818, %v2439
    %v2441 = vpop.f32.mrb[0].mxu0
    %2442 = vmatprep.mubr.f32.mxu0 0.0
    %v2443 = vand.u32 %v421, 4294901760
    %v2444 = vsub.f32 %v421, %v2443
    %2445 = vmatmul.mubr.f32.gmra.mrb[0].mxu0 %v2444
    %v2446 = vpop.f32.mrb[0].mxu0
    %v2447 = vadd.f32 %v1824, %v2446
    %v2448 = vpop.f32.mrb[0].mxu0
    %2449 = vmatprep.mubr.f32.mxu0 0.0
    %v2450 = vand.u32 %v424, 4294901760
    %v2451 = vsub.f32 %v424, %v2450
    %2452 = vmatmul.mubr.f32.gmra.mrb[0].mxu0 %v2451
    %v2453 = vpop.f32.mrb[0].mxu0
    %v2454 = vadd.f32 %v1830, %v2453
    %v2455 = vpop.f32.mrb[0].mxu0
    %2456 = vmatprep.mubr.f32.mxu0 0.0
    %v2457 = vand.u32 %v427, 4294901760
    %v2458 = vsub.f32 %v427, %v2457
    %2459 = vmatmul.mubr.f32.gmra.mrb[0].mxu0 %v2458
    %v2460 = vpop.f32.mrb[0].mxu0
    %v2461 = vadd.f32 %v1836, %v2460
    %v2462 = vpop.f32.mrb[0].mxu0
    %2463 = vmatprep.mubr.f32.mxu0 0.0
    %v2464 = vand.u32 %v430, 4294901760
    %v2465 = vsub.f32 %v430, %v2464
    %2466 = vmatmul.mubr.f32.gmra.mrb[0].mxu0 %v2465
    %v2467 = vpop.f32.mrb[0].mxu0
    %v2468 = vadd.f32 %v1842, %v2467
    %v2469 = vpop.f32.mrb[0].mxu0
    %2470 = vmatprep.mubr.f32.mxu0 0.0
    %v2471 = vand.u32 %v433, 4294901760
    %v2472 = vsub.f32 %v433, %v2471
    %2473 = vmatmul.mubr.f32.gmra.mrb[0].mxu0 %v2472
    %v2474 = vpop.f32.mrb[0].mxu0
    %v2475 = vadd.f32 %v1848, %v2474
    %v2476 = vpop.f32.mrb[0].mxu0
    %2477 = vmatprep.mubr.f32.mxu0 0.0
    %v2478 = vand.u32 %v436, 4294901760
    %v2479 = vsub.f32 %v436, %v2478
    %2480 = vmatmul.mubr.f32.gmra.mrb[0].mxu0 %v2479
    %v2481 = vpop.f32.mrb[0].mxu0
    %v2482 = vadd.f32 %v1854, %v2481
    %v2483 = vpop.f32.mrb[0].mxu0
    %2484 = vmatprep.mubr.f32.mxu0 0.0
    %v2485 = vand.u32 %v439, 4294901760
    %v2486 = vsub.f32 %v439, %v2485
    %2487 = vmatmul.mubr.f32.gmra.mrb[0].mxu0 %v2486
    %v2488 = vpop.f32.mrb[0].mxu0
    %v2489 = vadd.f32 %v1860, %v2488
    %v2490 = vpop.f32.mrb[0].mxu0
    %2491 = vdwg.mxu0
    %2492 = vmatprep.subr.mxu0 0.0
    %v2493 = vand.u32 %v199, 4294901760
    %2494 = vmatpush1.msra.mxu0 %v2493
    %2495 = vmatprep.subr.mxu0 0.0
    %v2496 = vand.u32 %v200, 4294901760
    %2497 = vmatpush1.msra.mxu0 %v2496
    %2498 = vmatprep.subr.mxu0 0.0
    %2499 = vmatpush1.msra.mxu0 0.0
    %2500 = vmatprep.subr.mxu0 0.0
    %2501 = vmatpush1.msra.mxu0 0.0
    %2502 = vmatprep.subr.mxu0 0.0
    %2503 = vmatpush1.msra.mxu0 0.0
    %2504 = vmatprep.subr.mxu0 0.0
    %2505 = vmatpush1.msra.mxu0 0.0
    %2506 = vmatprep.subr.mxu0 0.0
    %2507 = vmatpush1.msra.mxu0 0.0
    %2508 = vmatprep.subr.mxu0 0.0
    %2509 = vmatpush1.msra.mxu0 0.0
    %2510 = vmatprep.subr.mxu0 0.0
    %2511 = vmatpush1.msra.mxu0 0.0
    %2512 = vmatprep.subr.mxu0 0.0
    %2513 = vmatpush1.msra.mxu0 0.0
    %2514 = vmatprep.subr.mxu0 0.0
    %2515 = vmatpush1.msra.mxu0 0.0
    %2516 = vmatprep.subr.mxu0 0.0
    %2517 = vmatpush1.msra.mxu0 0.0
    %2518 = vmatprep.subr.mxu0 0.0
    %2519 = vmatpush1.msra.mxu0 0.0
    %2520 = vmatprep.subr.mxu0 0.0
    %2521 = vmatpush1.msra.mxu0 0.0
    %2522 = vmatprep.subr.mxu0 0.0
    %2523 = vmatpush1.msra.mxu0 0.0
    %2524 = vmatprep.subr.mxu0 0.0
    %2525 = vmatpush1.msra.mxu0 0.0
    %2526 = vmatprep.subr.mxu0 0.0
    %2527 = vmatpush1.msra.mxu0 0.0
    %2528 = vmatprep.subr.mxu0 0.0
    %2529 = vmatpush1.msra.mxu0 0.0
    %2530 = vmatprep.subr.mxu0 0.0
    %2531 = vmatpush1.msra.mxu0 0.0
    %2532 = vmatprep.subr.mxu0 0.0
    %2533 = vmatpush1.msra.mxu0 0.0
    %2534 = vmatprep.subr.mxu0 0.0
    %2535 = vmatpush1.msra.mxu0 0.0
    %2536 = vmatprep.subr.mxu0 0.0
    %2537 = vmatpush1.msra.mxu0 0.0
    %2538 = vmatprep.subr.mxu0 0.0
    %2539 = vmatpush1.msra.mxu0 0.0
    %2540 = vmatprep.subr.mxu0 0.0
    %2541 = vmatpush1.msra.mxu0 0.0
    %2542 = vmatprep.subr.mxu0 0.0
    %2543 = vmatpush1.msra.mxu0 0.0
    %2544 = vmatprep.subr.mxu0 0.0
    %2545 = vmatpush1.msra.mxu0 0.0
    %2546 = vmatprep.subr.mxu0 0.0
    %2547 = vmatpush1.msra.mxu0 0.0
    %2548 = vmatprep.subr.mxu0 0.0
    %2549 = vmatpush1.msra.mxu0 0.0
    %2550 = vmatprep.subr.mxu0 0.0
    %2551 = vmatpush1.msra.mxu0 0.0
    %2552 = vmatprep.subr.mxu0 0.0
    %2553 = vmatpush1.msra.mxu0 0.0
    %2554 = vmatprep.subr.mxu0 0.0
    %2555 = vmatpush1.msra.mxu0 0.0
    %2556 = vmatprep.subr.mxu0 0.0
    %2557 = vmatpush1.msra.mxu0 0.0
    %2558 = vmatprep.mubr.f32.mxu0 0.0
    %v2559 = vand.u32 %v202, 4294901760
    %v2560 = vsub.f32 %v202, %v2559
    %v2561 = vand.u32 %v2560, 4294901760
    %2562 = vmatmul.mubr.f32.gmra.mrb[0].mxu0 %v2561
    %v2563 = vpop.f32.mrb[0].mxu0
    %v2564 = vadd.f32 %v1936, %v2563
    %v2565 = vpop.f32.mrb[0].mxu0
    %2566 = vmatprep.mubr.f32.mxu0 0.0
    %v2567 = vand.u32 %v205, 4294901760
    %v2568 = vsub.f32 %v205, %v2567
    %v2569 = vand.u32 %v2568, 4294901760
    %2570 = vmatmul.mubr.f32.gmra.mrb[0].mxu0 %v2569
    %v2571 = vpop.f32.mrb[0].mxu0
    %v2572 = vadd.f32 %v1943, %v2571
    %v2573 = vpop.f32.mrb[0].mxu0
    %2574 = vmatprep.mubr.f32.mxu0 0.0
    %v2575 = vand.u32 %v208, 4294901760
    %v2576 = vsub.f32 %v208, %v2575
    %v2577 = vand.u32 %v2576, 4294901760
    %2578 = vmatmul.mubr.f32.gmra.mrb[0].mxu0 %v2577
    %v2579 = vpop.f32.mrb[0].mxu0
    %v2580 = vadd.f32 %v1950, %v2579
    %v2581 = vpop.f32.mrb[0].mxu0
    %2582 = vmatprep.mubr.f32.mxu0 0.0
    %v2583 = vand.u32 %v211, 4294901760
    %v2584 = vsub.f32 %v211, %v2583
    %v2585 = vand.u32 %v2584, 4294901760
    %2586 = vmatmul.mubr.f32.gmra.mrb[0].mxu0 %v2585
    %v2587 = vpop.f32.mrb[0].mxu0
    %v2588 = vadd.f32 %v1957, %v2587
    %v2589 = vpop.f32.mrb[0].mxu0
    %2590 = vmatprep.mubr.f32.mxu0 0.0
    %v2591 = vand.u32 %v214, 4294901760
    %v2592 = vsub.f32 %v214, %v2591
    %v2593 = vand.u32 %v2592, 4294901760
    %2594 = vmatmul.mubr.f32.gmra.mrb[0].mxu0 %v2593
    %v2595 = vpop.f32.mrb[0].mxu0
    %v2596 = vadd.f32 %v1964, %v2595
    %v2597 = vpop.f32.mrb[0].mxu0
    %2598 = vmatprep.mubr.f32.mxu0 0.0
    %v2599 = vand.u32 %v217, 4294901760
    %v2600 = vsub.f32 %v217, %v2599
    %v2601 = vand.u32 %v2600, 4294901760
    %2602 = vmatmul.mubr.f32.gmra.mrb[0].mxu0 %v2601
    %v2603 = vpop.f32.mrb[0].mxu0
    %v2604 = vadd.f32 %v1971, %v2603
    %v2605 = vpop.f32.mrb[0].mxu0
    %2606 = vmatprep.mubr.f32.mxu0 0.0
    %v2607 = vand.u32 %v220, 4294901760
    %v2608 = vsub.f32 %v220, %v2607
    %v2609 = vand.u32 %v2608, 4294901760
    %2610 = vmatmul.mubr.f32.gmra.mrb[0].mxu0 %v2609
    %v2611 = vpop.f32.mrb[0].mxu0
    %v2612 = vadd.f32 %v1978, %v2611
    %v2613 = vpop.f32.mrb[0].mxu0
    %2614 = vmatprep.mubr.f32.mxu0 0.0
    %v2615 = vand.u32 %v223, 4294901760
    %v2616 = vsub.f32 %v223, %v2615
    %v2617 = vand.u32 %v2616, 4294901760
    %2618 = vmatmul.mubr.f32.gmra.mrb[0].mxu0 %v2617
    %v2619 = vpop.f32.mrb[0].mxu0
    %v2620 = vadd.f32 %v1985, %v2619
    %v2621 = vpop.f32.mrb[0].mxu0
    %2622 = vmatprep.mubr.f32.mxu0 0.0
    %v2623 = vand.u32 %v226, 4294901760
    %v2624 = vsub.f32 %v226, %v2623
    %v2625 = vand.u32 %v2624, 4294901760
    %2626 = vmatmul.mubr.f32.gmra.mrb[0].mxu0 %v2625
    %v2627 = vpop.f32.mrb[0].mxu0
    %v2628 = vadd.f32 %v1992, %v2627
    %v2629 = vpop.f32.mrb[0].mxu0
    %2630 = vmatprep.mubr.f32.mxu0 0.0
    %v2631 = vand.u32 %v229, 4294901760
    %v2632 = vsub.f32 %v229, %v2631
    %v2633 = vand.u32 %v2632, 4294901760
    %2634 = vmatmul.mubr.f32.gmra.mrb[0].mxu0 %v2633
    %v2635 = vpop.f32.mrb[0].mxu0
    %v2636 = vadd.f32 %v1999, %v2635
    %v2637 = vpop.f32.mrb[0].mxu0
    %2638 = vmatprep.mubr.f32.mxu0 0.0
    %v2639 = vand.u32 %v232, 4294901760
    %v2640 = vsub.f32 %v232, %v2639
    %v2641 = vand.u32 %v2640, 4294901760
    %2642 = vmatmul.mubr.f32.gmra.mrb[0].mxu0 %v2641
    %v2643 = vpop.f32.mrb[0].mxu0
    %v2644 = vadd.f32 %v2006, %v2643
    %v2645 = vpop.f32.mrb[0].mxu0
    %2646 = vmatprep.mubr.f32.mxu0 0.0
    %v2647 = vand.u32 %v235, 4294901760
    %v2648 = vsub.f32 %v235, %v2647
    %v2649 = vand.u32 %v2648, 4294901760
    %2650 = vmatmul.mubr.f32.gmra.mrb[0].mxu0 %v2649
    %v2651 = vpop.f32.mrb[0].mxu0
    %v2652 = vadd.f32 %v2013, %v2651
    %v2653 = vpop.f32.mrb[0].mxu0
    %2654 = vmatprep.mubr.f32.mxu0 0.0
    %v2655 = vand.u32 %v238, 4294901760
    %v2656 = vsub.f32 %v238, %v2655
    %v2657 = vand.u32 %v2656, 4294901760
    %2658 = vmatmul.mubr.f32.gmra.mrb[0].mxu0 %v2657
    %v2659 = vpop.f32.mrb[0].mxu0
    %v2660 = vadd.f32 %v2020, %v2659
    %v2661 = vpop.f32.mrb[0].mxu0
    %2662 = vmatprep.mubr.f32.mxu0 0.0
    %v2663 = vand.u32 %v241, 4294901760
    %v2664 = vsub.f32 %v241, %v2663
    %v2665 = vand.u32 %v2664, 4294901760
    %2666 = vmatmul.mubr.f32.gmra.mrb[0].mxu0 %v2665
    %v2667 = vpop.f32.mrb[0].mxu0
    %v2668 = vadd.f32 %v2027, %v2667
    %v2669 = vpop.f32.mrb[0].mxu0
    %2670 = vmatprep.mubr.f32.mxu0 0.0
    %v2671 = vand.u32 %v244, 4294901760
    %v2672 = vsub.f32 %v244, %v2671
    %v2673 = vand.u32 %v2672, 4294901760
    %2674 = vmatmul.mubr.f32.gmra.mrb[0].mxu0 %v2673
    %v2675 = vpop.f32.mrb[0].mxu0
    %v2676 = vadd.f32 %v2034, %v2675
    %v2677 = vpop.f32.mrb[0].mxu0
    %2678 = vmatprep.mubr.f32.mxu0 0.0
    %v2679 = vand.u32 %v247, 4294901760
    %v2680 = vsub.f32 %v247, %v2679
    %v2681 = vand.u32 %v2680, 4294901760
    %2682 = vmatmul.mubr.f32.gmra.mrb[0].mxu0 %v2681
    %v2683 = vpop.f32.mrb[0].mxu0
    %v2684 = vadd.f32 %v2041, %v2683
    %v2685 = vpop.f32.mrb[0].mxu0
    %2686 = vmatprep.mubr.f32.mxu0 0.0
    %v2687 = vand.u32 %v250, 4294901760
    %v2688 = vsub.f32 %v250, %v2687
    %v2689 = vand.u32 %v2688, 4294901760
    %2690 = vmatmul.mubr.f32.gmra.mrb[0].mxu0 %v2689
    %v2691 = vpop.f32.mrb[0].mxu0
    %v2692 = vadd.f32 %v2048, %v2691
    %v2693 = vpop.f32.mrb[0].mxu0
    %2694 = vmatprep.mubr.f32.mxu0 0.0
    %v2695 = vand.u32 %v253, 4294901760
    %v2696 = vsub.f32 %v253, %v2695
    %v2697 = vand.u32 %v2696, 4294901760
    %2698 = vmatmul.mubr.f32.gmra.mrb[0].mxu0 %v2697
    %v2699 = vpop.f32.mrb[0].mxu0
    %v2700 = vadd.f32 %v2055, %v2699
    %v2701 = vpop.f32.mrb[0].mxu0
    %2702 = vmatprep.mubr.f32.mxu0 0.0
    %v2703 = vand.u32 %v256, 4294901760
    %v2704 = vsub.f32 %v256, %v2703
    %v2705 = vand.u32 %v2704, 4294901760
    %2706 = vmatmul.mubr.f32.gmra.mrb[0].mxu0 %v2705
    %v2707 = vpop.f32.mrb[0].mxu0
    %v2708 = vadd.f32 %v2062, %v2707
    %v2709 = vpop.f32.mrb[0].mxu0
    %2710 = vmatprep.mubr.f32.mxu0 0.0
    %v2711 = vand.u32 %v259, 4294901760
    %v2712 = vsub.f32 %v259, %v2711
    %v2713 = vand.u32 %v2712, 4294901760
    %2714 = vmatmul.mubr.f32.gmra.mrb[0].mxu0 %v2713
    %v2715 = vpop.f32.mrb[0].mxu0
    %v2716 = vadd.f32 %v2069, %v2715
    %v2717 = vpop.f32.mrb[0].mxu0
    %2718 = vmatprep.mubr.f32.mxu0 0.0
    %v2719 = vand.u32 %v262, 4294901760
    %v2720 = vsub.f32 %v262, %v2719
    %v2721 = vand.u32 %v2720, 4294901760
    %2722 = vmatmul.mubr.f32.gmra.mrb[0].mxu0 %v2721
    %v2723 = vpop.f32.mrb[0].mxu0
    %v2724 = vadd.f32 %v2076, %v2723
    %v2725 = vpop.f32.mrb[0].mxu0
    %2726 = vmatprep.mubr.f32.mxu0 0.0
    %v2727 = vand.u32 %v265, 4294901760
    %v2728 = vsub.f32 %v265, %v2727
    %v2729 = vand.u32 %v2728, 4294901760
    %2730 = vmatmul.mubr.f32.gmra.mrb[0].mxu0 %v2729
    %v2731 = vpop.f32.mrb[0].mxu0
    %v2732 = vadd.f32 %v2083, %v2731
    %v2733 = vpop.f32.mrb[0].mxu0
    %2734 = vmatprep.mubr.f32.mxu0 0.0
    %v2735 = vand.u32 %v268, 4294901760
    %v2736 = vsub.f32 %v268, %v2735
    %v2737 = vand.u32 %v2736, 4294901760
    %2738 = vmatmul.mubr.f32.gmra.mrb[0].mxu0 %v2737
    %v2739 = vpop.f32.mrb[0].mxu0
    %v2740 = vadd.f32 %v2090, %v2739
    %v2741 = vpop.f32.mrb[0].mxu0
    %2742 = vmatprep.mubr.f32.mxu0 0.0
    %v2743 = vand.u32 %v271, 4294901760
    %v2744 = vsub.f32 %v271, %v2743
    %v2745 = vand.u32 %v2744, 4294901760
    %2746 = vmatmul.mubr.f32.gmra.mrb[0].mxu0 %v2745
    %v2747 = vpop.f32.mrb[0].mxu0
    %v2748 = vadd.f32 %v2097, %v2747
    %v2749 = vpop.f32.mrb[0].mxu0
    %2750 = vmatprep.mubr.f32.mxu0 0.0
    %v2751 = vand.u32 %v274, 4294901760
    %v2752 = vsub.f32 %v274, %v2751
    %v2753 = vand.u32 %v2752, 4294901760
    %2754 = vmatmul.mubr.f32.gmra.mrb[0].mxu0 %v2753
    %v2755 = vpop.f32.mrb[0].mxu0
    %v2756 = vadd.f32 %v2104, %v2755
    %v2757 = vpop.f32.mrb[0].mxu0
    %2758 = vmatprep.mubr.f32.mxu0 0.0
    %v2759 = vand.u32 %v277, 4294901760
    %v2760 = vsub.f32 %v277, %v2759
    %v2761 = vand.u32 %v2760, 4294901760
    %2762 = vmatmul.mubr.f32.gmra.mrb[0].mxu0 %v2761
    %v2763 = vpop.f32.mrb[0].mxu0
    %v2764 = vadd.f32 %v2111, %v2763
    %v2765 = vpop.f32.mrb[0].mxu0
    %2766 = vmatprep.mubr.f32.mxu0 0.0
    %v2767 = vand.u32 %v280, 4294901760
    %v2768 = vsub.f32 %v280, %v2767
    %v2769 = vand.u32 %v2768, 4294901760
    %2770 = vmatmul.mubr.f32.gmra.mrb[0].mxu0 %v2769
    %v2771 = vpop.f32.mrb[0].mxu0
    %v2772 = vadd.f32 %v2118, %v2771
    %v2773 = vpop.f32.mrb[0].mxu0
    %2774 = vmatprep.mubr.f32.mxu0 0.0
    %v2775 = vand.u32 %v283, 4294901760
    %v2776 = vsub.f32 %v283, %v2775
    %v2777 = vand.u32 %v2776, 4294901760
    %2778 = vmatmul.mubr.f32.gmra.mrb[0].mxu0 %v2777
    %v2779 = vpop.f32.mrb[0].mxu0
    %v2780 = vadd.f32 %v2125, %v2779
    %v2781 = vpop.f32.mrb[0].mxu0
    %2782 = vmatprep.mubr.f32.mxu0 0.0
    %v2783 = vand.u32 %v286, 4294901760
    %v2784 = vsub.f32 %v286, %v2783
    %v2785 = vand.u32 %v2784, 4294901760
    %2786 = vmatmul.mubr.f32.gmra.mrb[0].mxu0 %v2785
    %v2787 = vpop.f32.mrb[0].mxu0
    %v2788 = vadd.f32 %v2132, %v2787
    %v2789 = vpop.f32.mrb[0].mxu0
    %2790 = vmatprep.mubr.f32.mxu0 0.0
    %v2791 = vand.u32 %v289, 4294901760
    %v2792 = vsub.f32 %v289, %v2791
    %v2793 = vand.u32 %v2792, 4294901760
    %2794 = vmatmul.mubr.f32.gmra.mrb[0].mxu0 %v2793
    %v2795 = vpop.f32.mrb[0].mxu0
    %v2796 = vadd.f32 %v2139, %v2795
    %v2797 = vpop.f32.mrb[0].mxu0
    %2798 = vmatprep.mubr.f32.mxu0 0.0
    %v2799 = vand.u32 %v292, 4294901760
    %v2800 = vsub.f32 %v292, %v2799
    %v2801 = vand.u32 %v2800, 4294901760
    %2802 = vmatmul.mubr.f32.gmra.mrb[0].mxu0 %v2801
    %v2803 = vpop.f32.mrb[0].mxu0
    %v2804 = vadd.f32 %v2146, %v2803
    %v2805 = vpop.f32.mrb[0].mxu0
    %2806 = vmatprep.mubr.f32.mxu0 0.0
    %v2807 = vand.u32 %v295, 4294901760
    %v2808 = vsub.f32 %v295, %v2807
    %v2809 = vand.u32 %v2808, 4294901760
    %2810 = vmatmul.mubr.f32.gmra.mrb[0].mxu0 %v2809
    %v2811 = vpop.f32.mrb[0].mxu0
    %v2812 = vadd.f32 %v2153, %v2811
    %v2813 = vpop.f32.mrb[0].mxu0
    %2814 = vmatprep.mubr.f32.mxu0 0.0
    %v2815 = vand.u32 %v298, 4294901760
    %v2816 = vsub.f32 %v298, %v2815
    %v2817 = vand.u32 %v2816, 4294901760
    %2818 = vmatmul.mubr.f32.gmra.mrb[0].mxu0 %v2817
    %v2819 = vpop.f32.mrb[0].mxu0
    %v2820 = vadd.f32 %v2160, %v2819
    %v2821 = vpop.f32.mrb[0].mxu0
    %2822 = vmatprep.mubr.f32.mxu0 0.0
    %v2823 = vand.u32 %v301, 4294901760
    %v2824 = vsub.f32 %v301, %v2823
    %v2825 = vand.u32 %v2824, 4294901760
    %2826 = vmatmul.mubr.f32.gmra.mrb[0].mxu0 %v2825
    %v2827 = vpop.f32.mrb[0].mxu0
    %v2828 = vadd.f32 %v2167, %v2827
    %v2829 = vpop.f32.mrb[0].mxu0
    %2830 = vmatprep.mubr.f32.mxu0 0.0
    %v2831 = vand.u32 %v304, 4294901760
    %v2832 = vsub.f32 %v304, %v2831
    %v2833 = vand.u32 %v2832, 4294901760
    %2834 = vmatmul.mubr.f32.gmra.mrb[0].mxu0 %v2833
    %v2835 = vpop.f32.mrb[0].mxu0
    %v2836 = vadd.f32 %v2174, %v2835
    %v2837 = vpop.f32.mrb[0].mxu0
    %2838 = vmatprep.mubr.f32.mxu0 0.0
    %v2839 = vand.u32 %v307, 4294901760
    %v2840 = vsub.f32 %v307, %v2839
    %v2841 = vand.u32 %v2840, 4294901760
    %2842 = vmatmul.mubr.f32.gmra.mrb[0].mxu0 %v2841
    %v2843 = vpop.f32.mrb[0].mxu0
    %v2844 = vadd.f32 %v2181, %v2843
    %v2845 = vpop.f32.mrb[0].mxu0
    %2846 = vmatprep.mubr.f32.mxu0 0.0
    %v2847 = vand.u32 %v310, 4294901760
    %v2848 = vsub.f32 %v310, %v2847
    %v2849 = vand.u32 %v2848, 4294901760
    %2850 = vmatmul.mubr.f32.gmra.mrb[0].mxu0 %v2849
    %v2851 = vpop.f32.mrb[0].mxu0
    %v2852 = vadd.f32 %v2188, %v2851
    %v2853 = vpop.f32.mrb[0].mxu0
    %2854 = vmatprep.mubr.f32.mxu0 0.0
    %v2855 = vand.u32 %v313, 4294901760
    %v2856 = vsub.f32 %v313, %v2855
    %v2857 = vand.u32 %v2856, 4294901760
    %2858 = vmatmul.mubr.f32.gmra.mrb[0].mxu0 %v2857
    %v2859 = vpop.f32.mrb[0].mxu0
    %v2860 = vadd.f32 %v2195, %v2859
    %v2861 = vpop.f32.mrb[0].mxu0
    %2862 = vmatprep.mubr.f32.mxu0 0.0
    %v2863 = vand.u32 %v316, 4294901760
    %v2864 = vsub.f32 %v316, %v2863
    %v2865 = vand.u32 %v2864, 4294901760
    %2866 = vmatmul.mubr.f32.gmra.mrb[0].mxu0 %v2865
    %v2867 = vpop.f32.mrb[0].mxu0
    %v2868 = vadd.f32 %v2202, %v2867
    %v2869 = vpop.f32.mrb[0].mxu0
    %2870 = vmatprep.mubr.f32.mxu0 0.0
    %v2871 = vand.u32 %v319, 4294901760
    %v2872 = vsub.f32 %v319, %v2871
    %v2873 = vand.u32 %v2872, 4294901760
    %2874 = vmatmul.mubr.f32.gmra.mrb[0].mxu0 %v2873
    %v2875 = vpop.f32.mrb[0].mxu0
    %v2876 = vadd.f32 %v2209, %v2875
    %v2877 = vpop.f32.mrb[0].mxu0
    %2878 = vmatprep.mubr.f32.mxu0 0.0
    %v2879 = vand.u32 %v322, 4294901760
    %v2880 = vsub.f32 %v322, %v2879
    %v2881 = vand.u32 %v2880, 4294901760
    %2882 = vmatmul.mubr.f32.gmra.mrb[0].mxu0 %v2881
    %v2883 = vpop.f32.mrb[0].mxu0
    %v2884 = vadd.f32 %v2216, %v2883
    %v2885 = vpop.f32.mrb[0].mxu0
    %2886 = vmatprep.mubr.f32.mxu0 0.0
    %v2887 = vand.u32 %v325, 4294901760
    %v2888 = vsub.f32 %v325, %v2887
    %v2889 = vand.u32 %v2888, 4294901760
    %2890 = vmatmul.mubr.f32.gmra.mrb[0].mxu0 %v2889
    %v2891 = vpop.f32.mrb[0].mxu0
    %v2892 = vadd.f32 %v2223, %v2891
    %v2893 = vpop.f32.mrb[0].mxu0
    %2894 = vmatprep.mubr.f32.mxu0 0.0
    %v2895 = vand.u32 %v328, 4294901760
    %v2896 = vsub.f32 %v328, %v2895
    %v2897 = vand.u32 %v2896, 4294901760
    %2898 = vmatmul.mubr.f32.gmra.mrb[0].mxu0 %v2897
    %v2899 = vpop.f32.mrb[0].mxu0
    %v2900 = vadd.f32 %v2230, %v2899
    %v2901 = vpop.f32.mrb[0].mxu0
    %2902 = vmatprep.mubr.f32.mxu0 0.0
    %v2903 = vand.u32 %v331, 4294901760
    %v2904 = vsub.f32 %v331, %v2903
    %v2905 = vand.u32 %v2904, 4294901760
    %2906 = vmatmul.mubr.f32.gmra.mrb[0].mxu0 %v2905
    %v2907 = vpop.f32.mrb[0].mxu0
    %v2908 = vadd.f32 %v2237, %v2907
    %v2909 = vpop.f32.mrb[0].mxu0
    %2910 = vmatprep.mubr.f32.mxu0 0.0
    %v2911 = vand.u32 %v334, 4294901760
    %v2912 = vsub.f32 %v334, %v2911
    %v2913 = vand.u32 %v2912, 4294901760
    %2914 = vmatmul.mubr.f32.gmra.mrb[0].mxu0 %v2913
    %v2915 = vpop.f32.mrb[0].mxu0
    %v2916 = vadd.f32 %v2244, %v2915
    %v2917 = vpop.f32.mrb[0].mxu0
    %2918 = vmatprep.mubr.f32.mxu0 0.0
    %v2919 = vand.u32 %v337, 4294901760
    %v2920 = vsub.f32 %v337, %v2919
    %v2921 = vand.u32 %v2920, 4294901760
    %2922 = vmatmul.mubr.f32.gmra.mrb[0].mxu0 %v2921
    %v2923 = vpop.f32.mrb[0].mxu0
    %v2924 = vadd.f32 %v2251, %v2923
    %v2925 = vpop.f32.mrb[0].mxu0
    %2926 = vmatprep.mubr.f32.mxu0 0.0
    %v2927 = vand.u32 %v340, 4294901760
    %v2928 = vsub.f32 %v340, %v2927
    %v2929 = vand.u32 %v2928, 4294901760
    %2930 = vmatmul.mubr.f32.gmra.mrb[0].mxu0 %v2929
    %v2931 = vpop.f32.mrb[0].mxu0
    %v2932 = vadd.f32 %v2258, %v2931
    %v2933 = vpop.f32.mrb[0].mxu0
    %2934 = vmatprep.mubr.f32.mxu0 0.0
    %v2935 = vand.u32 %v343, 4294901760
    %v2936 = vsub.f32 %v343, %v2935
    %v2937 = vand.u32 %v2936, 4294901760
    %2938 = vmatmul.mubr.f32.gmra.mrb[0].mxu0 %v2937
    %v2939 = vpop.f32.mrb[0].mxu0
    %v2940 = vadd.f32 %v2265, %v2939
    %v2941 = vpop.f32.mrb[0].mxu0
    %2942 = vmatprep.mubr.f32.mxu0 0.0
    %v2943 = vand.u32 %v346, 4294901760
    %v2944 = vsub.f32 %v346, %v2943
    %v2945 = vand.u32 %v2944, 4294901760
    %2946 = vmatmul.mubr.f32.gmra.mrb[0].mxu0 %v2945
    %v2947 = vpop.f32.mrb[0].mxu0
    %v2948 = vadd.f32 %v2272, %v2947
    %v2949 = vpop.f32.mrb[0].mxu0
    %2950 = vmatprep.mubr.f32.mxu0 0.0
    %v2951 = vand.u32 %v349, 4294901760
    %v2952 = vsub.f32 %v349, %v2951
    %v2953 = vand.u32 %v2952, 4294901760
    %2954 = vmatmul.mubr.f32.gmra.mrb[0].mxu0 %v2953
    %v2955 = vpop.f32.mrb[0].mxu0
    %v2956 = vadd.f32 %v2279, %v2955
    %v2957 = vpop.f32.mrb[0].mxu0
    %2958 = vmatprep.mubr.f32.mxu0 0.0
    %v2959 = vand.u32 %v352, 4294901760
    %v2960 = vsub.f32 %v352, %v2959
    %v2961 = vand.u32 %v2960, 4294901760
    %2962 = vmatmul.mubr.f32.gmra.mrb[0].mxu0 %v2961
    %v2963 = vpop.f32.mrb[0].mxu0
    %v2964 = vadd.f32 %v2286, %v2963
    %v2965 = vpop.f32.mrb[0].mxu0
    %2966 = vmatprep.mubr.f32.mxu0 0.0
    %v2967 = vand.u32 %v355, 4294901760
    %v2968 = vsub.f32 %v355, %v2967
    %v2969 = vand.u32 %v2968, 4294901760
    %2970 = vmatmul.mubr.f32.gmra.mrb[0].mxu0 %v2969
    %v2971 = vpop.f32.mrb[0].mxu0
    %v2972 = vadd.f32 %v2293, %v2971
    %v2973 = vpop.f32.mrb[0].mxu0
    %2974 = vmatprep.mubr.f32.mxu0 0.0
    %v2975 = vand.u32 %v358, 4294901760
    %v2976 = vsub.f32 %v358, %v2975
    %v2977 = vand.u32 %v2976, 4294901760
    %2978 = vmatmul.mubr.f32.gmra.mrb[0].mxu0 %v2977
    %v2979 = vpop.f32.mrb[0].mxu0
    %v2980 = vadd.f32 %v2300, %v2979
    %v2981 = vpop.f32.mrb[0].mxu0
    %2982 = vmatprep.mubr.f32.mxu0 0.0
    %v2983 = vand.u32 %v361, 4294901760
    %v2984 = vsub.f32 %v361, %v2983
    %v2985 = vand.u32 %v2984, 4294901760
    %2986 = vmatmul.mubr.f32.gmra.mrb[0].mxu0 %v2985
    %v2987 = vpop.f32.mrb[0].mxu0
    %v2988 = vadd.f32 %v2307, %v2987
    %v2989 = vpop.f32.mrb[0].mxu0
    %2990 = vmatprep.mubr.f32.mxu0 0.0
    %v2991 = vand.u32 %v364, 4294901760
    %v2992 = vsub.f32 %v364, %v2991
    %v2993 = vand.u32 %v2992, 4294901760
    %2994 = vmatmul.mubr.f32.gmra.mrb[0].mxu0 %v2993
    %v2995 = vpop.f32.mrb[0].mxu0
    %v2996 = vadd.f32 %v2314, %v2995
    %v2997 = vpop.f32.mrb[0].mxu0
    %2998 = vmatprep.mubr.f32.mxu0 0.0
    %v2999 = vand.u32 %v367, 4294901760
    %v3000 = vsub.f32 %v367, %v2999
    %v3001 = vand.u32 %v3000, 4294901760
    %3002 = vmatmul.mubr.f32.gmra.mrb[0].mxu0 %v3001
    %v3003 = vpop.f32.mrb[0].mxu0
    %v3004 = vadd.f32 %v2321, %v3003
    %v3005 = vpop.f32.mrb[0].mxu0
    %3006 = vmatprep.mubr.f32.mxu0 0.0
    %v3007 = vand.u32 %v370, 4294901760
    %v3008 = vsub.f32 %v370, %v3007
    %v3009 = vand.u32 %v3008, 4294901760
    %3010 = vmatmul.mubr.f32.gmra.mrb[0].mxu0 %v3009
    %v3011 = vpop.f32.mrb[0].mxu0
    %v3012 = vadd.f32 %v2328, %v3011
    %v3013 = vpop.f32.mrb[0].mxu0
    %3014 = vmatprep.mubr.f32.mxu0 0.0
    %v3015 = vand.u32 %v373, 4294901760
    %v3016 = vsub.f32 %v373, %v3015
    %v3017 = vand.u32 %v3016, 4294901760
    %3018 = vmatmul.mubr.f32.gmra.mrb[0].mxu0 %v3017
    %v3019 = vpop.f32.mrb[0].mxu0
    %v3020 = vadd.f32 %v2335, %v3019
    %v3021 = vpop.f32.mrb[0].mxu0
    %3022 = vmatprep.mubr.f32.mxu0 0.0
    %v3023 = vand.u32 %v376, 4294901760
    %v3024 = vsub.f32 %v376, %v3023
    %v3025 = vand.u32 %v3024, 4294901760
    %3026 = vmatmul.mubr.f32.gmra.mrb[0].mxu0 %v3025
    %v3027 = vpop.f32.mrb[0].mxu0
    %v3028 = vadd.f32 %v2342, %v3027
    %v3029 = vpop.f32.mrb[0].mxu0
    %3030 = vmatprep.mubr.f32.mxu0 0.0
    %v3031 = vand.u32 %v379, 4294901760
    %v3032 = vsub.f32 %v379, %v3031
    %v3033 = vand.u32 %v3032, 4294901760
    %3034 = vmatmul.mubr.f32.gmra.mrb[0].mxu0 %v3033
    %v3035 = vpop.f32.mrb[0].mxu0
    %v3036 = vadd.f32 %v2349, %v3035
    %v3037 = vpop.f32.mrb[0].mxu0
    %3038 = vmatprep.mubr.f32.mxu0 0.0
    %v3039 = vand.u32 %v382, 4294901760
    %v3040 = vsub.f32 %v382, %v3039
    %v3041 = vand.u32 %v3040, 4294901760
    %3042 = vmatmul.mubr.f32.gmra.mrb[0].mxu0 %v3041
    %v3043 = vpop.f32.mrb[0].mxu0
    %v3044 = vadd.f32 %v2356, %v3043
    %v3045 = vpop.f32.mrb[0].mxu0
    %3046 = vmatprep.mubr.f32.mxu0 0.0
    %v3047 = vand.u32 %v385, 4294901760
    %v3048 = vsub.f32 %v385, %v3047
    %v3049 = vand.u32 %v3048, 4294901760
    %3050 = vmatmul.mubr.f32.gmra.mrb[0].mxu0 %v3049
    %v3051 = vpop.f32.mrb[0].mxu0
    %v3052 = vadd.f32 %v2363, %v3051
    %v3053 = vpop.f32.mrb[0].mxu0
    %3054 = vmatprep.mubr.f32.mxu0 0.0
    %v3055 = vand.u32 %v388, 4294901760
    %v3056 = vsub.f32 %v388, %v3055
    %v3057 = vand.u32 %v3056, 4294901760
    %3058 = vmatmul.mubr.f32.gmra.mrb[0].mxu0 %v3057
    %v3059 = vpop.f32.mrb[0].mxu0
    %v3060 = vadd.f32 %v2370, %v3059
    %v3061 = vpop.f32.mrb[0].mxu0
    %3062 = vmatprep.mubr.f32.mxu0 0.0
    %v3063 = vand.u32 %v391, 4294901760
    %v3064 = vsub.f32 %v391, %v3063
    %v3065 = vand.u32 %v3064, 4294901760
    %3066 = vmatmul.mubr.f32.gmra.mrb[0].mxu0 %v3065
    %v3067 = vpop.f32.mrb[0].mxu0
    %v3068 = vadd.f32 %v2377, %v3067
    %v3069 = vpop.f32.mrb[0].mxu0
    %3070 = vmatprep.mubr.f32.mxu0 0.0
    %v3071 = vand.u32 %v394, 4294901760
    %v3072 = vsub.f32 %v394, %v3071
    %v3073 = vand.u32 %v3072, 4294901760
    %3074 = vmatmul.mubr.f32.gmra.mrb[0].mxu0 %v3073
    %v3075 = vpop.f32.mrb[0].mxu0
    %v3076 = vadd.f32 %v2384, %v3075
    %v3077 = vpop.f32.mrb[0].mxu0
    %3078 = vmatprep.mubr.f32.mxu0 0.0
    %v3079 = vand.u32 %v397, 4294901760
    %v3080 = vsub.f32 %v397, %v3079
    %v3081 = vand.u32 %v3080, 4294901760
    %3082 = vmatmul.mubr.f32.gmra.mrb[0].mxu0 %v3081
    %v3083 = vpop.f32.mrb[0].mxu0
    %v3084 = vadd.f32 %v2391, %v3083
    %v3085 = vpop.f32.mrb[0].mxu0
    %3086 = vmatprep.mubr.f32.mxu0 0.0
    %v3087 = vand.u32 %v400, 4294901760
    %v3088 = vsub.f32 %v400, %v3087
    %v3089 = vand.u32 %v3088, 4294901760
    %3090 = vmatmul.mubr.f32.gmra.mrb[0].mxu0 %v3089
    %v3091 = vpop.f32.mrb[0].mxu0
    %v3092 = vadd.f32 %v2398, %v3091
    %v3093 = vpop.f32.mrb[0].mxu0
    %3094 = vmatprep.mubr.f32.mxu0 0.0
    %v3095 = vand.u32 %v403, 4294901760
    %v3096 = vsub.f32 %v403, %v3095
    %v3097 = vand.u32 %v3096, 4294901760
    %3098 = vmatmul.mubr.f32.gmra.mrb[0].mxu0 %v3097
    %v3099 = vpop.f32.mrb[0].mxu0
    %v3100 = vadd.f32 %v2405, %v3099
    %v3101 = vpop.f32.mrb[0].mxu0
    %3102 = vmatprep.mubr.f32.mxu0 0.0
    %v3103 = vand.u32 %v406, 4294901760
    %v3104 = vsub.f32 %v406, %v3103
    %v3105 = vand.u32 %v3104, 4294901760
    %3106 = vmatmul.mubr.f32.gmra.mrb[0].mxu0 %v3105
    %v3107 = vpop.f32.mrb[0].mxu0
    %v3108 = vadd.f32 %v2412, %v3107
    %v3109 = vpop.f32.mrb[0].mxu0
    %3110 = vmatprep.mubr.f32.mxu0 0.0
    %v3111 = vand.u32 %v409, 4294901760
    %v3112 = vsub.f32 %v409, %v3111
    %v3113 = vand.u32 %v3112, 4294901760
    %3114 = vmatmul.mubr.f32.gmra.mrb[0].mxu0 %v3113
    %v3115 = vpop.f32.mrb[0].mxu0
    %v3116 = vadd.f32 %v2419, %v3115
    %v3117 = vpop.f32.mrb[0].mxu0
    %3118 = vmatprep.mubr.f32.mxu0 0.0
    %v3119 = vand.u32 %v412, 4294901760
    %v3120 = vsub.f32 %v412, %v3119
    %v3121 = vand.u32 %v3120, 4294901760
    %3122 = vmatmul.mubr.f32.gmra.mrb[0].mxu0 %v3121
    %v3123 = vpop.f32.mrb[0].mxu0
    %v3124 = vadd.f32 %v2426, %v3123
    %v3125 = vpop.f32.mrb[0].mxu0
    %3126 = vmatprep.mubr.f32.mxu0 0.0
    %v3127 = vand.u32 %v415, 4294901760
    %v3128 = vsub.f32 %v415, %v3127
    %v3129 = vand.u32 %v3128, 4294901760
    %3130 = vmatmul.mubr.f32.gmra.mrb[0].mxu0 %v3129
    %v3131 = vpop.f32.mrb[0].mxu0
    %v3132 = vadd.f32 %v2433, %v3131
    %v3133 = vpop.f32.mrb[0].mxu0
    %3134 = vmatprep.mubr.f32.mxu0 0.0
    %v3135 = vand.u32 %v418, 4294901760
    %v3136 = vsub.f32 %v418, %v3135
    %v3137 = vand.u32 %v3136, 4294901760
    %3138 = vmatmul.mubr.f32.gmra.mrb[0].mxu0 %v3137
    %v3139 = vpop.f32.mrb[0].mxu0
    %v3140 = vadd.f32 %v2440, %v3139
    %v3141 = vpop.f32.mrb[0].mxu0
    %3142 = vmatprep.mubr.f32.mxu0 0.0
    %v3143 = vand.u32 %v421, 4294901760
    %v3144 = vsub.f32 %v421, %v3143
    %v3145 = vand.u32 %v3144, 4294901760
    %3146 = vmatmul.mubr.f32.gmra.mrb[0].mxu0 %v3145
    %v3147 = vpop.f32.mrb[0].mxu0
    %v3148 = vadd.f32 %v2447, %v3147
    %v3149 = vpop.f32.mrb[0].mxu0
    %3150 = vmatprep.mubr.f32.mxu0 0.0
    %v3151 = vand.u32 %v424, 4294901760
    %v3152 = vsub.f32 %v424, %v3151
    %v3153 = vand.u32 %v3152, 4294901760
    %3154 = vmatmul.mubr.f32.gmra.mrb[0].mxu0 %v3153
    %v3155 = vpop.f32.mrb[0].mxu0
    %v3156 = vadd.f32 %v2454, %v3155
    %v3157 = vpop.f32.mrb[0].mxu0
    %3158 = vmatprep.mubr.f32.mxu0 0.0
    %v3159 = vand.u32 %v427, 4294901760
    %v3160 = vsub.f32 %v427, %v3159
    %v3161 = vand.u32 %v3160, 4294901760
    %3162 = vmatmul.mubr.f32.gmra.mrb[0].mxu0 %v3161
    %v3163 = vpop.f32.mrb[0].mxu0
    %v3164 = vadd.f32 %v2461, %v3163
    %v3165 = vpop.f32.mrb[0].mxu0
    %3166 = vmatprep.mubr.f32.mxu0 0.0
    %v3167 = vand.u32 %v430, 4294901760
    %v3168 = vsub.f32 %v430, %v3167
    %v3169 = vand.u32 %v3168, 4294901760
    %3170 = vmatmul.mubr.f32.gmra.mrb[0].mxu0 %v3169
    %v3171 = vpop.f32.mrb[0].mxu0
    %v3172 = vadd.f32 %v2468, %v3171
    %v3173 = vpop.f32.mrb[0].mxu0
    %3174 = vmatprep.mubr.f32.mxu0 0.0
    %v3175 = vand.u32 %v433, 4294901760
    %v3176 = vsub.f32 %v433, %v3175
    %v3177 = vand.u32 %v3176, 4294901760
    %3178 = vmatmul.mubr.f32.gmra.mrb[0].mxu0 %v3177
    %v3179 = vpop.f32.mrb[0].mxu0
    %v3180 = vadd.f32 %v2475, %v3179
    %v3181 = vpop.f32.mrb[0].mxu0
    %3182 = vmatprep.mubr.f32.mxu0 0.0
    %v3183 = vand.u32 %v436, 4294901760
    %v3184 = vsub.f32 %v436, %v3183
    %v3185 = vand.u32 %v3184, 4294901760
    %3186 = vmatmul.mubr.f32.gmra.mrb[0].mxu0 %v3185
    %v3187 = vpop.f32.mrb[0].mxu0
    %v3188 = vadd.f32 %v2482, %v3187
    %v3189 = vpop.f32.mrb[0].mxu0
    %3190 = vmatprep.mubr.f32.mxu0 0.0
    %v3191 = vand.u32 %v439, 4294901760
    %v3192 = vsub.f32 %v439, %v3191
    %v3193 = vand.u32 %v3192, 4294901760
    %3194 = vmatmul.mubr.f32.gmra.mrb[0].mxu0 %v3193
    %v3195 = vpop.f32.mrb[0].mxu0
    %v3196 = vadd.f32 %v2489, %v3195
    %v3197 = vpop.f32.mrb[0].mxu0
    %3198 = vdwg.mxu0
    %3199 = vmatprep.subr.mxu0 0.0
    %v3200 = vand.u32 %v199, 4294901760
    %v3201 = vsub.f32 %v199, %v3200
    %v3202 = vand.u32 %v3201, 4294901760
    %3203 = vmatpush1.msra.mxu0 %v3202
    %3204 = vmatprep.subr.mxu0 0.0
    %v3205 = vand.u32 %v200, 4294901760
    %v3206 = vsub.f32 %v200, %v3205
    %v3207 = vand.u32 %v3206, 4294901760
    %3208 = vmatpush1.msra.mxu0 %v3207
    %3209 = vmatprep.subr.mxu0 0.0
    %3210 = vmatpush1.msra.mxu0 0.0
    %3211 = vmatprep.subr.mxu0 0.0
    %3212 = vmatpush1.msra.mxu0 0.0
    %3213 = vmatprep.subr.mxu0 0.0
    %3214 = vmatpush1.msra.mxu0 0.0
    %3215 = vmatprep.subr.mxu0 0.0
    %3216 = vmatpush1.msra.mxu0 0.0
    %3217 = vmatprep.subr.mxu0 0.0
    %3218 = vmatpush1.msra.mxu0 0.0
    %3219 = vmatprep.subr.mxu0 0.0
    %3220 = vmatpush1.msra.mxu0 0.0
    %3221 = vmatprep.subr.mxu0 0.0
    %3222 = vmatpush1.msra.mxu0 0.0
    %3223 = vmatprep.subr.mxu0 0.0
    %3224 = vmatpush1.msra.mxu0 0.0
    %3225 = vmatprep.subr.mxu0 0.0
    %3226 = vmatpush1.msra.mxu0 0.0
    %3227 = vmatprep.subr.mxu0 0.0
    %3228 = vmatpush1.msra.mxu0 0.0
    %3229 = vmatprep.subr.mxu0 0.0
    %3230 = vmatpush1.msra.mxu0 0.0
    %3231 = vmatprep.subr.mxu0 0.0
    %3232 = vmatpush1.msra.mxu0 0.0
    %3233 = vmatprep.subr.mxu0 0.0
    %3234 = vmatpush1.msra.mxu0 0.0
    %3235 = vmatprep.subr.mxu0 0.0
    %3236 = vmatpush1.msra.mxu0 0.0
    %3237 = vmatprep.subr.mxu0 0.0
    %3238 = vmatpush1.msra.mxu0 0.0
    %3239 = vmatprep.subr.mxu0 0.0
    %3240 = vmatpush1.msra.mxu0 0.0
    %3241 = vmatprep.subr.mxu0 0.0
    %3242 = vmatpush1.msra.mxu0 0.0
    %3243 = vmatprep.subr.mxu0 0.0
    %3244 = vmatpush1.msra.mxu0 0.0
    %3245 = vmatprep.subr.mxu0 0.0
    %3246 = vmatpush1.msra.mxu0 0.0
    %3247 = vmatprep.subr.mxu0 0.0
    %3248 = vmatpush1.msra.mxu0 0.0
    %3249 = vmatprep.subr.mxu0 0.0
    %3250 = vmatpush1.msra.mxu0 0.0
    %3251 = vmatprep.subr.mxu0 0.0
    %3252 = vmatpush1.msra.mxu0 0.0
    %3253 = vmatprep.subr.mxu0 0.0
    %3254 = vmatpush1.msra.mxu0 0.0
    %3255 = vmatprep.subr.mxu0 0.0
    %3256 = vmatpush1.msra.mxu0 0.0
    %3257 = vmatprep.subr.mxu0 0.0
    %3258 = vmatpush1.msra.mxu0 0.0
    %3259 = vmatprep.subr.mxu0 0.0
    %3260 = vmatpush1.msra.mxu0 0.0
    %3261 = vmatprep.subr.mxu0 0.0
    %3262 = vmatpush1.msra.mxu0 0.0
    %3263 = vmatprep.subr.mxu0 0.0
    %3264 = vmatpush1.msra.mxu0 0.0
    %3265 = vmatprep.subr.mxu0 0.0
    %3266 = vmatpush1.msra.mxu0 0.0
    %3267 = vmatprep.subr.mxu0 0.0
    %3268 = vmatpush1.msra.mxu0 0.0
    %3269 = vmatprep.mubr.f32.mxu0 0.0
    %v3270 = vand.u32 %v202, 4294901760
    %3271 = vmatmul.mubr.f32.gmra.mrb[0].mxu0 %v3270
    %v3272 = vpop.f32.mrb[0].mxu0
    %v3273 = vadd.f32 %v2564, %v3272
    %v3274 = vpop.f32.mrb[0].mxu0
    %3275 = vmatprep.mubr.f32.mxu0 0.0
    %v3276 = vand.u32 %v205, 4294901760
    %3277 = vmatmul.mubr.f32.gmra.mrb[0].mxu0 %v3276
    %v3278 = vpop.f32.mrb[0].mxu0
    %v3279 = vadd.f32 %v2572, %v3278
    %v3280 = vpop.f32.mrb[0].mxu0
    %3281 = vmatprep.mubr.f32.mxu0 0.0
    %v3282 = vand.u32 %v208, 4294901760
    %3283 = vmatmul.mubr.f32.gmra.mrb[0].mxu0 %v3282
    %v3284 = vpop.f32.mrb[0].mxu0
    %v3285 = vadd.f32 %v2580, %v3284
    %v3286 = vpop.f32.mrb[0].mxu0
    %3287 = vmatprep.mubr.f32.mxu0 0.0
    %v3288 = vand.u32 %v211, 4294901760
    %3289 = vmatmul.mubr.f32.gmra.mrb[0].mxu0 %v3288
    %v3290 = vpop.f32.mrb[0].mxu0
    %v3291 = vadd.f32 %v2588, %v3290
    %v3292 = vpop.f32.mrb[0].mxu0
    %3293 = vmatprep.mubr.f32.mxu0 0.0
    %v3294 = vand.u32 %v214, 4294901760
    %3295 = vmatmul.mubr.f32.gmra.mrb[0].mxu0 %v3294
    %v3296 = vpop.f32.mrb[0].mxu0
    %v3297 = vadd.f32 %v2596, %v3296
    %v3298 = vpop.f32.mrb[0].mxu0
    %3299 = vmatprep.mubr.f32.mxu0 0.0
    %v3300 = vand.u32 %v217, 4294901760
    %3301 = vmatmul.mubr.f32.gmra.mrb[0].mxu0 %v3300
    %v3302 = vpop.f32.mrb[0].mxu0
    %v3303 = vadd.f32 %v2604, %v3302
    %v3304 = vpop.f32.mrb[0].mxu0
    %3305 = vmatprep.mubr.f32.mxu0 0.0
    %v3306 = vand.u32 %v220, 4294901760
    %3307 = vmatmul.mubr.f32.gmra.mrb[0].mxu0 %v3306
    %v3308 = vpop.f32.mrb[0].mxu0
    %v3309 = vadd.f32 %v2612, %v3308
    %v3310 = vpop.f32.mrb[0].mxu0
    %3311 = vmatprep.mubr.f32.mxu0 0.0
    %v3312 = vand.u32 %v223, 4294901760
    %3313 = vmatmul.mubr.f32.gmra.mrb[0].mxu0 %v3312
    %v3314 = vpop.f32.mrb[0].mxu0
    %v3315 = vadd.f32 %v2620, %v3314
    %v3316 = vpop.f32.mrb[0].mxu0
    %3317 = vmatprep.mubr.f32.mxu0 0.0
    %v3318 = vand.u32 %v226, 4294901760
    %3319 = vmatmul.mubr.f32.gmra.mrb[0].mxu0 %v3318
    %v3320 = vpop.f32.mrb[0].mxu0
    %v3321 = vadd.f32 %v2628, %v3320
    %v3322 = vpop.f32.mrb[0].mxu0
    %3323 = vmatprep.mubr.f32.mxu0 0.0
    %v3324 = vand.u32 %v229, 4294901760
    %3325 = vmatmul.mubr.f32.gmra.mrb[0].mxu0 %v3324
    %v3326 = vpop.f32.mrb[0].mxu0
    %v3327 = vadd.f32 %v2636, %v3326
    %v3328 = vpop.f32.mrb[0].mxu0
    %3329 = vmatprep.mubr.f32.mxu0 0.0
    %v3330 = vand.u32 %v232, 4294901760
    %3331 = vmatmul.mubr.f32.gmra.mrb[0].mxu0 %v3330
    %v3332 = vpop.f32.mrb[0].mxu0
    %v3333 = vadd.f32 %v2644, %v3332
    %v3334 = vpop.f32.mrb[0].mxu0
    %3335 = vmatprep.mubr.f32.mxu0 0.0
    %v3336 = vand.u32 %v235, 4294901760
    %3337 = vmatmul.mubr.f32.gmra.mrb[0].mxu0 %v3336
    %v3338 = vpop.f32.mrb[0].mxu0
    %v3339 = vadd.f32 %v2652, %v3338
    %v3340 = vpop.f32.mrb[0].mxu0
    %3341 = vmatprep.mubr.f32.mxu0 0.0
    %v3342 = vand.u32 %v238, 4294901760
    %3343 = vmatmul.mubr.f32.gmra.mrb[0].mxu0 %v3342
    %v3344 = vpop.f32.mrb[0].mxu0
    %v3345 = vadd.f32 %v2660, %v3344
    %v3346 = vpop.f32.mrb[0].mxu0
    %3347 = vmatprep.mubr.f32.mxu0 0.0
    %v3348 = vand.u32 %v241, 4294901760
    %3349 = vmatmul.mubr.f32.gmra.mrb[0].mxu0 %v3348
    %v3350 = vpop.f32.mrb[0].mxu0
    %v3351 = vadd.f32 %v2668, %v3350
    %v3352 = vpop.f32.mrb[0].mxu0
    %3353 = vmatprep.mubr.f32.mxu0 0.0
    %v3354 = vand.u32 %v244, 4294901760
    %3355 = vmatmul.mubr.f32.gmra.mrb[0].mxu0 %v3354
    %v3356 = vpop.f32.mrb[0].mxu0
    %v3357 = vadd.f32 %v2676, %v3356
    %v3358 = vpop.f32.mrb[0].mxu0
    %3359 = vmatprep.mubr.f32.mxu0 0.0
    %v3360 = vand.u32 %v247, 4294901760
    %3361 = vmatmul.mubr.f32.gmra.mrb[0].mxu0 %v3360
    %v3362 = vpop.f32.mrb[0].mxu0
    %v3363 = vadd.f32 %v2684, %v3362
    %v3364 = vpop.f32.mrb[0].mxu0
    %3365 = vmatprep.mubr.f32.mxu0 0.0
    %v3366 = vand.u32 %v250, 4294901760
    %3367 = vmatmul.mubr.f32.gmra.mrb[0].mxu0 %v3366
    %v3368 = vpop.f32.mrb[0].mxu0
    %v3369 = vadd.f32 %v2692, %v3368
    %v3370 = vpop.f32.mrb[0].mxu0
    %3371 = vmatprep.mubr.f32.mxu0 0.0
    %v3372 = vand.u32 %v253, 4294901760
    %3373 = vmatmul.mubr.f32.gmra.mrb[0].mxu0 %v3372
    %v3374 = vpop.f32.mrb[0].mxu0
    %v3375 = vadd.f32 %v2700, %v3374
    %v3376 = vpop.f32.mrb[0].mxu0
    %3377 = vmatprep.mubr.f32.mxu0 0.0
    %v3378 = vand.u32 %v256, 4294901760
    %3379 = vmatmul.mubr.f32.gmra.mrb[0].mxu0 %v3378
    %v3380 = vpop.f32.mrb[0].mxu0
    %v3381 = vadd.f32 %v2708, %v3380
    %v3382 = vpop.f32.mrb[0].mxu0
    %3383 = vmatprep.mubr.f32.mxu0 0.0
    %v3384 = vand.u32 %v259, 4294901760
    %3385 = vmatmul.mubr.f32.gmra.mrb[0].mxu0 %v3384
    %v3386 = vpop.f32.mrb[0].mxu0
    %v3387 = vadd.f32 %v2716, %v3386
    %v3388 = vpop.f32.mrb[0].mxu0
    %3389 = vmatprep.mubr.f32.mxu0 0.0
    %v3390 = vand.u32 %v262, 4294901760
    %3391 = vmatmul.mubr.f32.gmra.mrb[0].mxu0 %v3390
    %v3392 = vpop.f32.mrb[0].mxu0
    %v3393 = vadd.f32 %v2724, %v3392
    %v3394 = vpop.f32.mrb[0].mxu0
    %3395 = vmatprep.mubr.f32.mxu0 0.0
    %v3396 = vand.u32 %v265, 4294901760
    %3397 = vmatmul.mubr.f32.gmra.mrb[0].mxu0 %v3396
    %v3398 = vpop.f32.mrb[0].mxu0
    %v3399 = vadd.f32 %v2732, %v3398
    %v3400 = vpop.f32.mrb[0].mxu0
    %3401 = vmatprep.mubr.f32.mxu0 0.0
    %v3402 = vand.u32 %v268, 4294901760
    %3403 = vmatmul.mubr.f32.gmra.mrb[0].mxu0 %v3402
    %v3404 = vpop.f32.mrb[0].mxu0
    %v3405 = vadd.f32 %v2740, %v3404
    %v3406 = vpop.f32.mrb[0].mxu0
    %3407 = vmatprep.mubr.f32.mxu0 0.0
    %v3408 = vand.u32 %v271, 4294901760
    %3409 = vmatmul.mubr.f32.gmra.mrb[0].mxu0 %v3408
    %v3410 = vpop.f32.mrb[0].mxu0
    %v3411 = vadd.f32 %v2748, %v3410
    %v3412 = vpop.f32.mrb[0].mxu0
    %3413 = vmatprep.mubr.f32.mxu0 0.0
    %v3414 = vand.u32 %v274, 4294901760
    %3415 = vmatmul.mubr.f32.gmra.mrb[0].mxu0 %v3414
    %v3416 = vpop.f32.mrb[0].mxu0
    %v3417 = vadd.f32 %v2756, %v3416
    %v3418 = vpop.f32.mrb[0].mxu0
    %3419 = vmatprep.mubr.f32.mxu0 0.0
    %v3420 = vand.u32 %v277, 4294901760
    %3421 = vmatmul.mubr.f32.gmra.mrb[0].mxu0 %v3420
    %v3422 = vpop.f32.mrb[0].mxu0
    %v3423 = vadd.f32 %v2764, %v3422
    %v3424 = vpop.f32.mrb[0].mxu0
    %3425 = vmatprep.mubr.f32.mxu0 0.0
    %v3426 = vand.u32 %v280, 4294901760
    %3427 = vmatmul.mubr.f32.gmra.mrb[0].mxu0 %v3426
    %v3428 = vpop.f32.mrb[0].mxu0
    %v3429 = vadd.f32 %v2772, %v3428
    %v3430 = vpop.f32.mrb[0].mxu0
    %3431 = vmatprep.mubr.f32.mxu0 0.0
    %v3432 = vand.u32 %v283, 4294901760
    %3433 = vmatmul.mubr.f32.gmra.mrb[0].mxu0 %v3432
    %v3434 = vpop.f32.mrb[0].mxu0
    %v3435 = vadd.f32 %v2780, %v3434
    %v3436 = vpop.f32.mrb[0].mxu0
    %3437 = vmatprep.mubr.f32.mxu0 0.0
    %v3438 = vand.u32 %v286, 4294901760
    %3439 = vmatmul.mubr.f32.gmra.mrb[0].mxu0 %v3438
    %v3440 = vpop.f32.mrb[0].mxu0
    %v3441 = vadd.f32 %v2788, %v3440
    %v3442 = vpop.f32.mrb[0].mxu0
    %3443 = vmatprep.mubr.f32.mxu0 0.0
    %v3444 = vand.u32 %v289, 4294901760
    %3445 = vmatmul.mubr.f32.gmra.mrb[0].mxu0 %v3444
    %v3446 = vpop.f32.mrb[0].mxu0
    %v3447 = vadd.f32 %v2796, %v3446
    %v3448 = vpop.f32.mrb[0].mxu0
    %3449 = vmatprep.mubr.f32.mxu0 0.0
    %v3450 = vand.u32 %v292, 4294901760
    %3451 = vmatmul.mubr.f32.gmra.mrb[0].mxu0 %v3450
    %v3452 = vpop.f32.mrb[0].mxu0
    %v3453 = vadd.f32 %v2804, %v3452
    %v3454 = vpop.f32.mrb[0].mxu0
    %3455 = vmatprep.mubr.f32.mxu0 0.0
    %v3456 = vand.u32 %v295, 4294901760
    %3457 = vmatmul.mubr.f32.gmra.mrb[0].mxu0 %v3456
    %v3458 = vpop.f32.mrb[0].mxu0
    %v3459 = vadd.f32 %v2812, %v3458
    %v3460 = vpop.f32.mrb[0].mxu0
    %3461 = vmatprep.mubr.f32.mxu0 0.0
    %v3462 = vand.u32 %v298, 4294901760
    %3463 = vmatmul.mubr.f32.gmra.mrb[0].mxu0 %v3462
    %v3464 = vpop.f32.mrb[0].mxu0
    %v3465 = vadd.f32 %v2820, %v3464
    %v3466 = vpop.f32.mrb[0].mxu0
    %3467 = vmatprep.mubr.f32.mxu0 0.0
    %v3468 = vand.u32 %v301, 4294901760
    %3469 = vmatmul.mubr.f32.gmra.mrb[0].mxu0 %v3468
    %v3470 = vpop.f32.mrb[0].mxu0
    %v3471 = vadd.f32 %v2828, %v3470
    %v3472 = vpop.f32.mrb[0].mxu0
    %3473 = vmatprep.mubr.f32.mxu0 0.0
    %v3474 = vand.u32 %v304, 4294901760
    %3475 = vmatmul.mubr.f32.gmra.mrb[0].mxu0 %v3474
    %v3476 = vpop.f32.mrb[0].mxu0
    %v3477 = vadd.f32 %v2836, %v3476
    %v3478 = vpop.f32.mrb[0].mxu0
    %3479 = vmatprep.mubr.f32.mxu0 0.0
    %v3480 = vand.u32 %v307, 4294901760
    %3481 = vmatmul.mubr.f32.gmra.mrb[0].mxu0 %v3480
    %v3482 = vpop.f32.mrb[0].mxu0
    %v3483 = vadd.f32 %v2844, %v3482
    %v3484 = vpop.f32.mrb[0].mxu0
    %3485 = vmatprep.mubr.f32.mxu0 0.0
    %v3486 = vand.u32 %v310, 4294901760
    %3487 = vmatmul.mubr.f32.gmra.mrb[0].mxu0 %v3486
    %v3488 = vpop.f32.mrb[0].mxu0
    %v3489 = vadd.f32 %v2852, %v3488
    %v3490 = vpop.f32.mrb[0].mxu0
    %3491 = vmatprep.mubr.f32.mxu0 0.0
    %v3492 = vand.u32 %v313, 4294901760
    %3493 = vmatmul.mubr.f32.gmra.mrb[0].mxu0 %v3492
    %v3494 = vpop.f32.mrb[0].mxu0
    %v3495 = vadd.f32 %v2860, %v3494
    %v3496 = vpop.f32.mrb[0].mxu0
    %3497 = vmatprep.mubr.f32.mxu0 0.0
    %v3498 = vand.u32 %v316, 4294901760
    %3499 = vmatmul.mubr.f32.gmra.mrb[0].mxu0 %v3498
    %v3500 = vpop.f32.mrb[0].mxu0
    %v3501 = vadd.f32 %v2868, %v3500
    %v3502 = vpop.f32.mrb[0].mxu0
    %3503 = vmatprep.mubr.f32.mxu0 0.0
    %v3504 = vand.u32 %v319, 4294901760
    %3505 = vmatmul.mubr.f32.gmra.mrb[0].mxu0 %v3504
    %v3506 = vpop.f32.mrb[0].mxu0
    %v3507 = vadd.f32 %v2876, %v3506
    %v3508 = vpop.f32.mrb[0].mxu0
    %3509 = vmatprep.mubr.f32.mxu0 0.0
    %v3510 = vand.u32 %v322, 4294901760
    %3511 = vmatmul.mubr.f32.gmra.mrb[0].mxu0 %v3510
    %v3512 = vpop.f32.mrb[0].mxu0
    %v3513 = vadd.f32 %v2884, %v3512
    %v3514 = vpop.f32.mrb[0].mxu0
    %3515 = vmatprep.mubr.f32.mxu0 0.0
    %v3516 = vand.u32 %v325, 4294901760
    %3517 = vmatmul.mubr.f32.gmra.mrb[0].mxu0 %v3516
    %v3518 = vpop.f32.mrb[0].mxu0
    %v3519 = vadd.f32 %v2892, %v3518
    %v3520 = vpop.f32.mrb[0].mxu0
    %3521 = vmatprep.mubr.f32.mxu0 0.0
    %v3522 = vand.u32 %v328, 4294901760
    %3523 = vmatmul.mubr.f32.gmra.mrb[0].mxu0 %v3522
    %v3524 = vpop.f32.mrb[0].mxu0
    %v3525 = vadd.f32 %v2900, %v3524
    %v3526 = vpop.f32.mrb[0].mxu0
    %3527 = vmatprep.mubr.f32.mxu0 0.0
    %v3528 = vand.u32 %v331, 4294901760
    %3529 = vmatmul.mubr.f32.gmra.mrb[0].mxu0 %v3528
    %v3530 = vpop.f32.mrb[0].mxu0
    %v3531 = vadd.f32 %v2908, %v3530
    %v3532 = vpop.f32.mrb[0].mxu0
    %3533 = vmatprep.mubr.f32.mxu0 0.0
    %v3534 = vand.u32 %v334, 4294901760
    %3535 = vmatmul.mubr.f32.gmra.mrb[0].mxu0 %v3534
    %v3536 = vpop.f32.mrb[0].mxu0
    %v3537 = vadd.f32 %v2916, %v3536
    %v3538 = vpop.f32.mrb[0].mxu0
    %3539 = vmatprep.mubr.f32.mxu0 0.0
    %v3540 = vand.u32 %v337, 4294901760
    %3541 = vmatmul.mubr.f32.gmra.mrb[0].mxu0 %v3540
    %v3542 = vpop.f32.mrb[0].mxu0
    %v3543 = vadd.f32 %v2924, %v3542
    %v3544 = vpop.f32.mrb[0].mxu0
    %3545 = vmatprep.mubr.f32.mxu0 0.0
    %v3546 = vand.u32 %v340, 4294901760
    %3547 = vmatmul.mubr.f32.gmra.mrb[0].mxu0 %v3546
    %v3548 = vpop.f32.mrb[0].mxu0
    %v3549 = vadd.f32 %v2932, %v3548
    %v3550 = vpop.f32.mrb[0].mxu0
    %3551 = vmatprep.mubr.f32.mxu0 0.0
    %v3552 = vand.u32 %v343, 4294901760
    %3553 = vmatmul.mubr.f32.gmra.mrb[0].mxu0 %v3552
    %v3554 = vpop.f32.mrb[0].mxu0
    %v3555 = vadd.f32 %v2940, %v3554
    %v3556 = vpop.f32.mrb[0].mxu0
    %3557 = vmatprep.mubr.f32.mxu0 0.0
    %v3558 = vand.u32 %v346, 4294901760
    %3559 = vmatmul.mubr.f32.gmra.mrb[0].mxu0 %v3558
    %v3560 = vpop.f32.mrb[0].mxu0
    %v3561 = vadd.f32 %v2948, %v3560
    %v3562 = vpop.f32.mrb[0].mxu0
    %3563 = vmatprep.mubr.f32.mxu0 0.0
    %v3564 = vand.u32 %v349, 4294901760
    %3565 = vmatmul.mubr.f32.gmra.mrb[0].mxu0 %v3564
    %v3566 = vpop.f32.mrb[0].mxu0
    %v3567 = vadd.f32 %v2956, %v3566
    %v3568 = vpop.f32.mrb[0].mxu0
    %3569 = vmatprep.mubr.f32.mxu0 0.0
    %v3570 = vand.u32 %v352, 4294901760
    %3571 = vmatmul.mubr.f32.gmra.mrb[0].mxu0 %v3570
    %v3572 = vpop.f32.mrb[0].mxu0
    %v3573 = vadd.f32 %v2964, %v3572
    %v3574 = vpop.f32.mrb[0].mxu0
    %3575 = vmatprep.mubr.f32.mxu0 0.0
    %v3576 = vand.u32 %v355, 4294901760
    %3577 = vmatmul.mubr.f32.gmra.mrb[0].mxu0 %v3576
    %v3578 = vpop.f32.mrb[0].mxu0
    %v3579 = vadd.f32 %v2972, %v3578
    %v3580 = vpop.f32.mrb[0].mxu0
    %3581 = vmatprep.mubr.f32.mxu0 0.0
    %v3582 = vand.u32 %v358, 4294901760
    %3583 = vmatmul.mubr.f32.gmra.mrb[0].mxu0 %v3582
    %v3584 = vpop.f32.mrb[0].mxu0
    %v3585 = vadd.f32 %v2980, %v3584
    %v3586 = vpop.f32.mrb[0].mxu0
    %3587 = vmatprep.mubr.f32.mxu0 0.0
    %v3588 = vand.u32 %v361, 4294901760
    %3589 = vmatmul.mubr.f32.gmra.mrb[0].mxu0 %v3588
    %v3590 = vpop.f32.mrb[0].mxu0
    %v3591 = vadd.f32 %v2988, %v3590
    %v3592 = vpop.f32.mrb[0].mxu0
    %3593 = vmatprep.mubr.f32.mxu0 0.0
    %v3594 = vand.u32 %v364, 4294901760
    %3595 = vmatmul.mubr.f32.gmra.mrb[0].mxu0 %v3594
    %v3596 = vpop.f32.mrb[0].mxu0
    %v3597 = vadd.f32 %v2996, %v3596
    %v3598 = vpop.f32.mrb[0].mxu0
    %3599 = vmatprep.mubr.f32.mxu0 0.0
    %v3600 = vand.u32 %v367, 4294901760
    %3601 = vmatmul.mubr.f32.gmra.mrb[0].mxu0 %v3600
    %v3602 = vpop.f32.mrb[0].mxu0
    %v3603 = vadd.f32 %v3004, %v3602
    %v3604 = vpop.f32.mrb[0].mxu0
    %3605 = vmatprep.mubr.f32.mxu0 0.0
    %v3606 = vand.u32 %v370, 4294901760
    %3607 = vmatmul.mubr.f32.gmra.mrb[0].mxu0 %v3606
    %v3608 = vpop.f32.mrb[0].mxu0
    %v3609 = vadd.f32 %v3012, %v3608
    %v3610 = vpop.f32.mrb[0].mxu0
    %3611 = vmatprep.mubr.f32.mxu0 0.0
    %v3612 = vand.u32 %v373, 4294901760
    %3613 = vmatmul.mubr.f32.gmra.mrb[0].mxu0 %v3612
    %v3614 = vpop.f32.mrb[0].mxu0
    %v3615 = vadd.f32 %v3020, %v3614
    %v3616 = vpop.f32.mrb[0].mxu0
    %3617 = vmatprep.mubr.f32.mxu0 0.0
    %v3618 = vand.u32 %v376, 4294901760
    %3619 = vmatmul.mubr.f32.gmra.mrb[0].mxu0 %v3618
    %v3620 = vpop.f32.mrb[0].mxu0
    %v3621 = vadd.f32 %v3028, %v3620
    %v3622 = vpop.f32.mrb[0].mxu0
    %3623 = vmatprep.mubr.f32.mxu0 0.0
    %v3624 = vand.u32 %v379, 4294901760
    %3625 = vmatmul.mubr.f32.gmra.mrb[0].mxu0 %v3624
    %v3626 = vpop.f32.mrb[0].mxu0
    %v3627 = vadd.f32 %v3036, %v3626
    %v3628 = vpop.f32.mrb[0].mxu0
    %3629 = vmatprep.mubr.f32.mxu0 0.0
    %v3630 = vand.u32 %v382, 4294901760
    %3631 = vmatmul.mubr.f32.gmra.mrb[0].mxu0 %v3630
    %v3632 = vpop.f32.mrb[0].mxu0
    %v3633 = vadd.f32 %v3044, %v3632
    %v3634 = vpop.f32.mrb[0].mxu0
    %3635 = vmatprep.mubr.f32.mxu0 0.0
    %v3636 = vand.u32 %v385, 4294901760
    %3637 = vmatmul.mubr.f32.gmra.mrb[0].mxu0 %v3636
    %v3638 = vpop.f32.mrb[0].mxu0
    %v3639 = vadd.f32 %v3052, %v3638
    %v3640 = vpop.f32.mrb[0].mxu0
    %3641 = vmatprep.mubr.f32.mxu0 0.0
    %v3642 = vand.u32 %v388, 4294901760
    %3643 = vmatmul.mubr.f32.gmra.mrb[0].mxu0 %v3642
    %v3644 = vpop.f32.mrb[0].mxu0
    %v3645 = vadd.f32 %v3060, %v3644
    %v3646 = vpop.f32.mrb[0].mxu0
    %3647 = vmatprep.mubr.f32.mxu0 0.0
    %v3648 = vand.u32 %v391, 4294901760
    %3649 = vmatmul.mubr.f32.gmra.mrb[0].mxu0 %v3648
    %v3650 = vpop.f32.mrb[0].mxu0
    %v3651 = vadd.f32 %v3068, %v3650
    %v3652 = vpop.f32.mrb[0].mxu0
    %3653 = vmatprep.mubr.f32.mxu0 0.0
    %v3654 = vand.u32 %v394, 4294901760
    %3655 = vmatmul.mubr.f32.gmra.mrb[0].mxu0 %v3654
    %v3656 = vpop.f32.mrb[0].mxu0
    %v3657 = vadd.f32 %v3076, %v3656
    %v3658 = vpop.f32.mrb[0].mxu0
    %3659 = vmatprep.mubr.f32.mxu0 0.0
    %v3660 = vand.u32 %v397, 4294901760
    %3661 = vmatmul.mubr.f32.gmra.mrb[0].mxu0 %v3660
    %v3662 = vpop.f32.mrb[0].mxu0
    %v3663 = vadd.f32 %v3084, %v3662
    %v3664 = vpop.f32.mrb[0].mxu0
    %3665 = vmatprep.mubr.f32.mxu0 0.0
    %v3666 = vand.u32 %v400, 4294901760
    %3667 = vmatmul.mubr.f32.gmra.mrb[0].mxu0 %v3666
    %v3668 = vpop.f32.mrb[0].mxu0
    %v3669 = vadd.f32 %v3092, %v3668
    %v3670 = vpop.f32.mrb[0].mxu0
    %3671 = vmatprep.mubr.f32.mxu0 0.0
    %v3672 = vand.u32 %v403, 4294901760
    %3673 = vmatmul.mubr.f32.gmra.mrb[0].mxu0 %v3672
    %v3674 = vpop.f32.mrb[0].mxu0
    %v3675 = vadd.f32 %v3100, %v3674
    %v3676 = vpop.f32.mrb[0].mxu0
    %3677 = vmatprep.mubr.f32.mxu0 0.0
    %v3678 = vand.u32 %v406, 4294901760
    %3679 = vmatmul.mubr.f32.gmra.mrb[0].mxu0 %v3678
    %v3680 = vpop.f32.mrb[0].mxu0
    %v3681 = vadd.f32 %v3108, %v3680
    %v3682 = vpop.f32.mrb[0].mxu0
    %3683 = vmatprep.mubr.f32.mxu0 0.0
    %v3684 = vand.u32 %v409, 4294901760
    %3685 = vmatmul.mubr.f32.gmra.mrb[0].mxu0 %v3684
    %v3686 = vpop.f32.mrb[0].mxu0
    %v3687 = vadd.f32 %v3116, %v3686
    %v3688 = vpop.f32.mrb[0].mxu0
    %3689 = vmatprep.mubr.f32.mxu0 0.0
    %v3690 = vand.u32 %v412, 4294901760
    %3691 = vmatmul.mubr.f32.gmra.mrb[0].mxu0 %v3690
    %v3692 = vpop.f32.mrb[0].mxu0
    %v3693 = vadd.f32 %v3124, %v3692
    %v3694 = vpop.f32.mrb[0].mxu0
    %3695 = vmatprep.mubr.f32.mxu0 0.0
    %v3696 = vand.u32 %v415, 4294901760
    %3697 = vmatmul.mubr.f32.gmra.mrb[0].mxu0 %v3696
    %v3698 = vpop.f32.mrb[0].mxu0
    %v3699 = vadd.f32 %v3132, %v3698
    %v3700 = vpop.f32.mrb[0].mxu0
    %3701 = vmatprep.mubr.f32.mxu0 0.0
    %v3702 = vand.u32 %v418, 4294901760
    %3703 = vmatmul.mubr.f32.gmra.mrb[0].mxu0 %v3702
    %v3704 = vpop.f32.mrb[0].mxu0
    %v3705 = vadd.f32 %v3140, %v3704
    %v3706 = vpop.f32.mrb[0].mxu0
    %3707 = vmatprep.mubr.f32.mxu0 0.0
    %v3708 = vand.u32 %v421, 4294901760
    %3709 = vmatmul.mubr.f32.gmra.mrb[0].mxu0 %v3708
    %v3710 = vpop.f32.mrb[0].mxu0
    %v3711 = vadd.f32 %v3148, %v3710
    %v3712 = vpop.f32.mrb[0].mxu0
    %3713 = vmatprep.mubr.f32.mxu0 0.0
    %v3714 = vand.u32 %v424, 4294901760
    %3715 = vmatmul.mubr.f32.gmra.mrb[0].mxu0 %v3714
    %v3716 = vpop.f32.mrb[0].mxu0
    %v3717 = vadd.f32 %v3156, %v3716
    %v3718 = vpop.f32.mrb[0].mxu0
    %3719 = vmatprep.mubr.f32.mxu0 0.0
    %v3720 = vand.u32 %v427, 4294901760
    %3721 = vmatmul.mubr.f32.gmra.mrb[0].mxu0 %v3720
    %v3722 = vpop.f32.mrb[0].mxu0
    %v3723 = vadd.f32 %v3164, %v3722
    %v3724 = vpop.f32.mrb[0].mxu0
    %3725 = vmatprep.mubr.f32.mxu0 0.0
    %v3726 = vand.u32 %v430, 4294901760
    %3727 = vmatmul.mubr.f32.gmra.mrb[0].mxu0 %v3726
    %v3728 = vpop.f32.mrb[0].mxu0
    %v3729 = vadd.f32 %v3172, %v3728
    %v3730 = vpop.f32.mrb[0].mxu0
    %3731 = vmatprep.mubr.f32.mxu0 0.0
    %v3732 = vand.u32 %v433, 4294901760
    %3733 = vmatmul.mubr.f32.gmra.mrb[0].mxu0 %v3732
    %v3734 = vpop.f32.mrb[0].mxu0
    %v3735 = vadd.f32 %v3180, %v3734
    %v3736 = vpop.f32.mrb[0].mxu0
    %3737 = vmatprep.mubr.f32.mxu0 0.0
    %v3738 = vand.u32 %v436, 4294901760
    %3739 = vmatmul.mubr.f32.gmra.mrb[0].mxu0 %v3738
    %v3740 = vpop.f32.mrb[0].mxu0
    %v3741 = vadd.f32 %v3188, %v3740
    %v3742 = vpop.f32.mrb[0].mxu0
    %3743 = vmatprep.mubr.f32.mxu0 0.0
    %v3744 = vand.u32 %v439, 4294901760
    %3745 = vmatmul.mubr.f32.gmra.mrb[0].mxu0 %v3744
    %v3746 = vpop.f32.mrb[0].mxu0
    %v3747 = vadd.f32 %v3196, %v3746
    %v3748 = vpop.f32.mrb[0].mxu0
    %3749 = vdwg.mxu0
    %3750 = vmatprep.subr.mxu0 0.0
    %v3751 = vand.u32 %v199, 4294901760
    %3752 = vmatpush1.msra.mxu0 %v3751
    %3753 = vmatprep.subr.mxu0 0.0
    %v3754 = vand.u32 %v200, 4294901760
    %3755 = vmatpush1.msra.mxu0 %v3754
    %3756 = vmatprep.subr.mxu0 0.0
    %3757 = vmatpush1.msra.mxu0 0.0
    %3758 = vmatprep.subr.mxu0 0.0
    %3759 = vmatpush1.msra.mxu0 0.0
    %3760 = vmatprep.subr.mxu0 0.0
    %3761 = vmatpush1.msra.mxu0 0.0
    %3762 = vmatprep.subr.mxu0 0.0
    %3763 = vmatpush1.msra.mxu0 0.0
    %3764 = vmatprep.subr.mxu0 0.0
    %3765 = vmatpush1.msra.mxu0 0.0
    %3766 = vmatprep.subr.mxu0 0.0
    %3767 = vmatpush1.msra.mxu0 0.0
    %3768 = vmatprep.subr.mxu0 0.0
    %3769 = vmatpush1.msra.mxu0 0.0
    %3770 = vmatprep.subr.mxu0 0.0
    %3771 = vmatpush1.msra.mxu0 0.0
    %3772 = vmatprep.subr.mxu0 0.0
    %3773 = vmatpush1.msra.mxu0 0.0
    %3774 = vmatprep.subr.mxu0 0.0
    %3775 = vmatpush1.msra.mxu0 0.0
    %3776 = vmatprep.subr.mxu0 0.0
    %3777 = vmatpush1.msra.mxu0 0.0
    %3778 = vmatprep.subr.mxu0 0.0
    %3779 = vmatpush1.msra.mxu0 0.0
    %3780 = vmatprep.subr.mxu0 0.0
    %3781 = vmatpush1.msra.mxu0 0.0
    %3782 = vmatprep.subr.mxu0 0.0
    %3783 = vmatpush1.msra.mxu0 0.0
    %3784 = vmatprep.subr.mxu0 0.0
    %3785 = vmatpush1.msra.mxu0 0.0
    %3786 = vmatprep.subr.mxu0 0.0
    %3787 = vmatpush1.msra.mxu0 0.0
    %3788 = vmatprep.subr.mxu0 0.0
    %3789 = vmatpush1.msra.mxu0 0.0
    %3790 = vmatprep.subr.mxu0 0.0
    %3791 = vmatpush1.msra.mxu0 0.0
    %3792 = vmatprep.subr.mxu0 0.0
    %3793 = vmatpush1.msra.mxu0 0.0
    %3794 = vmatprep.subr.mxu0 0.0
    %3795 = vmatpush1.msra.mxu0 0.0
    %3796 = vmatprep.subr.mxu0 0.0
    %3797 = vmatpush1.msra.mxu0 0.0
    %3798 = vmatprep.subr.mxu0 0.0
    %3799 = vmatpush1.msra.mxu0 0.0
    %3800 = vmatprep.subr.mxu0 0.0
    %3801 = vmatpush1.msra.mxu0 0.0
    %3802 = vmatprep.subr.mxu0 0.0
    %3803 = vmatpush1.msra.mxu0 0.0
    %3804 = vmatprep.subr.mxu0 0.0
    %3805 = vmatpush1.msra.mxu0 0.0
    %3806 = vmatprep.subr.mxu0 0.0
    %3807 = vmatpush1.msra.mxu0 0.0
    %3808 = vmatprep.subr.mxu0 0.0
    %3809 = vmatpush1.msra.mxu0 0.0
    %3810 = vmatprep.subr.mxu0 0.0
    %3811 = vmatpush1.msra.mxu0 0.0
    %3812 = vmatprep.subr.mxu0 0.0
    %3813 = vmatpush1.msra.mxu0 0.0
    %3814 = vmatprep.subr.mxu0 0.0
    %3815 = vmatpush1.msra.mxu0 0.0
    %3816 = vmatprep.mubr.f32.mxu0 0.0
    %v3817 = vand.u32 %v202, 4294901760
    %3818 = vmatmul.mubr.f32.gmra.mrb[0].mxu0 %v3817
    %v3819 = vpop.f32.mrb[0].mxu0
    %v3820 = vadd.f32 %v3273, %v3819
    %v3821 = vpop.f32.mrb[0].mxu0
    %3822 = vmatprep.mubr.f32.mxu0 0.0
    %v3823 = vand.u32 %v205, 4294901760
    %3824 = vmatmul.mubr.f32.gmra.mrb[0].mxu0 %v3823
    %v3825 = vpop.f32.mrb[0].mxu0
    %v3826 = vadd.f32 %v3279, %v3825
    %v3827 = vpop.f32.mrb[0].mxu0
    %3828 = vmatprep.mubr.f32.mxu0 0.0
    %v3829 = vand.u32 %v208, 4294901760
    %3830 = vmatmul.mubr.f32.gmra.mrb[0].mxu0 %v3829
    %v3831 = vpop.f32.mrb[0].mxu0
    %v3832 = vadd.f32 %v3285, %v3831
    %v3833 = vpop.f32.mrb[0].mxu0
    %3834 = vmatprep.mubr.f32.mxu0 0.0
    %v3835 = vand.u32 %v211, 4294901760
    %3836 = vmatmul.mubr.f32.gmra.mrb[0].mxu0 %v3835
    %v3837 = vpop.f32.mrb[0].mxu0
    %v3838 = vadd.f32 %v3291, %v3837
    %v3839 = vpop.f32.mrb[0].mxu0
    %3840 = vmatprep.mubr.f32.mxu0 0.0
    %v3841 = vand.u32 %v214, 4294901760
    %3842 = vmatmul.mubr.f32.gmra.mrb[0].mxu0 %v3841
    %v3843 = vpop.f32.mrb[0].mxu0
    %v3844 = vadd.f32 %v3297, %v3843
    %v3845 = vpop.f32.mrb[0].mxu0
    %3846 = vmatprep.mubr.f32.mxu0 0.0
    %v3847 = vand.u32 %v217, 4294901760
    %3848 = vmatmul.mubr.f32.gmra.mrb[0].mxu0 %v3847
    %v3849 = vpop.f32.mrb[0].mxu0
    %v3850 = vadd.f32 %v3303, %v3849
    %v3851 = vpop.f32.mrb[0].mxu0
    %3852 = vmatprep.mubr.f32.mxu0 0.0
    %v3853 = vand.u32 %v220, 4294901760
    %3854 = vmatmul.mubr.f32.gmra.mrb[0].mxu0 %v3853
    %v3855 = vpop.f32.mrb[0].mxu0
    %v3856 = vadd.f32 %v3309, %v3855
    %v3857 = vpop.f32.mrb[0].mxu0
    %3858 = vmatprep.mubr.f32.mxu0 0.0
    %v3859 = vand.u32 %v223, 4294901760
    %3860 = vmatmul.mubr.f32.gmra.mrb[0].mxu0 %v3859
    %v3861 = vpop.f32.mrb[0].mxu0
    %v3862 = vadd.f32 %v3315, %v3861
    %v3863 = vpop.f32.mrb[0].mxu0
    %3864 = vmatprep.mubr.f32.mxu0 0.0
    %v3865 = vand.u32 %v226, 4294901760
    %3866 = vmatmul.mubr.f32.gmra.mrb[0].mxu0 %v3865
    %v3867 = vpop.f32.mrb[0].mxu0
    %v3868 = vadd.f32 %v3321, %v3867
    %v3869 = vpop.f32.mrb[0].mxu0
    %3870 = vmatprep.mubr.f32.mxu0 0.0
    %v3871 = vand.u32 %v229, 4294901760
    %3872 = vmatmul.mubr.f32.gmra.mrb[0].mxu0 %v3871
    %v3873 = vpop.f32.mrb[0].mxu0
    %v3874 = vadd.f32 %v3327, %v3873
    %v3875 = vpop.f32.mrb[0].mxu0
    %3876 = vmatprep.mubr.f32.mxu0 0.0
    %v3877 = vand.u32 %v232, 4294901760
    %3878 = vmatmul.mubr.f32.gmra.mrb[0].mxu0 %v3877
    %v3879 = vpop.f32.mrb[0].mxu0
    %v3880 = vadd.f32 %v3333, %v3879
    %v3881 = vpop.f32.mrb[0].mxu0
    %3882 = vmatprep.mubr.f32.mxu0 0.0
    %v3883 = vand.u32 %v235, 4294901760
    %3884 = vmatmul.mubr.f32.gmra.mrb[0].mxu0 %v3883
    %v3885 = vpop.f32.mrb[0].mxu0
    %v3886 = vadd.f32 %v3339, %v3885
    %v3887 = vpop.f32.mrb[0].mxu0
    %3888 = vmatprep.mubr.f32.mxu0 0.0
    %v3889 = vand.u32 %v238, 4294901760
    %3890 = vmatmul.mubr.f32.gmra.mrb[0].mxu0 %v3889
    %v3891 = vpop.f32.mrb[0].mxu0
    %v3892 = vadd.f32 %v3345, %v3891
    %v3893 = vpop.f32.mrb[0].mxu0
    %3894 = vmatprep.mubr.f32.mxu0 0.0
    %v3895 = vand.u32 %v241, 4294901760
    %3896 = vmatmul.mubr.f32.gmra.mrb[0].mxu0 %v3895
    %v3897 = vpop.f32.mrb[0].mxu0
    %v3898 = vadd.f32 %v3351, %v3897
    %v3899 = vpop.f32.mrb[0].mxu0
    %3900 = vmatprep.mubr.f32.mxu0 0.0
    %v3901 = vand.u32 %v244, 4294901760
    %3902 = vmatmul.mubr.f32.gmra.mrb[0].mxu0 %v3901
    %v3903 = vpop.f32.mrb[0].mxu0
    %v3904 = vadd.f32 %v3357, %v3903
    %v3905 = vpop.f32.mrb[0].mxu0
    %3906 = vmatprep.mubr.f32.mxu0 0.0
    %v3907 = vand.u32 %v247, 4294901760
    %3908 = vmatmul.mubr.f32.gmra.mrb[0].mxu0 %v3907
    %v3909 = vpop.f32.mrb[0].mxu0
    %v3910 = vadd.f32 %v3363, %v3909
    %v3911 = vpop.f32.mrb[0].mxu0
    %3912 = vmatprep.mubr.f32.mxu0 0.0
    %v3913 = vand.u32 %v250, 4294901760
    %3914 = vmatmul.mubr.f32.gmra.mrb[0].mxu0 %v3913
    %v3915 = vpop.f32.mrb[0].mxu0
    %v3916 = vadd.f32 %v3369, %v3915
    %v3917 = vpop.f32.mrb[0].mxu0
    %3918 = vmatprep.mubr.f32.mxu0 0.0
    %v3919 = vand.u32 %v253, 4294901760
    %3920 = vmatmul.mubr.f32.gmra.mrb[0].mxu0 %v3919
    %v3921 = vpop.f32.mrb[0].mxu0
    %v3922 = vadd.f32 %v3375, %v3921
    %v3923 = vpop.f32.mrb[0].mxu0
    %3924 = vmatprep.mubr.f32.mxu0 0.0
    %v3925 = vand.u32 %v256, 4294901760
    %3926 = vmatmul.mubr.f32.gmra.mrb[0].mxu0 %v3925
    %v3927 = vpop.f32.mrb[0].mxu0
    %v3928 = vadd.f32 %v3381, %v3927
    %v3929 = vpop.f32.mrb[0].mxu0
    %3930 = vmatprep.mubr.f32.mxu0 0.0
    %v3931 = vand.u32 %v259, 4294901760
    %3932 = vmatmul.mubr.f32.gmra.mrb[0].mxu0 %v3931
    %v3933 = vpop.f32.mrb[0].mxu0
    %v3934 = vadd.f32 %v3387, %v3933
    %v3935 = vpop.f32.mrb[0].mxu0
    %3936 = vmatprep.mubr.f32.mxu0 0.0
    %v3937 = vand.u32 %v262, 4294901760
    %3938 = vmatmul.mubr.f32.gmra.mrb[0].mxu0 %v3937
    %v3939 = vpop.f32.mrb[0].mxu0
    %v3940 = vadd.f32 %v3393, %v3939
    %v3941 = vpop.f32.mrb[0].mxu0
    %3942 = vmatprep.mubr.f32.mxu0 0.0
    %v3943 = vand.u32 %v265, 4294901760
    %3944 = vmatmul.mubr.f32.gmra.mrb[0].mxu0 %v3943
    %v3945 = vpop.f32.mrb[0].mxu0
    %v3946 = vadd.f32 %v3399, %v3945
    %v3947 = vpop.f32.mrb[0].mxu0
    %3948 = vmatprep.mubr.f32.mxu0 0.0
    %v3949 = vand.u32 %v268, 4294901760
    %3950 = vmatmul.mubr.f32.gmra.mrb[0].mxu0 %v3949
    %v3951 = vpop.f32.mrb[0].mxu0
    %v3952 = vadd.f32 %v3405, %v3951
    %v3953 = vpop.f32.mrb[0].mxu0
    %3954 = vmatprep.mubr.f32.mxu0 0.0
    %v3955 = vand.u32 %v271, 4294901760
    %3956 = vmatmul.mubr.f32.gmra.mrb[0].mxu0 %v3955
    %v3957 = vpop.f32.mrb[0].mxu0
    %v3958 = vadd.f32 %v3411, %v3957
    %v3959 = vpop.f32.mrb[0].mxu0
    %3960 = vmatprep.mubr.f32.mxu0 0.0
    %v3961 = vand.u32 %v274, 4294901760
    %3962 = vmatmul.mubr.f32.gmra.mrb[0].mxu0 %v3961
    %v3963 = vpop.f32.mrb[0].mxu0
    %v3964 = vadd.f32 %v3417, %v3963
    %v3965 = vpop.f32.mrb[0].mxu0
    %3966 = vmatprep.mubr.f32.mxu0 0.0
    %v3967 = vand.u32 %v277, 4294901760
    %3968 = vmatmul.mubr.f32.gmra.mrb[0].mxu0 %v3967
    %v3969 = vpop.f32.mrb[0].mxu0
    %v3970 = vadd.f32 %v3423, %v3969
    %v3971 = vpop.f32.mrb[0].mxu0
    %3972 = vmatprep.mubr.f32.mxu0 0.0
    %v3973 = vand.u32 %v280, 4294901760
    %3974 = vmatmul.mubr.f32.gmra.mrb[0].mxu0 %v3973
    %v3975 = vpop.f32.mrb[0].mxu0
    %v3976 = vadd.f32 %v3429, %v3975
    %v3977 = vpop.f32.mrb[0].mxu0
    %3978 = vmatprep.mubr.f32.mxu0 0.0
    %v3979 = vand.u32 %v283, 4294901760
    %3980 = vmatmul.mubr.f32.gmra.mrb[0].mxu0 %v3979
    %v3981 = vpop.f32.mrb[0].mxu0
    %v3982 = vadd.f32 %v3435, %v3981
    %v3983 = vpop.f32.mrb[0].mxu0
    %3984 = vmatprep.mubr.f32.mxu0 0.0
    %v3985 = vand.u32 %v286, 4294901760
    %3986 = vmatmul.mubr.f32.gmra.mrb[0].mxu0 %v3985
    %v3987 = vpop.f32.mrb[0].mxu0
    %v3988 = vadd.f32 %v3441, %v3987
    %v3989 = vpop.f32.mrb[0].mxu0
    %3990 = vmatprep.mubr.f32.mxu0 0.0
    %v3991 = vand.u32 %v289, 4294901760
    %3992 = vmatmul.mubr.f32.gmra.mrb[0].mxu0 %v3991
    %v3993 = vpop.f32.mrb[0].mxu0
    %v3994 = vadd.f32 %v3447, %v3993
    %v3995 = vpop.f32.mrb[0].mxu0
    %3996 = vmatprep.mubr.f32.mxu0 0.0
    %v3997 = vand.u32 %v292, 4294901760
    %3998 = vmatmul.mubr.f32.gmra.mrb[0].mxu0 %v3997
    %v3999 = vpop.f32.mrb[0].mxu0
    %v4000 = vadd.f32 %v3453, %v3999
    %v4001 = vpop.f32.mrb[0].mxu0
    %4002 = vmatprep.mubr.f32.mxu0 0.0
    %v4003 = vand.u32 %v295, 4294901760
    %4004 = vmatmul.mubr.f32.gmra.mrb[0].mxu0 %v4003
    %v4005 = vpop.f32.mrb[0].mxu0
    %v4006 = vadd.f32 %v3459, %v4005
    %v4007 = vpop.f32.mrb[0].mxu0
    %4008 = vmatprep.mubr.f32.mxu0 0.0
    %v4009 = vand.u32 %v298, 4294901760
    %4010 = vmatmul.mubr.f32.gmra.mrb[0].mxu0 %v4009
    %v4011 = vpop.f32.mrb[0].mxu0
    %v4012 = vadd.f32 %v3465, %v4011
    %v4013 = vpop.f32.mrb[0].mxu0
    %4014 = vmatprep.mubr.f32.mxu0 0.0
    %v4015 = vand.u32 %v301, 4294901760
    %4016 = vmatmul.mubr.f32.gmra.mrb[0].mxu0 %v4015
    %v4017 = vpop.f32.mrb[0].mxu0
    %v4018 = vadd.f32 %v3471, %v4017
    %v4019 = vpop.f32.mrb[0].mxu0
    %4020 = vmatprep.mubr.f32.mxu0 0.0
    %v4021 = vand.u32 %v304, 4294901760
    %4022 = vmatmul.mubr.f32.gmra.mrb[0].mxu0 %v4021
    %v4023 = vpop.f32.mrb[0].mxu0
    %v4024 = vadd.f32 %v3477, %v4023
    %v4025 = vpop.f32.mrb[0].mxu0
    %4026 = vmatprep.mubr.f32.mxu0 0.0
    %v4027 = vand.u32 %v307, 4294901760
    %4028 = vmatmul.mubr.f32.gmra.mrb[0].mxu0 %v4027
    %v4029 = vpop.f32.mrb[0].mxu0
    %v4030 = vadd.f32 %v3483, %v4029
    %v4031 = vpop.f32.mrb[0].mxu0
    %4032 = vmatprep.mubr.f32.mxu0 0.0
    %v4033 = vand.u32 %v310, 4294901760
    %4034 = vmatmul.mubr.f32.gmra.mrb[0].mxu0 %v4033
    %v4035 = vpop.f32.mrb[0].mxu0
    %v4036 = vadd.f32 %v3489, %v4035
    %v4037 = vpop.f32.mrb[0].mxu0
    %4038 = vmatprep.mubr.f32.mxu0 0.0
    %v4039 = vand.u32 %v313, 4294901760
    %4040 = vmatmul.mubr.f32.gmra.mrb[0].mxu0 %v4039
    %v4041 = vpop.f32.mrb[0].mxu0
    %v4042 = vadd.f32 %v3495, %v4041
    %v4043 = vpop.f32.mrb[0].mxu0
    %4044 = vmatprep.mubr.f32.mxu0 0.0
    %v4045 = vand.u32 %v316, 4294901760
    %4046 = vmatmul.mubr.f32.gmra.mrb[0].mxu0 %v4045
    %v4047 = vpop.f32.mrb[0].mxu0
    %v4048 = vadd.f32 %v3501, %v4047
    %v4049 = vpop.f32.mrb[0].mxu0
    %4050 = vmatprep.mubr.f32.mxu0 0.0
    %v4051 = vand.u32 %v319, 4294901760
    %4052 = vmatmul.mubr.f32.gmra.mrb[0].mxu0 %v4051
    %v4053 = vpop.f32.mrb[0].mxu0
    %v4054 = vadd.f32 %v3507, %v4053
    %v4055 = vpop.f32.mrb[0].mxu0
    %4056 = vmatprep.mubr.f32.mxu0 0.0
    %v4057 = vand.u32 %v322, 4294901760
    %4058 = vmatmul.mubr.f32.gmra.mrb[0].mxu0 %v4057
    %v4059 = vpop.f32.mrb[0].mxu0
    %v4060 = vadd.f32 %v3513, %v4059
    %v4061 = vpop.f32.mrb[0].mxu0
    %4062 = vmatprep.mubr.f32.mxu0 0.0
    %v4063 = vand.u32 %v325, 4294901760
    %4064 = vmatmul.mubr.f32.gmra.mrb[0].mxu0 %v4063
    %v4065 = vpop.f32.mrb[0].mxu0
    %v4066 = vadd.f32 %v3519, %v4065
    %v4067 = vpop.f32.mrb[0].mxu0
    %4068 = vmatprep.mubr.f32.mxu0 0.0
    %v4069 = vand.u32 %v328, 4294901760
    %4070 = vmatmul.mubr.f32.gmra.mrb[0].mxu0 %v4069
    %v4071 = vpop.f32.mrb[0].mxu0
    %v4072 = vadd.f32 %v3525, %v4071
    %v4073 = vpop.f32.mrb[0].mxu0
    %4074 = vmatprep.mubr.f32.mxu0 0.0
    %v4075 = vand.u32 %v331, 4294901760
    %4076 = vmatmul.mubr.f32.gmra.mrb[0].mxu0 %v4075
    %v4077 = vpop.f32.mrb[0].mxu0
    %v4078 = vadd.f32 %v3531, %v4077
    %v4079 = vpop.f32.mrb[0].mxu0
    %4080 = vmatprep.mubr.f32.mxu0 0.0
    %v4081 = vand.u32 %v334, 4294901760
    %4082 = vmatmul.mubr.f32.gmra.mrb[0].mxu0 %v4081
    %v4083 = vpop.f32.mrb[0].mxu0
    %v4084 = vadd.f32 %v3537, %v4083
    %v4085 = vpop.f32.mrb[0].mxu0
    %4086 = vmatprep.mubr.f32.mxu0 0.0
    %v4087 = vand.u32 %v337, 4294901760
    %4088 = vmatmul.mubr.f32.gmra.mrb[0].mxu0 %v4087
    %v4089 = vpop.f32.mrb[0].mxu0
    %v4090 = vadd.f32 %v3543, %v4089
    %v4091 = vpop.f32.mrb[0].mxu0
    %4092 = vmatprep.mubr.f32.mxu0 0.0
    %v4093 = vand.u32 %v340, 4294901760
    %4094 = vmatmul.mubr.f32.gmra.mrb[0].mxu0 %v4093
    %v4095 = vpop.f32.mrb[0].mxu0
    %v4096 = vadd.f32 %v3549, %v4095
    %v4097 = vpop.f32.mrb[0].mxu0
    %4098 = vmatprep.mubr.f32.mxu0 0.0
    %v4099 = vand.u32 %v343, 4294901760
    %4100 = vmatmul.mubr.f32.gmra.mrb[0].mxu0 %v4099
    %v4101 = vpop.f32.mrb[0].mxu0
    %v4102 = vadd.f32 %v3555, %v4101
    %v4103 = vpop.f32.mrb[0].mxu0
    %4104 = vmatprep.mubr.f32.mxu0 0.0
    %v4105 = vand.u32 %v346, 4294901760
    %4106 = vmatmul.mubr.f32.gmra.mrb[0].mxu0 %v4105
    %v4107 = vpop.f32.mrb[0].mxu0
    %v4108 = vadd.f32 %v3561, %v4107
    %v4109 = vpop.f32.mrb[0].mxu0
    %4110 = vmatprep.mubr.f32.mxu0 0.0
    %v4111 = vand.u32 %v349, 4294901760
    %4112 = vmatmul.mubr.f32.gmra.mrb[0].mxu0 %v4111
    %v4113 = vpop.f32.mrb[0].mxu0
    %v4114 = vadd.f32 %v3567, %v4113
    %v4115 = vpop.f32.mrb[0].mxu0
    %4116 = vmatprep.mubr.f32.mxu0 0.0
    %v4117 = vand.u32 %v352, 4294901760
    %4118 = vmatmul.mubr.f32.gmra.mrb[0].mxu0 %v4117
    %v4119 = vpop.f32.mrb[0].mxu0
    %v4120 = vadd.f32 %v3573, %v4119
    %v4121 = vpop.f32.mrb[0].mxu0
    %4122 = vmatprep.mubr.f32.mxu0 0.0
    %v4123 = vand.u32 %v355, 4294901760
    %4124 = vmatmul.mubr.f32.gmra.mrb[0].mxu0 %v4123
    %v4125 = vpop.f32.mrb[0].mxu0
    %v4126 = vadd.f32 %v3579, %v4125
    %v4127 = vpop.f32.mrb[0].mxu0
    %4128 = vmatprep.mubr.f32.mxu0 0.0
    %v4129 = vand.u32 %v358, 4294901760
    %4130 = vmatmul.mubr.f32.gmra.mrb[0].mxu0 %v4129
    %v4131 = vpop.f32.mrb[0].mxu0
    %v4132 = vadd.f32 %v3585, %v4131
    %v4133 = vpop.f32.mrb[0].mxu0
    %4134 = vmatprep.mubr.f32.mxu0 0.0
    %v4135 = vand.u32 %v361, 4294901760
    %4136 = vmatmul.mubr.f32.gmra.mrb[0].mxu0 %v4135
    %v4137 = vpop.f32.mrb[0].mxu0
    %v4138 = vadd.f32 %v3591, %v4137
    %v4139 = vpop.f32.mrb[0].mxu0
    %4140 = vmatprep.mubr.f32.mxu0 0.0
    %v4141 = vand.u32 %v364, 4294901760
    %4142 = vmatmul.mubr.f32.gmra.mrb[0].mxu0 %v4141
    %v4143 = vpop.f32.mrb[0].mxu0
    %v4144 = vadd.f32 %v3597, %v4143
    %v4145 = vpop.f32.mrb[0].mxu0
    %4146 = vmatprep.mubr.f32.mxu0 0.0
    %v4147 = vand.u32 %v367, 4294901760
    %4148 = vmatmul.mubr.f32.gmra.mrb[0].mxu0 %v4147
    %v4149 = vpop.f32.mrb[0].mxu0
    %v4150 = vadd.f32 %v3603, %v4149
    %v4151 = vpop.f32.mrb[0].mxu0
    %4152 = vmatprep.mubr.f32.mxu0 0.0
    %v4153 = vand.u32 %v370, 4294901760
    %4154 = vmatmul.mubr.f32.gmra.mrb[0].mxu0 %v4153
    %v4155 = vpop.f32.mrb[0].mxu0
    %v4156 = vadd.f32 %v3609, %v4155
    %v4157 = vpop.f32.mrb[0].mxu0
    %4158 = vmatprep.mubr.f32.mxu0 0.0
    %v4159 = vand.u32 %v373, 4294901760
    %4160 = vmatmul.mubr.f32.gmra.mrb[0].mxu0 %v4159
    %v4161 = vpop.f32.mrb[0].mxu0
    %v4162 = vadd.f32 %v3615, %v4161
    %v4163 = vpop.f32.mrb[0].mxu0
    %4164 = vmatprep.mubr.f32.mxu0 0.0
    %v4165 = vand.u32 %v376, 4294901760
    %4166 = vmatmul.mubr.f32.gmra.mrb[0].mxu0 %v4165
    %v4167 = vpop.f32.mrb[0].mxu0
    %v4168 = vadd.f32 %v3621, %v4167
    %v4169 = vpop.f32.mrb[0].mxu0
    %4170 = vmatprep.mubr.f32.mxu0 0.0
    %v4171 = vand.u32 %v379, 4294901760
    %4172 = vmatmul.mubr.f32.gmra.mrb[0].mxu0 %v4171
    %v4173 = vpop.f32.mrb[0].mxu0
    %v4174 = vadd.f32 %v3627, %v4173
    %v4175 = vpop.f32.mrb[0].mxu0
    %4176 = vmatprep.mubr.f32.mxu0 0.0
    %v4177 = vand.u32 %v382, 4294901760
    %4178 = vmatmul.mubr.f32.gmra.mrb[0].mxu0 %v4177
    %v4179 = vpop.f32.mrb[0].mxu0
    %v4180 = vadd.f32 %v3633, %v4179
    %v4181 = vpop.f32.mrb[0].mxu0
    %4182 = vmatprep.mubr.f32.mxu0 0.0
    %v4183 = vand.u32 %v385, 4294901760
    %4184 = vmatmul.mubr.f32.gmra.mrb[0].mxu0 %v4183
    %v4185 = vpop.f32.mrb[0].mxu0
    %v4186 = vadd.f32 %v3639, %v4185
    %v4187 = vpop.f32.mrb[0].mxu0
    %4188 = vmatprep.mubr.f32.mxu0 0.0
    %v4189 = vand.u32 %v388, 4294901760
    %4190 = vmatmul.mubr.f32.gmra.mrb[0].mxu0 %v4189
    %v4191 = vpop.f32.mrb[0].mxu0
    %v4192 = vadd.f32 %v3645, %v4191
    %v4193 = vpop.f32.mrb[0].mxu0
    %4194 = vmatprep.mubr.f32.mxu0 0.0
    %v4195 = vand.u32 %v391, 4294901760
    %4196 = vmatmul.mubr.f32.gmra.mrb[0].mxu0 %v4195
    %v4197 = vpop.f32.mrb[0].mxu0
    %v4198 = vadd.f32 %v3651, %v4197
    %v4199 = vpop.f32.mrb[0].mxu0
    %4200 = vmatprep.mubr.f32.mxu0 0.0
    %v4201 = vand.u32 %v394, 4294901760
    %4202 = vmatmul.mubr.f32.gmra.mrb[0].mxu0 %v4201
    %v4203 = vpop.f32.mrb[0].mxu0
    %v4204 = vadd.f32 %v3657, %v4203
    %v4205 = vpop.f32.mrb[0].mxu0
    %4206 = vmatprep.mubr.f32.mxu0 0.0
    %v4207 = vand.u32 %v397, 4294901760
    %4208 = vmatmul.mubr.f32.gmra.mrb[0].mxu0 %v4207
    %v4209 = vpop.f32.mrb[0].mxu0
    %v4210 = vadd.f32 %v3663, %v4209
    %v4211 = vpop.f32.mrb[0].mxu0
    %4212 = vmatprep.mubr.f32.mxu0 0.0
    %v4213 = vand.u32 %v400, 4294901760
    %4214 = vmatmul.mubr.f32.gmra.mrb[0].mxu0 %v4213
    %v4215 = vpop.f32.mrb[0].mxu0
    %v4216 = vadd.f32 %v3669, %v4215
    %v4217 = vpop.f32.mrb[0].mxu0
    %4218 = vmatprep.mubr.f32.mxu0 0.0
    %v4219 = vand.u32 %v403, 4294901760
    %4220 = vmatmul.mubr.f32.gmra.mrb[0].mxu0 %v4219
    %v4221 = vpop.f32.mrb[0].mxu0
    %v4222 = vadd.f32 %v3675, %v4221
    %v4223 = vpop.f32.mrb[0].mxu0
    %4224 = vmatprep.mubr.f32.mxu0 0.0
    %v4225 = vand.u32 %v406, 4294901760
    %4226 = vmatmul.mubr.f32.gmra.mrb[0].mxu0 %v4225
    %v4227 = vpop.f32.mrb[0].mxu0
    %v4228 = vadd.f32 %v3681, %v4227
    %v4229 = vpop.f32.mrb[0].mxu0
    %4230 = vmatprep.mubr.f32.mxu0 0.0
    %v4231 = vand.u32 %v409, 4294901760
    %4232 = vmatmul.mubr.f32.gmra.mrb[0].mxu0 %v4231
    %v4233 = vpop.f32.mrb[0].mxu0
    %v4234 = vadd.f32 %v3687, %v4233
    %v4235 = vpop.f32.mrb[0].mxu0
    %4236 = vmatprep.mubr.f32.mxu0 0.0
    %v4237 = vand.u32 %v412, 4294901760
    %4238 = vmatmul.mubr.f32.gmra.mrb[0].mxu0 %v4237
    %v4239 = vpop.f32.mrb[0].mxu0
    %v4240 = vadd.f32 %v3693, %v4239
    %v4241 = vpop.f32.mrb[0].mxu0
    %4242 = vmatprep.mubr.f32.mxu0 0.0
    %v4243 = vand.u32 %v415, 4294901760
    %4244 = vmatmul.mubr.f32.gmra.mrb[0].mxu0 %v4243
    %v4245 = vpop.f32.mrb[0].mxu0
    %v4246 = vadd.f32 %v3699, %v4245
    %v4247 = vpop.f32.mrb[0].mxu0
    %4248 = vmatprep.mubr.f32.mxu0 0.0
    %v4249 = vand.u32 %v418, 4294901760
    %4250 = vmatmul.mubr.f32.gmra.mrb[0].mxu0 %v4249
    %v4251 = vpop.f32.mrb[0].mxu0
    %v4252 = vadd.f32 %v3705, %v4251
    %v4253 = vpop.f32.mrb[0].mxu0
    %4254 = vmatprep.mubr.f32.mxu0 0.0
    %v4255 = vand.u32 %v421, 4294901760
    %4256 = vmatmul.mubr.f32.gmra.mrb[0].mxu0 %v4255
    %v4257 = vpop.f32.mrb[0].mxu0
    %v4258 = vadd.f32 %v3711, %v4257
    %v4259 = vpop.f32.mrb[0].mxu0
    %4260 = vmatprep.mubr.f32.mxu0 0.0
    %v4261 = vand.u32 %v424, 4294901760
    %4262 = vmatmul.mubr.f32.gmra.mrb[0].mxu0 %v4261
    %v4263 = vpop.f32.mrb[0].mxu0
    %v4264 = vadd.f32 %v3717, %v4263
    %v4265 = vpop.f32.mrb[0].mxu0
    %4266 = vmatprep.mubr.f32.mxu0 0.0
    %v4267 = vand.u32 %v427, 4294901760
    %4268 = vmatmul.mubr.f32.gmra.mrb[0].mxu0 %v4267
    %v4269 = vpop.f32.mrb[0].mxu0
    %v4270 = vadd.f32 %v3723, %v4269
    %v4271 = vpop.f32.mrb[0].mxu0
    %4272 = vmatprep.mubr.f32.mxu0 0.0
    %v4273 = vand.u32 %v430, 4294901760
    %4274 = vmatmul.mubr.f32.gmra.mrb[0].mxu0 %v4273
    %v4275 = vpop.f32.mrb[0].mxu0
    %v4276 = vadd.f32 %v3729, %v4275
    %v4277 = vpop.f32.mrb[0].mxu0
    %4278 = vmatprep.mubr.f32.mxu0 0.0
    %v4279 = vand.u32 %v433, 4294901760
    %4280 = vmatmul.mubr.f32.gmra.mrb[0].mxu0 %v4279
    %v4281 = vpop.f32.mrb[0].mxu0
    %v4282 = vadd.f32 %v3735, %v4281
    %v4283 = vpop.f32.mrb[0].mxu0
    %4284 = vmatprep.mubr.f32.mxu0 0.0
    %v4285 = vand.u32 %v436, 4294901760
    %4286 = vmatmul.mubr.f32.gmra.mrb[0].mxu0 %v4285
    %v4287 = vpop.f32.mrb[0].mxu0
    %v4288 = vadd.f32 %v3741, %v4287
    %v4289 = vpop.f32.mrb[0].mxu0
    %4290 = vmatprep.mubr.f32.mxu0 0.0
    %v4291 = vand.u32 %v439, 4294901760
    %4292 = vmatmul.mubr.f32.gmra.mrb[0].mxu0 %v4291
    %v4293 = vpop.f32.mrb[0].mxu0
    %v4294 = vadd.f32 %v3747, %v4293
    %v4295 = vpop.f32.mrb[0].mxu0
    %4296 = vdwg.mxu0
    %v4297 = vmul.f32 %v3820, 0.0010283801
    %v4298 = vmul.f32 %v3832, 0.0010283801
    %v4299 = vmul.f32 %v3844, 0.0010283801
    %v4300 = vmul.f32 %v3856, 0.0010283801
    %v4301 = vmul.f32 %v3868, 0.0010283801
    %v4302 = vmul.f32 %v3880, 0.0010283801
    %v4303 = vmul.f32 %v3892, 0.0010283801
    %v4304 = vmul.f32 %v3904, 0.0010283801
    %v4305 = vmul.f32 %v3916, 0.0010283801
    %v4306 = vmul.f32 %v3928, 0.0010283801
    %v4307 = vmul.f32 %v3940, 0.0010283801
    %v4308 = vmul.f32 %v3952, 0.0010283801
    %v4309 = vmul.f32 %v3964, 0.0010283801
    %v4310 = vmul.f32 %v3976, 0.0010283801
    %v4311 = vmul.f32 %v3988, 0.0010283801
    %v4312 = vmul.f32 %v4000, 0.0010283801
    %v4313 = vmul.f32 %v4012, 0.0010283801
    %v4314 = vmul.f32 %v4024, 0.0010283801
    %v4315 = vmul.f32 %v4036, 0.0010283801
    %v4316 = vmul.f32 %v4048, 0.0010283801
    %v4317 = vmul.f32 %v4060, 0.0010283801
    %v4318 = vmul.f32 %v4072, 0.0010283801
    %v4319 = vmul.f32 %v4084, 0.0010283801
    %v4320 = vmul.f32 %v4096, 0.0010283801
    %v4321 = vmul.f32 %v4108, 0.0010283801
    %v4322 = vmul.f32 %v4120, 0.0010283801
    %v4323 = vmul.f32 %v4132, 0.0010283801
    %v4324 = vmul.f32 %v4144, 0.0010283801
    %v4325 = vmul.f32 %v4156, 0.0010283801
    %v4326 = vmul.f32 %v4168, 0.0010283801
    %v4327 = vmul.f32 %v4180, 0.0010283801
    %v4328 = vmul.f32 %v4192, 0.0010283801
    %v4329 = vmul.f32 %v4204, 0.0010283801
    %v4330 = vmul.f32 %v4216, 0.0010283801
    %v4331 = vmul.f32 %v4228, 0.0010283801
    %v4332 = vmul.f32 %v4240, 0.0010283801
    %v4333 = vmul.f32 %v4252, 0.0010283801
    %v4334 = vmul.f32 %v4264, 0.0010283801
    %v4335 = vmul.f32 %v4276, 0.0010283801
    %v4336 = vmul.f32 %v4288, 0.0010283801
    %v4337 = vmul.f32 %v3820, 0.007598758
    %v4338 = vmul.f32 %v3832, 0.007598758
    %v4339 = vmul.f32 %v3844, 0.007598758
    %v4340 = vmul.f32 %v3856, 0.007598758
    %v4341 = vmul.f32 %v3868, 0.007598758
    %v4342 = vmul.f32 %v3880, 0.007598758
    %v4343 = vmul.f32 %v3892, 0.007598758
    %v4344 = vmul.f32 %v3904, 0.007598758
    %v4345 = vmul.f32 %v3916, 0.007598758
    %v4346 = vmul.f32 %v3928, 0.007598758
    %v4347 = vmul.f32 %v3940, 0.007598758
    %v4348 = vmul.f32 %v3952, 0.007598758
    %v4349 = vmul.f32 %v3964, 0.007598758
    %v4350 = vmul.f32 %v3976, 0.007598758
    %v4351 = vmul.f32 %v3988, 0.007598758
    %v4352 = vmul.f32 %v4000, 0.007598758
    %v4353 = vmul.f32 %v4012, 0.007598758
    %v4354 = vmul.f32 %v4024, 0.007598758
    %v4355 = vmul.f32 %v4036, 0.007598758
    %v4356 = vmul.f32 %v4048, 0.007598758
    %v4357 = vmul.f32 %v4060, 0.007598758
    %v4358 = vmul.f32 %v4072, 0.007598758
    %v4359 = vmul.f32 %v4084, 0.007598758
    %v4360 = vmul.f32 %v4096, 0.007598758
    %v4361 = vmul.f32 %v4108, 0.007598758
    %v4362 = vmul.f32 %v4120, 0.007598758
    %v4363 = vmul.f32 %v4132, 0.007598758
    %v4364 = vmul.f32 %v4144, 0.007598758
    %v4365 = vmul.f32 %v4156, 0.007598758
    %v4366 = vmul.f32 %v4168, 0.007598758
    %v4367 = vmul.f32 %v4180, 0.007598758
    %v4368 = vmul.f32 %v4192, 0.007598758
    %v4369 = vmul.f32 %v4204, 0.007598758
    %v4370 = vmul.f32 %v4216, 0.007598758
    %v4371 = vmul.f32 %v4228, 0.007598758
    %v4372 = vmul.f32 %v4240, 0.007598758
    %v4373 = vmul.f32 %v4252, 0.007598758
    %v4374 = vmul.f32 %v4264, 0.007598758
    %v4375 = vmul.f32 %v4276, 0.007598758
    %v4376 = vmul.f32 %v4288, 0.007598758
    %v4417 = vrot.slane %v4337, 1
    %v4418 = vrot.slane %v4338, 1
    %v4419 = vrot.slane %v4339, 1
    %v4420 = vrot.slane %v4340, 1
    %v4421 = vrot.slane %v4341, 1
    %v4422 = vrot.slane %v4342, 1
    %v4423 = vrot.slane %v4343, 1
    %v4424 = vrot.slane %v4344, 1
    %v4425 = vrot.slane %v4345, 1
    %v4426 = vrot.slane %v4346, 1
    %v4427 = vrot.slane %v4347, 1
    %v4428 = vrot.slane %v4348, 1
    %v4429 = vrot.slane %v4349, 1
    %v4430 = vrot.slane %v4350, 1
    %v4431 = vrot.slane %v4351, 1
    %v4432 = vrot.slane %v4352, 1
    %v4433 = vrot.slane %v4353, 1
    %v4434 = vrot.slane %v4354, 1
    %v4435 = vrot.slane %v4355, 1
    %v4436 = vrot.slane %v4356, 1
    %v4437 = vrot.slane %v4357, 1
    %v4438 = vrot.slane %v4358, 1
    %v4439 = vrot.slane %v4359, 1
    %v4440 = vrot.slane %v4360, 1
    %v4441 = vrot.slane %v4361, 1
    %v4442 = vrot.slane %v4362, 1
    %v4443 = vrot.slane %v4363, 1
    %v4444 = vrot.slane %v4364, 1
    %v4445 = vrot.slane %v4365, 1
    %v4446 = vrot.slane %v4366, 1
    %v4447 = vrot.slane %v4367, 1
    %v4448 = vrot.slane %v4368, 1
    %v4449 = vrot.slane %v4369, 1
    %v4450 = vrot.slane %v4370, 1
    %v4451 = vrot.slane %v4371, 1
    %v4452 = vrot.slane %v4372, 1
    %v4453 = vrot.slane %v4373, 1
    %v4454 = vrot.slane %v4374, 1
    %v4455 = vrot.slane %v4375, 1
    %v4456 = vrot.slane %v4376, 1
    %v4497 = vadd.f32 %v4297, %v4417
    %v4498 = vadd.f32 %v4298, %v4418
    %v4499 = vadd.f32 %v4299, %v4419
    %v4500 = vadd.f32 %v4300, %v4420
    %v4501 = vadd.f32 %v4301, %v4421
    %v4502 = vadd.f32 %v4302, %v4422
    %v4503 = vadd.f32 %v4303, %v4423
    %v4504 = vadd.f32 %v4304, %v4424
    %v4505 = vadd.f32 %v4305, %v4425
    %v4506 = vadd.f32 %v4306, %v4426
    %v4507 = vadd.f32 %v4307, %v4427
    %v4508 = vadd.f32 %v4308, %v4428
    %v4509 = vadd.f32 %v4309, %v4429
    %v4510 = vadd.f32 %v4310, %v4430
    %v4511 = vadd.f32 %v4311, %v4431
    %v4512 = vadd.f32 %v4312, %v4432
    %v4513 = vadd.f32 %v4313, %v4433
    %v4514 = vadd.f32 %v4314, %v4434
    %v4515 = vadd.f32 %v4315, %v4435
    %v4516 = vadd.f32 %v4316, %v4436
    %v4517 = vadd.f32 %v4317, %v4437
    %v4518 = vadd.f32 %v4318, %v4438
    %v4519 = vadd.f32 %v4319, %v4439
    %v4520 = vadd.f32 %v4320, %v4440
    %v4521 = vadd.f32 %v4321, %v4441
    %v4522 = vadd.f32 %v4322, %v4442
    %v4523 = vadd.f32 %v4323, %v4443
    %v4524 = vadd.f32 %v4324, %v4444
    %v4525 = vadd.f32 %v4325, %v4445
    %v4526 = vadd.f32 %v4326, %v4446
    %v4527 = vadd.f32 %v4327, %v4447
    %v4528 = vadd.f32 %v4328, %v4448
    %v4529 = vadd.f32 %v4329, %v4449
    %v4530 = vadd.f32 %v4330, %v4450
    %v4531 = vadd.f32 %v4331, %v4451
    %v4532 = vadd.f32 %v4332, %v4452
    %v4533 = vadd.f32 %v4333, %v4453
    %v4534 = vadd.f32 %v4334, %v4454
    %v4535 = vadd.f32 %v4335, %v4455
    %v4536 = vadd.f32 %v4336, %v4456
    %v4537 = vmul.f32 %v3820, 0.036000773
    %v4538 = vmul.f32 %v3832, 0.036000773
    %v4539 = vmul.f32 %v3844, 0.036000773
    %v4540 = vmul.f32 %v3856, 0.036000773
    %v4541 = vmul.f32 %v3868, 0.036000773
    %v4542 = vmul.f32 %v3880, 0.036000773
    %v4543 = vmul.f32 %v3892, 0.036000773
    %v4544 = vmul.f32 %v3904, 0.036000773
    %v4545 = vmul.f32 %v3916, 0.036000773
    %v4546 = vmul.f32 %v3928, 0.036000773
    %v4547 = vmul.f32 %v3940, 0.036000773
    %v4548 = vmul.f32 %v3952, 0.036000773
    %v4549 = vmul.f32 %v3964, 0.036000773
    %v4550 = vmul.f32 %v3976, 0.036000773
    %v4551 = vmul.f32 %v3988, 0.036000773
    %v4552 = vmul.f32 %v4000, 0.036000773
    %v4553 = vmul.f32 %v4012, 0.036000773
    %v4554 = vmul.f32 %v4024, 0.036000773
    %v4555 = vmul.f32 %v4036, 0.036000773
    %v4556 = vmul.f32 %v4048, 0.036000773
    %v4557 = vmul.f32 %v4060, 0.036000773
    %v4558 = vmul.f32 %v4072, 0.036000773
    %v4559 = vmul.f32 %v4084, 0.036000773
    %v4560 = vmul.f32 %v4096, 0.036000773
    %v4561 = vmul.f32 %v4108, 0.036000773
    %v4562 = vmul.f32 %v4120, 0.036000773
    %v4563 = vmul.f32 %v4132, 0.036000773
    %v4564 = vmul.f32 %v4144, 0.036000773
    %v4565 = vmul.f32 %v4156, 0.036000773
    %v4566 = vmul.f32 %v4168, 0.036000773
    %v4567 = vmul.f32 %v4180, 0.036000773
    %v4568 = vmul.f32 %v4192, 0.036000773
    %v4569 = vmul.f32 %v4204, 0.036000773
    %v4570 = vmul.f32 %v4216, 0.036000773
    %v4571 = vmul.f32 %v4228, 0.036000773
    %v4572 = vmul.f32 %v4240, 0.036000773
    %v4573 = vmul.f32 %v4252, 0.036000773
    %v4574 = vmul.f32 %v4264, 0.036000773
    %v4575 = vmul.f32 %v4276, 0.036000773
    %v4576 = vmul.f32 %v4288, 0.036000773
    %v4617 = vrot.slane %v4537, 2
    %v4618 = vrot.slane %v4538, 2
    %v4619 = vrot.slane %v4539, 2
    %v4620 = vrot.slane %v4540, 2
    %v4621 = vrot.slane %v4541, 2
    %v4622 = vrot.slane %v4542, 2
    %v4623 = vrot.slane %v4543, 2
    %v4624 = vrot.slane %v4544, 2
    %v4625 = vrot.slane %v4545, 2
    %v4626 = vrot.slane %v4546, 2
    %v4627 = vrot.slane %v4547, 2
    %v4628 = vrot.slane %v4548, 2
    %v4629 = vrot.slane %v4549, 2
    %v4630 = vrot.slane %v4550, 2
    %v4631 = vrot.slane %v4551, 2
    %v4632 = vrot.slane %v4552, 2
    %v4633 = vrot.slane %v4553, 2
    %v4634 = vrot.slane %v4554, 2
    %v4635 = vrot.slane %v4555, 2
    %v4636 = vrot.slane %v4556, 2
    %v4637 = vrot.slane %v4557, 2
    %v4638 = vrot.slane %v4558, 2
    %v4639 = vrot.slane %v4559, 2
    %v4640 = vrot.slane %v4560, 2
    %v4641 = vrot.slane %v4561, 2
    %v4642 = vrot.slane %v4562, 2
    %v4643 = vrot.slane %v4563, 2
    %v4644 = vrot.slane %v4564, 2
    %v4645 = vrot.slane %v4565, 2
    %v4646 = vrot.slane %v4566, 2
    %v4647 = vrot.slane %v4567, 2
    %v4648 = vrot.slane %v4568, 2
    %v4649 = vrot.slane %v4569, 2
    %v4650 = vrot.slane %v4570, 2
    %v4651 = vrot.slane %v4571, 2
    %v4652 = vrot.slane %v4572, 2
    %v4653 = vrot.slane %v4573, 2
    %v4654 = vrot.slane %v4574, 2
    %v4655 = vrot.slane %v4575, 2
    %v4656 = vrot.slane %v4576, 2
    %v4697 = vadd.f32 %v4497, %v4617
    %v4698 = vadd.f32 %v4498, %v4618
    %v4699 = vadd.f32 %v4499, %v4619
    %v4700 = vadd.f32 %v4500, %v4620
    %v4701 = vadd.f32 %v4501, %v4621
    %v4702 = vadd.f32 %v4502, %v4622
    %v4703 = vadd.f32 %v4503, %v4623
    %v4704 = vadd.f32 %v4504, %v4624
    %v4705 = vadd.f32 %v4505, %v4625
    %v4706 = vadd.f32 %v4506, %v4626
    %v4707 = vadd.f32 %v4507, %v4627
    %v4708 = vadd.f32 %v4508, %v4628
    %v4709 = vadd.f32 %v4509, %v4629
    %v4710 = vadd.f32 %v4510, %v4630
    %v4711 = vadd.f32 %v4511, %v4631
    %v4712 = vadd.f32 %v4512, %v4632
    %v4713 = vadd.f32 %v4513, %v4633
    %v4714 = vadd.f32 %v4514, %v4634
    %v4715 = vadd.f32 %v4515, %v4635
    %v4716 = vadd.f32 %v4516, %v4636
    %v4717 = vadd.f32 %v4517, %v4637
    %v4718 = vadd.f32 %v4518, %v4638
    %v4719 = vadd.f32 %v4519, %v4639
    %v4720 = vadd.f32 %v4520, %v4640
    %v4721 = vadd.f32 %v4521, %v4641
    %v4722 = vadd.f32 %v4522, %v4642
    %v4723 = vadd.f32 %v4523, %v4643
    %v4724 = vadd.f32 %v4524, %v4644
    %v4725 = vadd.f32 %v4525, %v4645
    %v4726 = vadd.f32 %v4526, %v4646
    %v4727 = vadd.f32 %v4527, %v4647
    %v4728 = vadd.f32 %v4528, %v4648
    %v4729 = vadd.f32 %v4529, %v4649
    %v4730 = vadd.f32 %v4530, %v4650
    %v4731 = vadd.f32 %v4531, %v4651
    %v4732 = vadd.f32 %v4532, %v4652
    %v4733 = vadd.f32 %v4533, %v4653
    %v4734 = vadd.f32 %v4534, %v4654
    %v4735 = vadd.f32 %v4535, %v4655
    %v4736 = vadd.f32 %v4536, %v4656
    %v4737 = vmul.f32 %v3820, 0.10936069
    %v4738 = vmul.f32 %v3826, 0.10936069
    %v4739 = vmul.f32 %v3832, 0.10936069
    %v4740 = vmul.f32 %v3838, 0.10936069
    %v4741 = vmul.f32 %v3844, 0.10936069
    %v4742 = vmul.f32 %v3850, 0.10936069
    %v4743 = vmul.f32 %v3856, 0.10936069
    %v4744 = vmul.f32 %v3862, 0.10936069
    %v4745 = vmul.f32 %v3868, 0.10936069
    %v4746 = vmul.f32 %v3874, 0.10936069
    %v4747 = vmul.f32 %v3880, 0.10936069
    %v4748 = vmul.f32 %v3886, 0.10936069
    %v4749 = vmul.f32 %v3892, 0.10936069
    %v4750 = vmul.f32 %v3898, 0.10936069
    %v4751 = vmul.f32 %v3904, 0.10936069
    %v4752 = vmul.f32 %v3910, 0.10936069
    %v4753 = vmul.f32 %v3916, 0.10936069
    %v4754 = vmul.f32 %v3922, 0.10936069
    %v4755 = vmul.f32 %v3928, 0.10936069
    %v4756 = vmul.f32 %v3934, 0.10936069
    %v4757 = vmul.f32 %v3940, 0.10936069
    %v4758 = vmul.f32 %v3946, 0.10936069
    %v4759 = vmul.f32 %v3952, 0.10936069
    %v4760 = vmul.f32 %v3958, 0.10936069
    %v4761 = vmul.f32 %v3964, 0.10936069
    %v4762 = vmul.f32 %v3970, 0.10936069
    %v4763 = vmul.f32 %v3976, 0.10936069
    %v4764 = vmul.f32 %v3982, 0.10936069
    %v4765 = vmul.f32 %v3988, 0.10936069
    %v4766 = vmul.f32 %v3994, 0.10936069
    %v4767 = vmul.f32 %v4000, 0.10936069
    %v4768 = vmul.f32 %v4006, 0.10936069
    %v4769 = vmul.f32 %v4012, 0.10936069
    %v4770 = vmul.f32 %v4018, 0.10936069
    %v4771 = vmul.f32 %v4024, 0.10936069
    %v4772 = vmul.f32 %v4030, 0.10936069
    %v4773 = vmul.f32 %v4036, 0.10936069
    %v4774 = vmul.f32 %v4042, 0.10936069
    %v4775 = vmul.f32 %v4048, 0.10936069
    %v4776 = vmul.f32 %v4054, 0.10936069
    %v4777 = vmul.f32 %v4060, 0.10936069
    %v4778 = vmul.f32 %v4066, 0.10936069
    %v4779 = vmul.f32 %v4072, 0.10936069
    %v4780 = vmul.f32 %v4078, 0.10936069
    %v4781 = vmul.f32 %v4084, 0.10936069
    %v4782 = vmul.f32 %v4090, 0.10936069
    %v4783 = vmul.f32 %v4096, 0.10936069
    %v4784 = vmul.f32 %v4102, 0.10936069
    %v4785 = vmul.f32 %v4108, 0.10936069
    %v4786 = vmul.f32 %v4114, 0.10936069
    %v4787 = vmul.f32 %v4120, 0.10936069
    %v4788 = vmul.f32 %v4126, 0.10936069
    %v4789 = vmul.f32 %v4132, 0.10936069
    %v4790 = vmul.f32 %v4138, 0.10936069
    %v4791 = vmul.f32 %v4144, 0.10936069
    %v4792 = vmul.f32 %v4150, 0.10936069
    %v4793 = vmul.f32 %v4156, 0.10936069
    %v4794 = vmul.f32 %v4162, 0.10936069
    %v4795 = vmul.f32 %v4168, 0.10936069
    %v4796 = vmul.f32 %v4174, 0.10936069
    %v4797 = vmul.f32 %v4180, 0.10936069
    %v4798 = vmul.f32 %v4186, 0.10936069
    %v4799 = vmul.f32 %v4192, 0.10936069
    %v4800 = vmul.f32 %v4198, 0.10936069
    %v4801 = vmul.f32 %v4204, 0.10936069
    %v4802 = vmul.f32 %v4210, 0.10936069
    %v4803 = vmul.f32 %v4216, 0.10936069
    %v4804 = vmul.f32 %v4222, 0.10936069
    %v4805 = vmul.f32 %v4228, 0.10936069
    %v4806 = vmul.f32 %v4234, 0.10936069
    %v4807 = vmul.f32 %v4240, 0.10936069
    %v4808 = vmul.f32 %v4246, 0.10936069
    %v4809 = vmul.f32 %v4252, 0.10936069
    %v4810 = vmul.f32 %v4258, 0.10936069
    %v4811 = vmul.f32 %v4264, 0.10936069
    %v4812 = vmul.f32 %v4270, 0.10936069
    %v4813 = vmul.f32 %v4276, 0.10936069
    %v4814 = vmul.f32 %v4282, 0.10936069
    %v4815 = vmul.f32 %v4288, 0.10936069
    %v4816 = vmul.f32 %v4294, 0.10936069
    %vm4897 = vcmask 1044480
    %v4898 = vrot.slane %v4737, 3
    %v4899 = vrot.slane %v4738, 3
    %v4900 = vsel %vm4897, %v4898, %v4899
    %v4901 = vrot.slane %v4739, 3
    %v4902 = vrot.slane %v4740, 3
    %v4903 = vsel %vm4897, %v4901, %v4902
    %v4904 = vrot.slane %v4741, 3
    %v4905 = vrot.slane %v4742, 3
    %v4906 = vsel %vm4897, %v4904, %v4905
    %v4907 = vrot.slane %v4743, 3
    %v4908 = vrot.slane %v4744, 3
    %v4909 = vsel %vm4897, %v4907, %v4908
    %v4910 = vrot.slane %v4745, 3
    %v4911 = vrot.slane %v4746, 3
    %v4912 = vsel %vm4897, %v4910, %v4911
    %v4913 = vrot.slane %v4747, 3
    %v4914 = vrot.slane %v4748, 3
    %v4915 = vsel %vm4897, %v4913, %v4914
    %v4916 = vrot.slane %v4749, 3
    %v4917 = vrot.slane %v4750, 3
    %v4918 = vsel %vm4897, %v4916, %v4917
    %v4919 = vrot.slane %v4751, 3
    %v4920 = vrot.slane %v4752, 3
    %v4921 = vsel %vm4897, %v4919, %v4920
    %v4922 = vrot.slane %v4753, 3
    %v4923 = vrot.slane %v4754, 3
    %v4924 = vsel %vm4897, %v4922, %v4923
    %v4925 = vrot.slane %v4755, 3
    %v4926 = vrot.slane %v4756, 3
    %v4927 = vsel %vm4897, %v4925, %v4926
    %v4928 = vrot.slane %v4757, 3
    %v4929 = vrot.slane %v4758, 3
    %v4930 = vsel %vm4897, %v4928, %v4929
    %v4931 = vrot.slane %v4759, 3
    %v4932 = vrot.slane %v4760, 3
    %v4933 = vsel %vm4897, %v4931, %v4932
    %v4934 = vrot.slane %v4761, 3
    %v4935 = vrot.slane %v4762, 3
    %v4936 = vsel %vm4897, %v4934, %v4935
    %v4937 = vrot.slane %v4763, 3
    %v4938 = vrot.slane %v4764, 3
    %v4939 = vsel %vm4897, %v4937, %v4938
    %v4940 = vrot.slane %v4765, 3
    %v4941 = vrot.slane %v4766, 3
    %v4942 = vsel %vm4897, %v4940, %v4941
    %v4943 = vrot.slane %v4767, 3
    %v4944 = vrot.slane %v4768, 3
    %v4945 = vsel %vm4897, %v4943, %v4944
    %v4946 = vrot.slane %v4769, 3
    %v4947 = vrot.slane %v4770, 3
    %v4948 = vsel %vm4897, %v4946, %v4947
    %v4949 = vrot.slane %v4771, 3
    %v4950 = vrot.slane %v4772, 3
    %v4951 = vsel %vm4897, %v4949, %v4950
    %v4952 = vrot.slane %v4773, 3
    %v4953 = vrot.slane %v4774, 3
    %v4954 = vsel %vm4897, %v4952, %v4953
    %v4955 = vrot.slane %v4775, 3
    %v4956 = vrot.slane %v4776, 3
    %v4957 = vsel %vm4897, %v4955, %v4956
    %v4958 = vrot.slane %v4777, 3
    %v4959 = vrot.slane %v4778, 3
    %v4960 = vsel %vm4897, %v4958, %v4959
    %v4961 = vrot.slane %v4779, 3
    %v4962 = vrot.slane %v4780, 3
    %v4963 = vsel %vm4897, %v4961, %v4962
    %v4964 = vrot.slane %v4781, 3
    %v4965 = vrot.slane %v4782, 3
    %v4966 = vsel %vm4897, %v4964, %v4965
    %v4967 = vrot.slane %v4783, 3
    %v4968 = vrot.slane %v4784, 3
    %v4969 = vsel %vm4897, %v4967, %v4968
    %v4970 = vrot.slane %v4785, 3
    %v4971 = vrot.slane %v4786, 3
    %v4972 = vsel %vm4897, %v4970, %v4971
    %v4973 = vrot.slane %v4787, 3
    %v4974 = vrot.slane %v4788, 3
    %v4975 = vsel %vm4897, %v4973, %v4974
    %v4976 = vrot.slane %v4789, 3
    %v4977 = vrot.slane %v4790, 3
    %v4978 = vsel %vm4897, %v4976, %v4977
    %v4979 = vrot.slane %v4791, 3
    %v4980 = vrot.slane %v4792, 3
    %v4981 = vsel %vm4897, %v4979, %v4980
    %v4982 = vrot.slane %v4793, 3
    %v4983 = vrot.slane %v4794, 3
    %v4984 = vsel %vm4897, %v4982, %v4983
    %v4985 = vrot.slane %v4795, 3
    %v4986 = vrot.slane %v4796, 3
    %v4987 = vsel %vm4897, %v4985, %v4986
    %v4988 = vrot.slane %v4797, 3
    %v4989 = vrot.slane %v4798, 3
    %v4990 = vsel %vm4897, %v4988, %v4989
    %v4991 = vrot.slane %v4799, 3
    %v4992 = vrot.slane %v4800, 3
    %v4993 = vsel %vm4897, %v4991, %v4992
    %v4994 = vrot.slane %v4801, 3
    %v4995 = vrot.slane %v4802, 3
    %v4996 = vsel %vm4897, %v4994, %v4995
    %v4997 = vrot.slane %v4803, 3
    %v4998 = vrot.slane %v4804, 3
    %v4999 = vsel %vm4897, %v4997, %v4998
    %v5000 = vrot.slane %v4805, 3
    %v5001 = vrot.slane %v4806, 3
    %v5002 = vsel %vm4897, %v5000, %v5001
    %v5003 = vrot.slane %v4807, 3
    %v5004 = vrot.slane %v4808, 3
    %v5005 = vsel %vm4897, %v5003, %v5004
    %v5006 = vrot.slane %v4809, 3
    %v5007 = vrot.slane %v4810, 3
    %v5008 = vsel %vm4897, %v5006, %v5007
    %v5009 = vrot.slane %v4811, 3
    %v5010 = vrot.slane %v4812, 3
    %v5011 = vsel %vm4897, %v5009, %v5010
    %v5012 = vrot.slane %v4813, 3
    %v5013 = vrot.slane %v4814, 3
    %v5014 = vsel %vm4897, %v5012, %v5013
    %v5015 = vrot.slane %v4815, 3
    %v5016 = vrot.slane %v4816, 3
    %v5017 = vsel %vm4897, %v5015, %v5016
    %v5058 = vadd.f32 %v4697, %v4900
    %v5059 = vadd.f32 %v4698, %v4903
    %v5060 = vadd.f32 %v4699, %v4906
    %v5061 = vadd.f32 %v4700, %v4909
    %v5062 = vadd.f32 %v4701, %v4912
    %v5063 = vadd.f32 %v4702, %v4915
    %v5064 = vadd.f32 %v4703, %v4918
    %v5065 = vadd.f32 %v4704, %v4921
    %v5066 = vadd.f32 %v4705, %v4924
    %v5067 = vadd.f32 %v4706, %v4927
    %v5068 = vadd.f32 %v4707, %v4930
    %v5069 = vadd.f32 %v4708, %v4933
    %v5070 = vadd.f32 %v4709, %v4936
    %v5071 = vadd.f32 %v4710, %v4939
    %v5072 = vadd.f32 %v4711, %v4942
    %v5073 = vadd.f32 %v4712, %v4945
    %v5074 = vadd.f32 %v4713, %v4948
    %v5075 = vadd.f32 %v4714, %v4951
    %v5076 = vadd.f32 %v4715, %v4954
    %v5077 = vadd.f32 %v4716, %v4957
    %v5078 = vadd.f32 %v4717, %v4960
    %v5079 = vadd.f32 %v4718, %v4963
    %v5080 = vadd.f32 %v4719, %v4966
    %v5081 = vadd.f32 %v4720, %v4969
    %v5082 = vadd.f32 %v4721, %v4972
    %v5083 = vadd.f32 %v4722, %v4975
    %v5084 = vadd.f32 %v4723, %v4978
    %v5085 = vadd.f32 %v4724, %v4981
    %v5086 = vadd.f32 %v4725, %v4984
    %v5087 = vadd.f32 %v4726, %v4987
    %v5088 = vadd.f32 %v4727, %v4990
    %v5089 = vadd.f32 %v4728, %v4993
    %v5090 = vadd.f32 %v4729, %v4996
    %v5091 = vadd.f32 %v4730, %v4999
    %v5092 = vadd.f32 %v4731, %v5002
    %v5093 = vadd.f32 %v4732, %v5005
    %v5094 = vadd.f32 %v4733, %v5008
    %v5095 = vadd.f32 %v4734, %v5011
    %v5096 = vadd.f32 %v4735, %v5014
    %v5097 = vadd.f32 %v4736, %v5017
    %v5098 = vmul.f32 %v3820, 0.21300554
    %v5099 = vmul.f32 %v3826, 0.21300554
    %v5100 = vmul.f32 %v3832, 0.21300554
    %v5101 = vmul.f32 %v3838, 0.21300554
    %v5102 = vmul.f32 %v3844, 0.21300554
    %v5103 = vmul.f32 %v3850, 0.21300554
    %v5104 = vmul.f32 %v3856, 0.21300554
    %v5105 = vmul.f32 %v3862, 0.21300554
    %v5106 = vmul.f32 %v3868, 0.21300554
    %v5107 = vmul.f32 %v3874, 0.21300554
    %v5108 = vmul.f32 %v3880, 0.21300554
    %v5109 = vmul.f32 %v3886, 0.21300554
    %v5110 = vmul.f32 %v3892, 0.21300554
    %v5111 = vmul.f32 %v3898, 0.21300554
    %v5112 = vmul.f32 %v3904, 0.21300554
    %v5113 = vmul.f32 %v3910, 0.21300554
    %v5114 = vmul.f32 %v3916, 0.21300554
    %v5115 = vmul.f32 %v3922, 0.21300554
    %v5116 = vmul.f32 %v3928, 0.21300554
    %v5117 = vmul.f32 %v3934, 0.21300554
    %v5118 = vmul.f32 %v3940, 0.21300554
    %v5119 = vmul.f32 %v3946, 0.21300554
    %v5120 = vmul.f32 %v3952, 0.21300554
    %v5121 = vmul.f32 %v3958, 0.21300554
    %v5122 = vmul.f32 %v3964, 0.21300554
    %v5123 = vmul.f32 %v3970, 0.21300554
    %v5124 = vmul.f32 %v3976, 0.21300554
    %v5125 = vmul.f32 %v3982, 0.21300554
    %v5126 = vmul.f32 %v3988, 0.21300554
    %v5127 = vmul.f32 %v3994, 0.21300554
    %v5128 = vmul.f32 %v4000, 0.21300554
    %v5129 = vmul.f32 %v4006, 0.21300554
    %v5130 = vmul.f32 %v4012, 0.21300554
    %v5131 = vmul.f32 %v4018, 0.21300554
    %v5132 = vmul.f32 %v4024, 0.21300554
    %v5133 = vmul.f32 %v4030, 0.21300554
    %v5134 = vmul.f32 %v4036, 0.21300554
    %v5135 = vmul.f32 %v4042, 0.21300554
    %v5136 = vmul.f32 %v4048, 0.21300554
    %v5137 = vmul.f32 %v4054, 0.21300554
    %v5138 = vmul.f32 %v4060, 0.21300554
    %v5139 = vmul.f32 %v4066, 0.21300554
    %v5140 = vmul.f32 %v4072, 0.21300554
    %v5141 = vmul.f32 %v4078, 0.21300554
    %v5142 = vmul.f32 %v4084, 0.21300554
    %v5143 = vmul.f32 %v4090, 0.21300554
    %v5144 = vmul.f32 %v4096, 0.21300554
    %v5145 = vmul.f32 %v4102, 0.21300554
    %v5146 = vmul.f32 %v4108, 0.21300554
    %v5147 = vmul.f32 %v4114, 0.21300554
    %v5148 = vmul.f32 %v4120, 0.21300554
    %v5149 = vmul.f32 %v4126, 0.21300554
    %v5150 = vmul.f32 %v4132, 0.21300554
    %v5151 = vmul.f32 %v4138, 0.21300554
    %v5152 = vmul.f32 %v4144, 0.21300554
    %v5153 = vmul.f32 %v4150, 0.21300554
    %v5154 = vmul.f32 %v4156, 0.21300554
    %v5155 = vmul.f32 %v4162, 0.21300554
    %v5156 = vmul.f32 %v4168, 0.21300554
    %v5157 = vmul.f32 %v4174, 0.21300554
    %v5158 = vmul.f32 %v4180, 0.21300554
    %v5159 = vmul.f32 %v4186, 0.21300554
    %v5160 = vmul.f32 %v4192, 0.21300554
    %v5161 = vmul.f32 %v4198, 0.21300554
    %v5162 = vmul.f32 %v4204, 0.21300554
    %v5163 = vmul.f32 %v4210, 0.21300554
    %v5164 = vmul.f32 %v4216, 0.21300554
    %v5165 = vmul.f32 %v4222, 0.21300554
    %v5166 = vmul.f32 %v4228, 0.21300554
    %v5167 = vmul.f32 %v4234, 0.21300554
    %v5168 = vmul.f32 %v4240, 0.21300554
    %v5169 = vmul.f32 %v4246, 0.21300554
    %v5170 = vmul.f32 %v4252, 0.21300554
    %v5171 = vmul.f32 %v4258, 0.21300554
    %v5172 = vmul.f32 %v4264, 0.21300554
    %v5173 = vmul.f32 %v4270, 0.21300554
    %v5174 = vmul.f32 %v4276, 0.21300554
    %v5175 = vmul.f32 %v4282, 0.21300554
    %v5176 = vmul.f32 %v4288, 0.21300554
    %v5177 = vmul.f32 %v4294, 0.21300554
    %vm5258 = vcmask 1043456
    %v5259 = vrot.slane %v5098, 4
    %v5260 = vrot.slane %v5099, 4
    %v5261 = vsel %vm5258, %v5259, %v5260
    %v5262 = vrot.slane %v5100, 4
    %v5263 = vrot.slane %v5101, 4
    %v5264 = vsel %vm5258, %v5262, %v5263
    %v5265 = vrot.slane %v5102, 4
    %v5266 = vrot.slane %v5103, 4
    %v5267 = vsel %vm5258, %v5265, %v5266
    %v5268 = vrot.slane %v5104, 4
    %v5269 = vrot.slane %v5105, 4
    %v5270 = vsel %vm5258, %v5268, %v5269
    %v5271 = vrot.slane %v5106, 4
    %v5272 = vrot.slane %v5107, 4
    %v5273 = vsel %vm5258, %v5271, %v5272
    %v5274 = vrot.slane %v5108, 4
    %v5275 = vrot.slane %v5109, 4
    %v5276 = vsel %vm5258, %v5274, %v5275
    %v5277 = vrot.slane %v5110, 4
    %v5278 = vrot.slane %v5111, 4
    %v5279 = vsel %vm5258, %v5277, %v5278
    %v5280 = vrot.slane %v5112, 4
    %v5281 = vrot.slane %v5113, 4
    %v5282 = vsel %vm5258, %v5280, %v5281
    %v5283 = vrot.slane %v5114, 4
    %v5284 = vrot.slane %v5115, 4
    %v5285 = vsel %vm5258, %v5283, %v5284
    %v5286 = vrot.slane %v5116, 4
    %v5287 = vrot.slane %v5117, 4
    %v5288 = vsel %vm5258, %v5286, %v5287
    %v5289 = vrot.slane %v5118, 4
    %v5290 = vrot.slane %v5119, 4
    %v5291 = vsel %vm5258, %v5289, %v5290
    %v5292 = vrot.slane %v5120, 4
    %v5293 = vrot.slane %v5121, 4
    %v5294 = vsel %vm5258, %v5292, %v5293
    %v5295 = vrot.slane %v5122, 4
    %v5296 = vrot.slane %v5123, 4
    %v5297 = vsel %vm5258, %v5295, %v5296
    %v5298 = vrot.slane %v5124, 4
    %v5299 = vrot.slane %v5125, 4
    %v5300 = vsel %vm5258, %v5298, %v5299
    %v5301 = vrot.slane %v5126, 4
    %v5302 = vrot.slane %v5127, 4
    %v5303 = vsel %vm5258, %v5301, %v5302
    %v5304 = vrot.slane %v5128, 4
    %v5305 = vrot.slane %v5129, 4
    %v5306 = vsel %vm5258, %v5304, %v5305
    %v5307 = vrot.slane %v5130, 4
    %v5308 = vrot.slane %v5131, 4
    %v5309 = vsel %vm5258, %v5307, %v5308
    %v5310 = vrot.slane %v5132, 4
    %v5311 = vrot.slane %v5133, 4
    %v5312 = vsel %vm5258, %v5310, %v5311
    %v5313 = vrot.slane %v5134, 4
    %v5314 = vrot.slane %v5135, 4
    %v5315 = vsel %vm5258, %v5313, %v5314
    %v5316 = vrot.slane %v5136, 4
    %v5317 = vrot.slane %v5137, 4
    %v5318 = vsel %vm5258, %v5316, %v5317
    %v5319 = vrot.slane %v5138, 4
    %v5320 = vrot.slane %v5139, 4
    %v5321 = vsel %vm5258, %v5319, %v5320
    %v5322 = vrot.slane %v5140, 4
    %v5323 = vrot.slane %v5141, 4
    %v5324 = vsel %vm5258, %v5322, %v5323
    %v5325 = vrot.slane %v5142, 4
    %v5326 = vrot.slane %v5143, 4
    %v5327 = vsel %vm5258, %v5325, %v5326
    %v5328 = vrot.slane %v5144, 4
    %v5329 = vrot.slane %v5145, 4
    %v5330 = vsel %vm5258, %v5328, %v5329
    %v5331 = vrot.slane %v5146, 4
    %v5332 = vrot.slane %v5147, 4
    %v5333 = vsel %vm5258, %v5331, %v5332
    %v5334 = vrot.slane %v5148, 4
    %v5335 = vrot.slane %v5149, 4
    %v5336 = vsel %vm5258, %v5334, %v5335
    %v5337 = vrot.slane %v5150, 4
    %v5338 = vrot.slane %v5151, 4
    %v5339 = vsel %vm5258, %v5337, %v5338
    %v5340 = vrot.slane %v5152, 4
    %v5341 = vrot.slane %v5153, 4
    %v5342 = vsel %vm5258, %v5340, %v5341
    %v5343 = vrot.slane %v5154, 4
    %v5344 = vrot.slane %v5155, 4
    %v5345 = vsel %vm5258, %v5343, %v5344
    %v5346 = vrot.slane %v5156, 4
    %v5347 = vrot.slane %v5157, 4
    %v5348 = vsel %vm5258, %v5346, %v5347
    %v5349 = vrot.slane %v5158, 4
    %v5350 = vrot.slane %v5159, 4
    %v5351 = vsel %vm5258, %v5349, %v5350
    %v5352 = vrot.slane %v5160, 4
    %v5353 = vrot.slane %v5161, 4
    %v5354 = vsel %vm5258, %v5352, %v5353
    %v5355 = vrot.slane %v5162, 4
    %v5356 = vrot.slane %v5163, 4
    %v5357 = vsel %vm5258, %v5355, %v5356
    %v5358 = vrot.slane %v5164, 4
    %v5359 = vrot.slane %v5165, 4
    %v5360 = vsel %vm5258, %v5358, %v5359
    %v5361 = vrot.slane %v5166, 4
    %v5362 = vrot.slane %v5167, 4
    %v5363 = vsel %vm5258, %v5361, %v5362
    %v5364 = vrot.slane %v5168, 4
    %v5365 = vrot.slane %v5169, 4
    %v5366 = vsel %vm5258, %v5364, %v5365
    %v5367 = vrot.slane %v5170, 4
    %v5368 = vrot.slane %v5171, 4
    %v5369 = vsel %vm5258, %v5367, %v5368
    %v5370 = vrot.slane %v5172, 4
    %v5371 = vrot.slane %v5173, 4
    %v5372 = vsel %vm5258, %v5370, %v5371
    %v5373 = vrot.slane %v5174, 4
    %v5374 = vrot.slane %v5175, 4
    %v5375 = vsel %vm5258, %v5373, %v5374
    %v5376 = vrot.slane %v5176, 4
    %v5377 = vrot.slane %v5177, 4
    %v5378 = vsel %vm5258, %v5376, %v5377
    %v5419 = vadd.f32 %v5058, %v5261
    %v5420 = vadd.f32 %v5059, %v5264
    %v5421 = vadd.f32 %v5060, %v5267
    %v5422 = vadd.f32 %v5061, %v5270
    %v5423 = vadd.f32 %v5062, %v5273
    %v5424 = vadd.f32 %v5063, %v5276
    %v5425 = vadd.f32 %v5064, %v5279
    %v5426 = vadd.f32 %v5065, %v5282
    %v5427 = vadd.f32 %v5066, %v5285
    %v5428 = vadd.f32 %v5067, %v5288
    %v5429 = vadd.f32 %v5068, %v5291
    %v5430 = vadd.f32 %v5069, %v5294
    %v5431 = vadd.f32 %v5070, %v5297
    %v5432 = vadd.f32 %v5071, %v5300
    %v5433 = vadd.f32 %v5072, %v5303
    %v5434 = vadd.f32 %v5073, %v5306
    %v5435 = vadd.f32 %v5074, %v5309
    %v5436 = vadd.f32 %v5075, %v5312
    %v5437 = vadd.f32 %v5076, %v5315
    %v5438 = vadd.f32 %v5077, %v5318
    %v5439 = vadd.f32 %v5078, %v5321
    %v5440 = vadd.f32 %v5079, %v5324
    %v5441 = vadd.f32 %v5080, %v5327
    %v5442 = vadd.f32 %v5081, %v5330
    %v5443 = vadd.f32 %v5082, %v5333
    %v5444 = vadd.f32 %v5083, %v5336
    %v5445 = vadd.f32 %v5084, %v5339
    %v5446 = vadd.f32 %v5085, %v5342
    %v5447 = vadd.f32 %v5086, %v5345
    %v5448 = vadd.f32 %v5087, %v5348
    %v5449 = vadd.f32 %v5088, %v5351
    %v5450 = vadd.f32 %v5089, %v5354
    %v5451 = vadd.f32 %v5090, %v5357
    %v5452 = vadd.f32 %v5091, %v5360
    %v5453 = vadd.f32 %v5092, %v5363
    %v5454 = vadd.f32 %v5093, %v5366
    %v5455 = vadd.f32 %v5094, %v5369
    %v5456 = vadd.f32 %v5095, %v5372
    %v5457 = vadd.f32 %v5096, %v5375
    %v5458 = vadd.f32 %v5097, %v5378
    %v5459 = vmul.f32 %v3820, 0.26601171
    %v5460 = vmul.f32 %v3826, 0.26601171
    %v5461 = vmul.f32 %v3832, 0.26601171
    %v5462 = vmul.f32 %v3838, 0.26601171
    %v5463 = vmul.f32 %v3844, 0.26601171
    %v5464 = vmul.f32 %v3850, 0.26601171
    %v5465 = vmul.f32 %v3856, 0.26601171
    %v5466 = vmul.f32 %v3862, 0.26601171
    %v5467 = vmul.f32 %v3868, 0.26601171
    %v5468 = vmul.f32 %v3874, 0.26601171
    %v5469 = vmul.f32 %v3880, 0.26601171
    %v5470 = vmul.f32 %v3886, 0.26601171
    %v5471 = vmul.f32 %v3892, 0.26601171
    %v5472 = vmul.f32 %v3898, 0.26601171
    %v5473 = vmul.f32 %v3904, 0.26601171
    %v5474 = vmul.f32 %v3910, 0.26601171
    %v5475 = vmul.f32 %v3916, 0.26601171
    %v5476 = vmul.f32 %v3922, 0.26601171
    %v5477 = vmul.f32 %v3928, 0.26601171
    %v5478 = vmul.f32 %v3934, 0.26601171
    %v5479 = vmul.f32 %v3940, 0.26601171
    %v5480 = vmul.f32 %v3946, 0.26601171
    %v5481 = vmul.f32 %v3952, 0.26601171
    %v5482 = vmul.f32 %v3958, 0.26601171
    %v5483 = vmul.f32 %v3964, 0.26601171
    %v5484 = vmul.f32 %v3970, 0.26601171
    %v5485 = vmul.f32 %v3976, 0.26601171
    %v5486 = vmul.f32 %v3982, 0.26601171
    %v5487 = vmul.f32 %v3988, 0.26601171
    %v5488 = vmul.f32 %v3994, 0.26601171
    %v5489 = vmul.f32 %v4000, 0.26601171
    %v5490 = vmul.f32 %v4006, 0.26601171
    %v5491 = vmul.f32 %v4012, 0.26601171
    %v5492 = vmul.f32 %v4018, 0.26601171
    %v5493 = vmul.f32 %v4024, 0.26601171
    %v5494 = vmul.f32 %v4030, 0.26601171
    %v5495 = vmul.f32 %v4036, 0.26601171
    %v5496 = vmul.f32 %v4042, 0.26601171
    %v5497 = vmul.f32 %v4048, 0.26601171
    %v5498 = vmul.f32 %v4054, 0.26601171
    %v5499 = vmul.f32 %v4060, 0.26601171
    %v5500 = vmul.f32 %v4066, 0.26601171
    %v5501 = vmul.f32 %v4072, 0.26601171
    %v5502 = vmul.f32 %v4078, 0.26601171
    %v5503 = vmul.f32 %v4084, 0.26601171
    %v5504 = vmul.f32 %v4090, 0.26601171
    %v5505 = vmul.f32 %v4096, 0.26601171
    %v5506 = vmul.f32 %v4102, 0.26601171
    %v5507 = vmul.f32 %v4108, 0.26601171
    %v5508 = vmul.f32 %v4114, 0.26601171
    %v5509 = vmul.f32 %v4120, 0.26601171
    %v5510 = vmul.f32 %v4126, 0.26601171
    %v5511 = vmul.f32 %v4132, 0.26601171
    %v5512 = vmul.f32 %v4138, 0.26601171
    %v5513 = vmul.f32 %v4144, 0.26601171
    %v5514 = vmul.f32 %v4150, 0.26601171
    %v5515 = vmul.f32 %v4156, 0.26601171
    %v5516 = vmul.f32 %v4162, 0.26601171
    %v5517 = vmul.f32 %v4168, 0.26601171
    %v5518 = vmul.f32 %v4174, 0.26601171
    %v5519 = vmul.f32 %v4180, 0.26601171
    %v5520 = vmul.f32 %v4186, 0.26601171
    %v5521 = vmul.f32 %v4192, 0.26601171
    %v5522 = vmul.f32 %v4198, 0.26601171
    %v5523 = vmul.f32 %v4204, 0.26601171
    %v5524 = vmul.f32 %v4210, 0.26601171
    %v5525 = vmul.f32 %v4216, 0.26601171
    %v5526 = vmul.f32 %v4222, 0.26601171
    %v5527 = vmul.f32 %v4228, 0.26601171
    %v5528 = vmul.f32 %v4234, 0.26601171
    %v5529 = vmul.f32 %v4240, 0.26601171
    %v5530 = vmul.f32 %v4246, 0.26601171
    %v5531 = vmul.f32 %v4252, 0.26601171
    %v5532 = vmul.f32 %v4258, 0.26601171
    %v5533 = vmul.f32 %v4264, 0.26601171
    %v5534 = vmul.f32 %v4270, 0.26601171
    %v5535 = vmul.f32 %v4276, 0.26601171
    %v5536 = vmul.f32 %v4282, 0.26601171
    %v5537 = vmul.f32 %v4288, 0.26601171
    %v5538 = vmul.f32 %v4294, 0.26601171
    %vm5619 = vcmask 1042432
    %v5620 = vrot.slane %v5459, 5
    %v5621 = vrot.slane %v5460, 5
    %v5622 = vsel %vm5619, %v5620, %v5621
    %v5623 = vrot.slane %v5461, 5
    %v5624 = vrot.slane %v5462, 5
    %v5625 = vsel %vm5619, %v5623, %v5624
    %v5626 = vrot.slane %v5463, 5
    %v5627 = vrot.slane %v5464, 5
    %v5628 = vsel %vm5619, %v5626, %v5627
    %v5629 = vrot.slane %v5465, 5
    %v5630 = vrot.slane %v5466, 5
    %v5631 = vsel %vm5619, %v5629, %v5630
    %v5632 = vrot.slane %v5467, 5
    %v5633 = vrot.slane %v5468, 5
    %v5634 = vsel %vm5619, %v5632, %v5633
    %v5635 = vrot.slane %v5469, 5
    %v5636 = vrot.slane %v5470, 5
    %v5637 = vsel %vm5619, %v5635, %v5636
    %v5638 = vrot.slane %v5471, 5
    %v5639 = vrot.slane %v5472, 5
    %v5640 = vsel %vm5619, %v5638, %v5639
    %v5641 = vrot.slane %v5473, 5
    %v5642 = vrot.slane %v5474, 5
    %v5643 = vsel %vm5619, %v5641, %v5642
    %v5644 = vrot.slane %v5475, 5
    %v5645 = vrot.slane %v5476, 5
    %v5646 = vsel %vm5619, %v5644, %v5645
    %v5647 = vrot.slane %v5477, 5
    %v5648 = vrot.slane %v5478, 5
    %v5649 = vsel %vm5619, %v5647, %v5648
    %v5650 = vrot.slane %v5479, 5
    %v5651 = vrot.slane %v5480, 5
    %v5652 = vsel %vm5619, %v5650, %v5651
    %v5653 = vrot.slane %v5481, 5
    %v5654 = vrot.slane %v5482, 5
    %v5655 = vsel %vm5619, %v5653, %v5654
    %v5656 = vrot.slane %v5483, 5
    %v5657 = vrot.slane %v5484, 5
    %v5658 = vsel %vm5619, %v5656, %v5657
    %v5659 = vrot.slane %v5485, 5
    %v5660 = vrot.slane %v5486, 5
    %v5661 = vsel %vm5619, %v5659, %v5660
    %v5662 = vrot.slane %v5487, 5
    %v5663 = vrot.slane %v5488, 5
    %v5664 = vsel %vm5619, %v5662, %v5663
    %v5665 = vrot.slane %v5489, 5
    %v5666 = vrot.slane %v5490, 5
    %v5667 = vsel %vm5619, %v5665, %v5666
    %v5668 = vrot.slane %v5491, 5
    %v5669 = vrot.slane %v5492, 5
    %v5670 = vsel %vm5619, %v5668, %v5669
    %v5671 = vrot.slane %v5493, 5
    %v5672 = vrot.slane %v5494, 5
    %v5673 = vsel %vm5619, %v5671, %v5672
    %v5674 = vrot.slane %v5495, 5
    %v5675 = vrot.slane %v5496, 5
    %v5676 = vsel %vm5619, %v5674, %v5675
    %v5677 = vrot.slane %v5497, 5
    %v5678 = vrot.slane %v5498, 5
    %v5679 = vsel %vm5619, %v5677, %v5678
    %v5680 = vrot.slane %v5499, 5
    %v5681 = vrot.slane %v5500, 5
    %v5682 = vsel %vm5619, %v5680, %v5681
    %v5683 = vrot.slane %v5501, 5
    %v5684 = vrot.slane %v5502, 5
    %v5685 = vsel %vm5619, %v5683, %v5684
    %v5686 = vrot.slane %v5503, 5
    %v5687 = vrot.slane %v5504, 5
    %v5688 = vsel %vm5619, %v5686, %v5687
    %v5689 = vrot.slane %v5505, 5
    %v5690 = vrot.slane %v5506, 5
    %v5691 = vsel %vm5619, %v5689, %v5690
    %v5692 = vrot.slane %v5507, 5
    %v5693 = vrot.slane %v5508, 5
    %v5694 = vsel %vm5619, %v5692, %v5693
    %v5695 = vrot.slane %v5509, 5
    %v5696 = vrot.slane %v5510, 5
    %v5697 = vsel %vm5619, %v5695, %v5696
    %v5698 = vrot.slane %v5511, 5
    %v5699 = vrot.slane %v5512, 5
    %v5700 = vsel %vm5619, %v5698, %v5699
    %v5701 = vrot.slane %v5513, 5
    %v5702 = vrot.slane %v5514, 5
    %v5703 = vsel %vm5619, %v5701, %v5702
    %v5704 = vrot.slane %v5515, 5
    %v5705 = vrot.slane %v5516, 5
    %v5706 = vsel %vm5619, %v5704, %v5705
    %v5707 = vrot.slane %v5517, 5
    %v5708 = vrot.slane %v5518, 5
    %v5709 = vsel %vm5619, %v5707, %v5708
    %v5710 = vrot.slane %v5519, 5
    %v5711 = vrot.slane %v5520, 5
    %v5712 = vsel %vm5619, %v5710, %v5711
    %v5713 = vrot.slane %v5521, 5
    %v5714 = vrot.slane %v5522, 5
    %v5715 = vsel %vm5619, %v5713, %v5714
    %v5716 = vrot.slane %v5523, 5
    %v5717 = vrot.slane %v5524, 5
    %v5718 = vsel %vm5619, %v5716, %v5717
    %v5719 = vrot.slane %v5525, 5
    %v5720 = vrot.slane %v5526, 5
    %v5721 = vsel %vm5619, %v5719, %v5720
    %v5722 = vrot.slane %v5527, 5
    %v5723 = vrot.slane %v5528, 5
    %v5724 = vsel %vm5619, %v5722, %v5723
    %v5725 = vrot.slane %v5529, 5
    %v5726 = vrot.slane %v5530, 5
    %v5727 = vsel %vm5619, %v5725, %v5726
    %v5728 = vrot.slane %v5531, 5
    %v5729 = vrot.slane %v5532, 5
    %v5730 = vsel %vm5619, %v5728, %v5729
    %v5731 = vrot.slane %v5533, 5
    %v5732 = vrot.slane %v5534, 5
    %v5733 = vsel %vm5619, %v5731, %v5732
    %v5734 = vrot.slane %v5535, 5
    %v5735 = vrot.slane %v5536, 5
    %v5736 = vsel %vm5619, %v5734, %v5735
    %v5737 = vrot.slane %v5537, 5
    %v5738 = vrot.slane %v5538, 5
    %v5739 = vsel %vm5619, %v5737, %v5738
    %v5780 = vadd.f32 %v5419, %v5622
    %v5781 = vadd.f32 %v5420, %v5625
    %v5782 = vadd.f32 %v5421, %v5628
    %v5783 = vadd.f32 %v5422, %v5631
    %v5784 = vadd.f32 %v5423, %v5634
    %v5785 = vadd.f32 %v5424, %v5637
    %v5786 = vadd.f32 %v5425, %v5640
    %v5787 = vadd.f32 %v5426, %v5643
    %v5788 = vadd.f32 %v5427, %v5646
    %v5789 = vadd.f32 %v5428, %v5649
    %v5790 = vadd.f32 %v5429, %v5652
    %v5791 = vadd.f32 %v5430, %v5655
    %v5792 = vadd.f32 %v5431, %v5658
    %v5793 = vadd.f32 %v5432, %v5661
    %v5794 = vadd.f32 %v5433, %v5664
    %v5795 = vadd.f32 %v5434, %v5667
    %v5796 = vadd.f32 %v5435, %v5670
    %v5797 = vadd.f32 %v5436, %v5673
    %v5798 = vadd.f32 %v5437, %v5676
    %v5799 = vadd.f32 %v5438, %v5679
    %v5800 = vadd.f32 %v5439, %v5682
    %v5801 = vadd.f32 %v5440, %v5685
    %v5802 = vadd.f32 %v5441, %v5688
    %v5803 = vadd.f32 %v5442, %v5691
    %v5804 = vadd.f32 %v5443, %v5694
    %v5805 = vadd.f32 %v5444, %v5697
    %v5806 = vadd.f32 %v5445, %v5700
    %v5807 = vadd.f32 %v5446, %v5703
    %v5808 = vadd.f32 %v5447, %v5706
    %v5809 = vadd.f32 %v5448, %v5709
    %v5810 = vadd.f32 %v5449, %v5712
    %v5811 = vadd.f32 %v5450, %v5715
    %v5812 = vadd.f32 %v5451, %v5718
    %v5813 = vadd.f32 %v5452, %v5721
    %v5814 = vadd.f32 %v5453, %v5724
    %v5815 = vadd.f32 %v5454, %v5727
    %v5816 = vadd.f32 %v5455, %v5730
    %v5817 = vadd.f32 %v5456, %v5733
    %v5818 = vadd.f32 %v5457, %v5736
    %v5819 = vadd.f32 %v5458, %v5739
    %vm5820 = vcmask 1041408
    %v5821 = vrot.slane %v5098, 6
    %v5822 = vrot.slane %v5099, 6
    %v5823 = vsel %vm5820, %v5821, %v5822
    %v5824 = vrot.slane %v5100, 6
    %v5825 = vrot.slane %v5101, 6
    %v5826 = vsel %vm5820, %v5824, %v5825
    %v5827 = vrot.slane %v5102, 6
    %v5828 = vrot.slane %v5103, 6
    %v5829 = vsel %vm5820, %v5827, %v5828
    %v5830 = vrot.slane %v5104, 6
    %v5831 = vrot.slane %v5105, 6
    %v5832 = vsel %vm5820, %v5830, %v5831
    %v5833 = vrot.slane %v5106, 6
    %v5834 = vrot.slane %v5107, 6
    %v5835 = vsel %vm5820, %v5833, %v5834
    %v5836 = vrot.slane %v5108, 6
    %v5837 = vrot.slane %v5109, 6
    %v5838 = vsel %vm5820, %v5836, %v5837
    %v5839 = vrot.slane %v5110, 6
    %v5840 = vrot.slane %v5111, 6
    %v5841 = vsel %vm5820, %v5839, %v5840
    %v5842 = vrot.slane %v5112, 6
    %v5843 = vrot.slane %v5113, 6
    %v5844 = vsel %vm5820, %v5842, %v5843
    %v5845 = vrot.slane %v5114, 6
    %v5846 = vrot.slane %v5115, 6
    %v5847 = vsel %vm5820, %v5845, %v5846
    %v5848 = vrot.slane %v5116, 6
    %v5849 = vrot.slane %v5117, 6
    %v5850 = vsel %vm5820, %v5848, %v5849
    %v5851 = vrot.slane %v5118, 6
    %v5852 = vrot.slane %v5119, 6
    %v5853 = vsel %vm5820, %v5851, %v5852
    %v5854 = vrot.slane %v5120, 6
    %v5855 = vrot.slane %v5121, 6
    %v5856 = vsel %vm5820, %v5854, %v5855
    %v5857 = vrot.slane %v5122, 6
    %v5858 = vrot.slane %v5123, 6
    %v5859 = vsel %vm5820, %v5857, %v5858
    %v5860 = vrot.slane %v5124, 6
    %v5861 = vrot.slane %v5125, 6
    %v5862 = vsel %vm5820, %v5860, %v5861
    %v5863 = vrot.slane %v5126, 6
    %v5864 = vrot.slane %v5127, 6
    %v5865 = vsel %vm5820, %v5863, %v5864
    %v5866 = vrot.slane %v5128, 6
    %v5867 = vrot.slane %v5129, 6
    %v5868 = vsel %vm5820, %v5866, %v5867
    %v5869 = vrot.slane %v5130, 6
    %v5870 = vrot.slane %v5131, 6
    %v5871 = vsel %vm5820, %v5869, %v5870
    %v5872 = vrot.slane %v5132, 6
    %v5873 = vrot.slane %v5133, 6
    %v5874 = vsel %vm5820, %v5872, %v5873
    %v5875 = vrot.slane %v5134, 6
    %v5876 = vrot.slane %v5135, 6
    %v5877 = vsel %vm5820, %v5875, %v5876
    %v5878 = vrot.slane %v5136, 6
    %v5879 = vrot.slane %v5137, 6
    %v5880 = vsel %vm5820, %v5878, %v5879
    %v5881 = vrot.slane %v5138, 6
    %v5882 = vrot.slane %v5139, 6
    %v5883 = vsel %vm5820, %v5881, %v5882
    %v5884 = vrot.slane %v5140, 6
    %v5885 = vrot.slane %v5141, 6
    %v5886 = vsel %vm5820, %v5884, %v5885
    %v5887 = vrot.slane %v5142, 6
    %v5888 = vrot.slane %v5143, 6
    %v5889 = vsel %vm5820, %v5887, %v5888
    %v5890 = vrot.slane %v5144, 6
    %v5891 = vrot.slane %v5145, 6
    %v5892 = vsel %vm5820, %v5890, %v5891
    %v5893 = vrot.slane %v5146, 6
    %v5894 = vrot.slane %v5147, 6
    %v5895 = vsel %vm5820, %v5893, %v5894
    %v5896 = vrot.slane %v5148, 6
    %v5897 = vrot.slane %v5149, 6
    %v5898 = vsel %vm5820, %v5896, %v5897
    %v5899 = vrot.slane %v5150, 6
    %v5900 = vrot.slane %v5151, 6
    %v5901 = vsel %vm5820, %v5899, %v5900
    %v5902 = vrot.slane %v5152, 6
    %v5903 = vrot.slane %v5153, 6
    %v5904 = vsel %vm5820, %v5902, %v5903
    %v5905 = vrot.slane %v5154, 6
    %v5906 = vrot.slane %v5155, 6
    %v5907 = vsel %vm5820, %v5905, %v5906
    %v5908 = vrot.slane %v5156, 6
    %v5909 = vrot.slane %v5157, 6
    %v5910 = vsel %vm5820, %v5908, %v5909
    %v5911 = vrot.slane %v5158, 6
    %v5912 = vrot.slane %v5159, 6
    %v5913 = vsel %vm5820, %v5911, %v5912
    %v5914 = vrot.slane %v5160, 6
    %v5915 = vrot.slane %v5161, 6
    %v5916 = vsel %vm5820, %v5914, %v5915
    %v5917 = vrot.slane %v5162, 6
    %v5918 = vrot.slane %v5163, 6
    %v5919 = vsel %vm5820, %v5917, %v5918
    %v5920 = vrot.slane %v5164, 6
    %v5921 = vrot.slane %v5165, 6
    %v5922 = vsel %vm5820, %v5920, %v5921
    %v5923 = vrot.slane %v5166, 6
    %v5924 = vrot.slane %v5167, 6
    %v5925 = vsel %vm5820, %v5923, %v5924
    %v5926 = vrot.slane %v5168, 6
    %v5927 = vrot.slane %v5169, 6
    %v5928 = vsel %vm5820, %v5926, %v5927
    %v5929 = vrot.slane %v5170, 6
    %v5930 = vrot.slane %v5171, 6
    %v5931 = vsel %vm5820, %v5929, %v5930
    %v5932 = vrot.slane %v5172, 6
    %v5933 = vrot.slane %v5173, 6
    %v5934 = vsel %vm5820, %v5932, %v5933
    %v5935 = vrot.slane %v5174, 6
    %v5936 = vrot.slane %v5175, 6
    %v5937 = vsel %vm5820, %v5935, %v5936
    %v5938 = vrot.slane %v5176, 6
    %v5939 = vrot.slane %v5177, 6
    %v5940 = vsel %vm5820, %v5938, %v5939
    %v5981 = vadd.f32 %v5780, %v5823
    %v5982 = vadd.f32 %v5781, %v5826
    %v5983 = vadd.f32 %v5782, %v5829
    %v5984 = vadd.f32 %v5783, %v5832
    %v5985 = vadd.f32 %v5784, %v5835
    %v5986 = vadd.f32 %v5785, %v5838
    %v5987 = vadd.f32 %v5786, %v5841
    %v5988 = vadd.f32 %v5787, %v5844
    %v5989 = vadd.f32 %v5788, %v5847
    %v5990 = vadd.f32 %v5789, %v5850
    %v5991 = vadd.f32 %v5790, %v5853
    %v5992 = vadd.f32 %v5791, %v5856
    %v5993 = vadd.f32 %v5792, %v5859
    %v5994 = vadd.f32 %v5793, %v5862
    %v5995 = vadd.f32 %v5794, %v5865
    %v5996 = vadd.f32 %v5795, %v5868
    %v5997 = vadd.f32 %v5796, %v5871
    %v5998 = vadd.f32 %v5797, %v5874
    %v5999 = vadd.f32 %v5798, %v5877
    %v6000 = vadd.f32 %v5799, %v5880
    %v6001 = vadd.f32 %v5800, %v5883
    %v6002 = vadd.f32 %v5801, %v5886
    %v6003 = vadd.f32 %v5802, %v5889
    %v6004 = vadd.f32 %v5803, %v5892
    %v6005 = vadd.f32 %v5804, %v5895
    %v6006 = vadd.f32 %v5805, %v5898
    %v6007 = vadd.f32 %v5806, %v5901
    %v6008 = vadd.f32 %v5807, %v5904
    %v6009 = vadd.f32 %v5808, %v5907
    %v6010 = vadd.f32 %v5809, %v5910
    %v6011 = vadd.f32 %v5810, %v5913
    %v6012 = vadd.f32 %v5811, %v5916
    %v6013 = vadd.f32 %v5812, %v5919
    %v6014 = vadd.f32 %v5813, %v5922
    %v6015 = vadd.f32 %v5814, %v5925
    %v6016 = vadd.f32 %v5815, %v5928
    %v6017 = vadd.f32 %v5816, %v5931
    %v6018 = vadd.f32 %v5817, %v5934
    %v6019 = vadd.f32 %v5818, %v5937
    %v6020 = vadd.f32 %v5819, %v5940
    %vm6021 = vcmask 1040384
    %v6022 = vrot.slane %v4737, 7
    %v6023 = vrot.slane %v4738, 7
    %v6024 = vsel %vm6021, %v6022, %v6023
    %v6025 = vrot.slane %v4739, 7
    %v6026 = vrot.slane %v4740, 7
    %v6027 = vsel %vm6021, %v6025, %v6026
    %v6028 = vrot.slane %v4741, 7
    %v6029 = vrot.slane %v4742, 7
    %v6030 = vsel %vm6021, %v6028, %v6029
    %v6031 = vrot.slane %v4743, 7
    %v6032 = vrot.slane %v4744, 7
    %v6033 = vsel %vm6021, %v6031, %v6032
    %v6034 = vrot.slane %v4745, 7
    %v6035 = vrot.slane %v4746, 7
    %v6036 = vsel %vm6021, %v6034, %v6035
    %v6037 = vrot.slane %v4747, 7
    %v6038 = vrot.slane %v4748, 7
    %v6039 = vsel %vm6021, %v6037, %v6038
    %v6040 = vrot.slane %v4749, 7
    %v6041 = vrot.slane %v4750, 7
    %v6042 = vsel %vm6021, %v6040, %v6041
    %v6043 = vrot.slane %v4751, 7
    %v6044 = vrot.slane %v4752, 7
    %v6045 = vsel %vm6021, %v6043, %v6044
    %v6046 = vrot.slane %v4753, 7
    %v6047 = vrot.slane %v4754, 7
    %v6048 = vsel %vm6021, %v6046, %v6047
    %v6049 = vrot.slane %v4755, 7
    %v6050 = vrot.slane %v4756, 7
    %v6051 = vsel %vm6021, %v6049, %v6050
    %v6052 = vrot.slane %v4757, 7
    %v6053 = vrot.slane %v4758, 7
    %v6054 = vsel %vm6021, %v6052, %v6053
    %v6055 = vrot.slane %v4759, 7
    %v6056 = vrot.slane %v4760, 7
    %v6057 = vsel %vm6021, %v6055, %v6056
    %v6058 = vrot.slane %v4761, 7
    %v6059 = vrot.slane %v4762, 7
    %v6060 = vsel %vm6021, %v6058, %v6059
    %v6061 = vrot.slane %v4763, 7
    %v6062 = vrot.slane %v4764, 7
    %v6063 = vsel %vm6021, %v6061, %v6062
    %v6064 = vrot.slane %v4765, 7
    %v6065 = vrot.slane %v4766, 7
    %v6066 = vsel %vm6021, %v6064, %v6065
    %v6067 = vrot.slane %v4767, 7
    %v6068 = vrot.slane %v4768, 7
    %v6069 = vsel %vm6021, %v6067, %v6068
    %v6070 = vrot.slane %v4769, 7
    %v6071 = vrot.slane %v4770, 7
    %v6072 = vsel %vm6021, %v6070, %v6071
    %v6073 = vrot.slane %v4771, 7
    %v6074 = vrot.slane %v4772, 7
    %v6075 = vsel %vm6021, %v6073, %v6074
    %v6076 = vrot.slane %v4773, 7
    %v6077 = vrot.slane %v4774, 7
    %v6078 = vsel %vm6021, %v6076, %v6077
    %v6079 = vrot.slane %v4775, 7
    %v6080 = vrot.slane %v4776, 7
    %v6081 = vsel %vm6021, %v6079, %v6080
    %v6082 = vrot.slane %v4777, 7
    %v6083 = vrot.slane %v4778, 7
    %v6084 = vsel %vm6021, %v6082, %v6083
    %v6085 = vrot.slane %v4779, 7
    %v6086 = vrot.slane %v4780, 7
    %v6087 = vsel %vm6021, %v6085, %v6086
    %v6088 = vrot.slane %v4781, 7
    %v6089 = vrot.slane %v4782, 7
    %v6090 = vsel %vm6021, %v6088, %v6089
    %v6091 = vrot.slane %v4783, 7
    %v6092 = vrot.slane %v4784, 7
    %v6093 = vsel %vm6021, %v6091, %v6092
    %v6094 = vrot.slane %v4785, 7
    %v6095 = vrot.slane %v4786, 7
    %v6096 = vsel %vm6021, %v6094, %v6095
    %v6097 = vrot.slane %v4787, 7
    %v6098 = vrot.slane %v4788, 7
    %v6099 = vsel %vm6021, %v6097, %v6098
    %v6100 = vrot.slane %v4789, 7
    %v6101 = vrot.slane %v4790, 7
    %v6102 = vsel %vm6021, %v6100, %v6101
    %v6103 = vrot.slane %v4791, 7
    %v6104 = vrot.slane %v4792, 7
    %v6105 = vsel %vm6021, %v6103, %v6104
    %v6106 = vrot.slane %v4793, 7
    %v6107 = vrot.slane %v4794, 7
    %v6108 = vsel %vm6021, %v6106, %v6107
    %v6109 = vrot.slane %v4795, 7
    %v6110 = vrot.slane %v4796, 7
    %v6111 = vsel %vm6021, %v6109, %v6110
    %v6112 = vrot.slane %v4797, 7
    %v6113 = vrot.slane %v4798, 7
    %v6114 = vsel %vm6021, %v6112, %v6113
    %v6115 = vrot.slane %v4799, 7
    %v6116 = vrot.slane %v4800, 7
    %v6117 = vsel %vm6021, %v6115, %v6116
    %v6118 = vrot.slane %v4801, 7
    %v6119 = vrot.slane %v4802, 7
    %v6120 = vsel %vm6021, %v6118, %v6119
    %v6121 = vrot.slane %v4803, 7
    %v6122 = vrot.slane %v4804, 7
    %v6123 = vsel %vm6021, %v6121, %v6122
    %v6124 = vrot.slane %v4805, 7
    %v6125 = vrot.slane %v4806, 7
    %v6126 = vsel %vm6021, %v6124, %v6125
    %v6127 = vrot.slane %v4807, 7
    %v6128 = vrot.slane %v4808, 7
    %v6129 = vsel %vm6021, %v6127, %v6128
    %v6130 = vrot.slane %v4809, 7
    %v6131 = vrot.slane %v4810, 7
    %v6132 = vsel %vm6021, %v6130, %v6131
    %v6133 = vrot.slane %v4811, 7
    %v6134 = vrot.slane %v4812, 7
    %v6135 = vsel %vm6021, %v6133, %v6134
    %v6136 = vrot.slane %v4813, 7
    %v6137 = vrot.slane %v4814, 7
    %v6138 = vsel %vm6021, %v6136, %v6137
    %v6139 = vrot.slane %v4815, 7
    %v6140 = vrot.slane %v4816, 7
    %v6141 = vsel %vm6021, %v6139, %v6140
    %v6182 = vadd.f32 %v5981, %v6024
    %v6183 = vadd.f32 %v5982, %v6027
    %v6184 = vadd.f32 %v5983, %v6030
    %v6185 = vadd.f32 %v5984, %v6033
    %v6186 = vadd.f32 %v5985, %v6036
    %v6187 = vadd.f32 %v5986, %v6039
    %v6188 = vadd.f32 %v5987, %v6042
    %v6189 = vadd.f32 %v5988, %v6045
    %v6190 = vadd.f32 %v5989, %v6048
    %v6191 = vadd.f32 %v5990, %v6051
    %v6192 = vadd.f32 %v5991, %v6054
    %v6193 = vadd.f32 %v5992, %v6057
    %v6194 = vadd.f32 %v5993, %v6060
    %v6195 = vadd.f32 %v5994, %v6063
    %v6196 = vadd.f32 %v5995, %v6066
    %v6197 = vadd.f32 %v5996, %v6069
    %v6198 = vadd.f32 %v5997, %v6072
    %v6199 = vadd.f32 %v5998, %v6075
    %v6200 = vadd.f32 %v5999, %v6078
    %v6201 = vadd.f32 %v6000, %v6081
    %v6202 = vadd.f32 %v6001, %v6084
    %v6203 = vadd.f32 %v6002, %v6087
    %v6204 = vadd.f32 %v6003, %v6090
    %v6205 = vadd.f32 %v6004, %v6093
    %v6206 = vadd.f32 %v6005, %v6096
    %v6207 = vadd.f32 %v6006, %v6099
    %v6208 = vadd.f32 %v6007, %v6102
    %v6209 = vadd.f32 %v6008, %v6105
    %v6210 = vadd.f32 %v6009, %v6108
    %v6211 = vadd.f32 %v6010, %v6111
    %v6212 = vadd.f32 %v6011, %v6114
    %v6213 = vadd.f32 %v6012, %v6117
    %v6214 = vadd.f32 %v6013, %v6120
    %v6215 = vadd.f32 %v6014, %v6123
    %v6216 = vadd.f32 %v6015, %v6126
    %v6217 = vadd.f32 %v6016, %v6129
    %v6218 = vadd.f32 %v6017, %v6132
    %v6219 = vadd.f32 %v6018, %v6135
    %v6220 = vadd.f32 %v6019, %v6138
    %v6221 = vadd.f32 %v6020, %v6141
    %v6222 = vmul.f32 %v3826, 0.036000773
    %v6223 = vmul.f32 %v3838, 0.036000773
    %v6224 = vmul.f32 %v3850, 0.036000773
    %v6225 = vmul.f32 %v3862, 0.036000773
    %v6226 = vmul.f32 %v3874, 0.036000773
    %v6227 = vmul.f32 %v3886, 0.036000773
    %v6228 = vmul.f32 %v3898, 0.036000773
    %v6229 = vmul.f32 %v3910, 0.036000773
    %v6230 = vmul.f32 %v3922, 0.036000773
    %v6231 = vmul.f32 %v3934, 0.036000773
    %v6232 = vmul.f32 %v3946, 0.036000773
    %v6233 = vmul.f32 %v3958, 0.036000773
    %v6234 = vmul.f32 %v3970, 0.036000773
    %v6235 = vmul.f32 %v3982, 0.036000773
    %v6236 = vmul.f32 %v3994, 0.036000773
    %v6237 = vmul.f32 %v4006, 0.036000773
    %v6238 = vmul.f32 %v4018, 0.036000773
    %v6239 = vmul.f32 %v4030, 0.036000773
    %v6240 = vmul.f32 %v4042, 0.036000773
    %v6241 = vmul.f32 %v4054, 0.036000773
    %v6242 = vmul.f32 %v4066, 0.036000773
    %v6243 = vmul.f32 %v4078, 0.036000773
    %v6244 = vmul.f32 %v4090, 0.036000773
    %v6245 = vmul.f32 %v4102, 0.036000773
    %v6246 = vmul.f32 %v4114, 0.036000773
    %v6247 = vmul.f32 %v4126, 0.036000773
    %v6248 = vmul.f32 %v4138, 0.036000773
    %v6249 = vmul.f32 %v4150, 0.036000773
    %v6250 = vmul.f32 %v4162, 0.036000773
    %v6251 = vmul.f32 %v4174, 0.036000773
    %v6252 = vmul.f32 %v4186, 0.036000773
    %v6253 = vmul.f32 %v4198, 0.036000773
    %v6254 = vmul.f32 %v4210, 0.036000773
    %v6255 = vmul.f32 %v4222, 0.036000773
    %v6256 = vmul.f32 %v4234, 0.036000773
    %v6257 = vmul.f32 %v4246, 0.036000773
    %v6258 = vmul.f32 %v4258, 0.036000773
    %v6259 = vmul.f32 %v4270, 0.036000773
    %v6260 = vmul.f32 %v4282, 0.036000773
    %v6261 = vmul.f32 %v4294, 0.036000773
    %v6262 = vadd.f32 %v6182, %v6222
    %v6263 = vadd.f32 %v6183, %v6223
    %v6264 = vadd.f32 %v6184, %v6224
    %v6265 = vadd.f32 %v6185, %v6225
    %v6266 = vadd.f32 %v6186, %v6226
    %v6267 = vadd.f32 %v6187, %v6227
    %v6268 = vadd.f32 %v6188, %v6228
    %v6269 = vadd.f32 %v6189, %v6229
    %v6270 = vadd.f32 %v6190, %v6230
    %v6271 = vadd.f32 %v6191, %v6231
    %v6272 = vadd.f32 %v6192, %v6232
    %v6273 = vadd.f32 %v6193, %v6233
    %v6274 = vadd.f32 %v6194, %v6234
    %v6275 = vadd.f32 %v6195, %v6235
    %v6276 = vadd.f32 %v6196, %v6236
    %v6277 = vadd.f32 %v6197, %v6237
    %v6278 = vadd.f32 %v6198, %v6238
    %v6279 = vadd.f32 %v6199, %v6239
    %v6280 = vadd.f32 %v6200, %v6240
    %v6281 = vadd.f32 %v6201, %v6241
    %v6282 = vadd.f32 %v6202, %v6242
    %v6283 = vadd.f32 %v6203, %v6243
    %v6284 = vadd.f32 %v6204, %v6244
    %v6285 = vadd.f32 %v6205, %v6245
    %v6286 = vadd.f32 %v6206, %v6246
    %v6287 = vadd.f32 %v6207, %v6247
    %v6288 = vadd.f32 %v6208, %v6248
    %v6289 = vadd.f32 %v6209, %v6249
    %v6290 = vadd.f32 %v6210, %v6250
    %v6291 = vadd.f32 %v6211, %v6251
    %v6292 = vadd.f32 %v6212, %v6252
    %v6293 = vadd.f32 %v6213, %v6253
    %v6294 = vadd.f32 %v6214, %v6254
    %v6295 = vadd.f32 %v6215, %v6255
    %v6296 = vadd.f32 %v6216, %v6256
    %v6297 = vadd.f32 %v6217, %v6257
    %v6298 = vadd.f32 %v6218, %v6258
    %v6299 = vadd.f32 %v6219, %v6259
    %v6300 = vadd.f32 %v6220, %v6260
    %v6301 = vadd.f32 %v6221, %v6261
    %v6302 = vmul.f32 %v3826, 0.007598758
    %v6303 = vmul.f32 %v3838, 0.007598758
    %v6304 = vmul.f32 %v3850, 0.007598758
    %v6305 = vmul.f32 %v3862, 0.007598758
    %v6306 = vmul.f32 %v3874, 0.007598758
    %v6307 = vmul.f32 %v3886, 0.007598758
    %v6308 = vmul.f32 %v3898, 0.007598758
    %v6309 = vmul.f32 %v3910, 0.007598758
    %v6310 = vmul.f32 %v3922, 0.007598758
    %v6311 = vmul.f32 %v3934, 0.007598758
    %v6312 = vmul.f32 %v3946, 0.007598758
    %v6313 = vmul.f32 %v3958, 0.007598758
    %v6314 = vmul.f32 %v3970, 0.007598758
    %v6315 = vmul.f32 %v3982, 0.007598758
    %v6316 = vmul.f32 %v3994, 0.007598758
    %v6317 = vmul.f32 %v4006, 0.007598758
    %v6318 = vmul.f32 %v4018, 0.007598758
    %v6319 = vmul.f32 %v4030, 0.007598758
    %v6320 = vmul.f32 %v4042, 0.007598758
    %v6321 = vmul.f32 %v4054, 0.007598758
    %v6322 = vmul.f32 %v4066, 0.007598758
    %v6323 = vmul.f32 %v4078, 0.007598758
    %v6324 = vmul.f32 %v4090, 0.007598758
    %v6325 = vmul.f32 %v4102, 0.007598758
    %v6326 = vmul.f32 %v4114, 0.007598758
    %v6327 = vmul.f32 %v4126, 0.007598758
    %v6328 = vmul.f32 %v4138, 0.007598758
    %v6329 = vmul.f32 %v4150, 0.007598758
    %v6330 = vmul.f32 %v4162, 0.007598758
    %v6331 = vmul.f32 %v4174, 0.007598758
    %v6332 = vmul.f32 %v4186, 0.007598758
    %v6333 = vmul.f32 %v4198, 0.007598758
    %v6334 = vmul.f32 %v4210, 0.007598758
    %v6335 = vmul.f32 %v4222, 0.007598758
    %v6336 = vmul.f32 %v4234, 0.007598758
    %v6337 = vmul.f32 %v4246, 0.007598758
    %v6338 = vmul.f32 %v4258, 0.007598758
    %v6339 = vmul.f32 %v4270, 0.007598758
    %v6340 = vmul.f32 %v4282, 0.007598758
    %v6341 = vmul.f32 %v4294, 0.007598758
    %v6382 = vrot.slane %v6302, 1
    %v6383 = vrot.slane %v6303, 1
    %v6384 = vrot.slane %v6304, 1
    %v6385 = vrot.slane %v6305, 1
    %v6386 = vrot.slane %v6306, 1
    %v6387 = vrot.slane %v6307, 1
    %v6388 = vrot.slane %v6308, 1
    %v6389 = vrot.slane %v6309, 1
    %v6390 = vrot.slane %v6310, 1
    %v6391 = vrot.slane %v6311, 1
    %v6392 = vrot.slane %v6312, 1
    %v6393 = vrot.slane %v6313, 1
    %v6394 = vrot.slane %v6314, 1
    %v6395 = vrot.slane %v6315, 1
    %v6396 = vrot.slane %v6316, 1
    %v6397 = vrot.slane %v6317, 1
    %v6398 = vrot.slane %v6318, 1
    %v6399 = vrot.slane %v6319, 1
    %v6400 = vrot.slane %v6320, 1
    %v6401 = vrot.slane %v6321, 1
    %v6402 = vrot.slane %v6322, 1
    %v6403 = vrot.slane %v6323, 1
    %v6404 = vrot.slane %v6324, 1
    %v6405 = vrot.slane %v6325, 1
    %v6406 = vrot.slane %v6326, 1
    %v6407 = vrot.slane %v6327, 1
    %v6408 = vrot.slane %v6328, 1
    %v6409 = vrot.slane %v6329, 1
    %v6410 = vrot.slane %v6330, 1
    %v6411 = vrot.slane %v6331, 1
    %v6412 = vrot.slane %v6332, 1
    %v6413 = vrot.slane %v6333, 1
    %v6414 = vrot.slane %v6334, 1
    %v6415 = vrot.slane %v6335, 1
    %v6416 = vrot.slane %v6336, 1
    %v6417 = vrot.slane %v6337, 1
    %v6418 = vrot.slane %v6338, 1
    %v6419 = vrot.slane %v6339, 1
    %v6420 = vrot.slane %v6340, 1
    %v6421 = vrot.slane %v6341, 1
    %v6462 = vadd.f32 %v6262, %v6382
    %v6463 = vadd.f32 %v6263, %v6383
    %v6464 = vadd.f32 %v6264, %v6384
    %v6465 = vadd.f32 %v6265, %v6385
    %v6466 = vadd.f32 %v6266, %v6386
    %v6467 = vadd.f32 %v6267, %v6387
    %v6468 = vadd.f32 %v6268, %v6388
    %v6469 = vadd.f32 %v6269, %v6389
    %v6470 = vadd.f32 %v6270, %v6390
    %v6471 = vadd.f32 %v6271, %v6391
    %v6472 = vadd.f32 %v6272, %v6392
    %v6473 = vadd.f32 %v6273, %v6393
    %v6474 = vadd.f32 %v6274, %v6394
    %v6475 = vadd.f32 %v6275, %v6395
    %v6476 = vadd.f32 %v6276, %v6396
    %v6477 = vadd.f32 %v6277, %v6397
    %v6478 = vadd.f32 %v6278, %v6398
    %v6479 = vadd.f32 %v6279, %v6399
    %v6480 = vadd.f32 %v6280, %v6400
    %v6481 = vadd.f32 %v6281, %v6401
    %v6482 = vadd.f32 %v6282, %v6402
    %v6483 = vadd.f32 %v6283, %v6403
    %v6484 = vadd.f32 %v6284, %v6404
    %v6485 = vadd.f32 %v6285, %v6405
    %v6486 = vadd.f32 %v6286, %v6406
    %v6487 = vadd.f32 %v6287, %v6407
    %v6488 = vadd.f32 %v6288, %v6408
    %v6489 = vadd.f32 %v6289, %v6409
    %v6490 = vadd.f32 %v6290, %v6410
    %v6491 = vadd.f32 %v6291, %v6411
    %v6492 = vadd.f32 %v6292, %v6412
    %v6493 = vadd.f32 %v6293, %v6413
    %v6494 = vadd.f32 %v6294, %v6414
    %v6495 = vadd.f32 %v6295, %v6415
    %v6496 = vadd.f32 %v6296, %v6416
    %v6497 = vadd.f32 %v6297, %v6417
    %v6498 = vadd.f32 %v6298, %v6418
    %v6499 = vadd.f32 %v6299, %v6419
    %v6500 = vadd.f32 %v6300, %v6420
    %v6501 = vadd.f32 %v6301, %v6421
    %v6502 = vmul.f32 %v3826, 0.0010283801
    %v6503 = vmul.f32 %v3838, 0.0010283801
    %v6504 = vmul.f32 %v3850, 0.0010283801
    %v6505 = vmul.f32 %v3862, 0.0010283801
    %v6506 = vmul.f32 %v3874, 0.0010283801
    %v6507 = vmul.f32 %v3886, 0.0010283801
    %v6508 = vmul.f32 %v3898, 0.0010283801
    %v6509 = vmul.f32 %v3910, 0.0010283801
    %v6510 = vmul.f32 %v3922, 0.0010283801
    %v6511 = vmul.f32 %v3934, 0.0010283801
    %v6512 = vmul.f32 %v3946, 0.0010283801
    %v6513 = vmul.f32 %v3958, 0.0010283801
    %v6514 = vmul.f32 %v3970, 0.0010283801
    %v6515 = vmul.f32 %v3982, 0.0010283801
    %v6516 = vmul.f32 %v3994, 0.0010283801
    %v6517 = vmul.f32 %v4006, 0.0010283801
    %v6518 = vmul.f32 %v4018, 0.0010283801
    %v6519 = vmul.f32 %v4030, 0.0010283801
    %v6520 = vmul.f32 %v4042, 0.0010283801
    %v6521 = vmul.f32 %v4054, 0.0010283801
    %v6522 = vmul.f32 %v4066, 0.0010283801
    %v6523 = vmul.f32 %v4078, 0.0010283801
    %v6524 = vmul.f32 %v4090, 0.0010283801
    %v6525 = vmul.f32 %v4102, 0.0010283801
    %v6526 = vmul.f32 %v4114, 0.0010283801
    %v6527 = vmul.f32 %v4126, 0.0010283801
    %v6528 = vmul.f32 %v4138, 0.0010283801
    %v6529 = vmul.f32 %v4150, 0.0010283801
    %v6530 = vmul.f32 %v4162, 0.0010283801
    %v6531 = vmul.f32 %v4174, 0.0010283801
    %v6532 = vmul.f32 %v4186, 0.0010283801
    %v6533 = vmul.f32 %v4198, 0.0010283801
    %v6534 = vmul.f32 %v4210, 0.0010283801
    %v6535 = vmul.f32 %v4222, 0.0010283801
    %v6536 = vmul.f32 %v4234, 0.0010283801
    %v6537 = vmul.f32 %v4246, 0.0010283801
    %v6538 = vmul.f32 %v4258, 0.0010283801
    %v6539 = vmul.f32 %v4270, 0.0010283801
    %v6540 = vmul.f32 %v4282, 0.0010283801
    %v6541 = vmul.f32 %v4294, 0.0010283801
    %v6582 = vrot.slane %v6502, 2
    %v6583 = vrot.slane %v6503, 2
    %v6584 = vrot.slane %v6504, 2
    %v6585 = vrot.slane %v6505, 2
    %v6586 = vrot.slane %v6506, 2
    %v6587 = vrot.slane %v6507, 2
    %v6588 = vrot.slane %v6508, 2
    %v6589 = vrot.slane %v6509, 2
    %v6590 = vrot.slane %v6510, 2
    %v6591 = vrot.slane %v6511, 2
    %v6592 = vrot.slane %v6512, 2
    %v6593 = vrot.slane %v6513, 2
    %v6594 = vrot.slane %v6514, 2
    %v6595 = vrot.slane %v6515, 2
    %v6596 = vrot.slane %v6516, 2
    %v6597 = vrot.slane %v6517, 2
    %v6598 = vrot.slane %v6518, 2
    %v6599 = vrot.slane %v6519, 2
    %v6600 = vrot.slane %v6520, 2
    %v6601 = vrot.slane %v6521, 2
    %v6602 = vrot.slane %v6522, 2
    %v6603 = vrot.slane %v6523, 2
    %v6604 = vrot.slane %v6524, 2
    %v6605 = vrot.slane %v6525, 2
    %v6606 = vrot.slane %v6526, 2
    %v6607 = vrot.slane %v6527, 2
    %v6608 = vrot.slane %v6528, 2
    %v6609 = vrot.slane %v6529, 2
    %v6610 = vrot.slane %v6530, 2
    %v6611 = vrot.slane %v6531, 2
    %v6612 = vrot.slane %v6532, 2
    %v6613 = vrot.slane %v6533, 2
    %v6614 = vrot.slane %v6534, 2
    %v6615 = vrot.slane %v6535, 2
    %v6616 = vrot.slane %v6536, 2
    %v6617 = vrot.slane %v6537, 2
    %v6618 = vrot.slane %v6538, 2
    %v6619 = vrot.slane %v6539, 2
    %v6620 = vrot.slane %v6540, 2
    %v6621 = vrot.slane %v6541, 2
    %v6662 = vadd.f32 %v6462, %v6582
    %v6663 = vadd.f32 %v6463, %v6583
    %v6664 = vadd.f32 %v6464, %v6584
    %v6665 = vadd.f32 %v6465, %v6585
    %v6666 = vadd.f32 %v6466, %v6586
    %v6667 = vadd.f32 %v6467, %v6587
    %v6668 = vadd.f32 %v6468, %v6588
    %v6669 = vadd.f32 %v6469, %v6589
    %v6670 = vadd.f32 %v6470, %v6590
    %v6671 = vadd.f32 %v6471, %v6591
    %v6672 = vadd.f32 %v6472, %v6592
    %v6673 = vadd.f32 %v6473, %v6593
    %v6674 = vadd.f32 %v6474, %v6594
    %v6675 = vadd.f32 %v6475, %v6595
    %v6676 = vadd.f32 %v6476, %v6596
    %v6677 = vadd.f32 %v6477, %v6597
    %v6678 = vadd.f32 %v6478, %v6598
    %v6679 = vadd.f32 %v6479, %v6599
    %v6680 = vadd.f32 %v6480, %v6600
    %v6681 = vadd.f32 %v6481, %v6601
    %v6682 = vadd.f32 %v6482, %v6602
    %v6683 = vadd.f32 %v6483, %v6603
    %v6684 = vadd.f32 %v6484, %v6604
    %v6685 = vadd.f32 %v6485, %v6605
    %v6686 = vadd.f32 %v6486, %v6606
    %v6687 = vadd.f32 %v6487, %v6607
    %v6688 = vadd.f32 %v6488, %v6608
    %v6689 = vadd.f32 %v6489, %v6609
    %v6690 = vadd.f32 %v6490, %v6610
    %v6691 = vadd.f32 %v6491, %v6611
    %v6692 = vadd.f32 %v6492, %v6612
    %v6693 = vadd.f32 %v6493, %v6613
    %v6694 = vadd.f32 %v6494, %v6614
    %v6695 = vadd.f32 %v6495, %v6615
    %v6696 = vadd.f32 %v6496, %v6616
    %v6697 = vadd.f32 %v6497, %v6617
    %v6698 = vadd.f32 %v6498, %v6618
    %v6699 = vadd.f32 %v6499, %v6619
    %v6700 = vadd.f32 %v6500, %v6620
    %v6701 = vadd.f32 %v6501, %v6621
    %v6702 = vmul.f32 %v6662, %v6662
    %v6703 = vmul.f32 %v6663, %v6663
    %v6704 = vmul.f32 %v6664, %v6664
    %v6705 = vmul.f32 %v6665, %v6665
    %v6706 = vmul.f32 %v6666, %v6666
    %v6707 = vmul.f32 %v6667, %v6667
    %v6708 = vmul.f32 %v6668, %v6668
    %v6709 = vmul.f32 %v6669, %v6669
    %v6710 = vmul.f32 %v6670, %v6670
    %v6711 = vmul.f32 %v6671, %v6671
    %v6712 = vmul.f32 %v6672, %v6672
    %v6713 = vmul.f32 %v6673, %v6673
    %v6714 = vmul.f32 %v6674, %v6674
    %v6715 = vmul.f32 %v6675, %v6675
    %v6716 = vmul.f32 %v6676, %v6676
    %v6717 = vmul.f32 %v6677, %v6677
    %v6718 = vmul.f32 %v6662, %v6670
    %v6719 = vmul.f32 %v6663, %v6671
    %v6720 = vmul.f32 %v6664, %v6672
    %v6721 = vmul.f32 %v6665, %v6673
    %v6722 = vmul.f32 %v6666, %v6674
    %v6723 = vmul.f32 %v6667, %v6675
    %v6724 = vmul.f32 %v6668, %v6676
    %v6725 = vmul.f32 %v6669, %v6677
    %v6726 = vsub.f32 %v6678, %v6702
    %v6727 = vsub.f32 %v6679, %v6703
    %v6728 = vsub.f32 %v6680, %v6704
    %v6729 = vsub.f32 %v6681, %v6705
    %v6730 = vsub.f32 %v6682, %v6706
    %v6731 = vsub.f32 %v6683, %v6707
    %v6732 = vsub.f32 %v6684, %v6708
    %v6733 = vsub.f32 %v6685, %v6709
    %v6734 = vsub.f32 %v6686, %v6710
    %v6735 = vsub.f32 %v6687, %v6711
    %v6736 = vsub.f32 %v6688, %v6712
    %v6737 = vsub.f32 %v6689, %v6713
    %v6738 = vsub.f32 %v6690, %v6714
    %v6739 = vsub.f32 %v6691, %v6715
    %v6740 = vsub.f32 %v6692, %v6716
    %v6741 = vsub.f32 %v6693, %v6717
    %v6742 = vsub.f32 %v6694, %v6718
    %v6743 = vsub.f32 %v6695, %v6719
    %v6744 = vsub.f32 %v6696, %v6720
    %v6745 = vsub.f32 %v6697, %v6721
    %v6746 = vsub.f32 %v6698, %v6722
    %v6747 = vsub.f32 %v6699, %v6723
    %v6748 = vsub.f32 %v6700, %v6724
    %v6749 = vsub.f32 %v6701, %v6725
    %v6750 = vmul.f32 %v6718, 2.0
    %v6751 = vmul.f32 %v6719, 2.0
    %v6752 = vmul.f32 %v6720, 2.0
    %v6753 = vmul.f32 %v6721, 2.0
    %v6754 = vmul.f32 %v6722, 2.0
    %v6755 = vmul.f32 %v6723, 2.0
    %v6756 = vmul.f32 %v6724, 2.0
    %v6757 = vmul.f32 %v6725, 2.0
    %v6758 = vadd.f32 %v6750, 0.0001
    %v6759 = vadd.f32 %v6751, 0.0001
    %v6760 = vadd.f32 %v6752, 0.0001
    %v6761 = vadd.f32 %v6753, 0.0001
    %v6762 = vadd.f32 %v6754, 0.0001
    %v6763 = vadd.f32 %v6755, 0.0001
    %v6764 = vadd.f32 %v6756, 0.0001
    %v6765 = vadd.f32 %v6757, 0.0001
    %v6766 = vmul.f32 %v6742, 2.0
    %v6767 = vmul.f32 %v6743, 2.0
    %v6768 = vmul.f32 %v6744, 2.0
    %v6769 = vmul.f32 %v6745, 2.0
    %v6770 = vmul.f32 %v6746, 2.0
    %v6771 = vmul.f32 %v6747, 2.0
    %v6772 = vmul.f32 %v6748, 2.0
    %v6773 = vmul.f32 %v6749, 2.0
    %v6774 = vadd.f32 %v6766, 0.0009
    %v6775 = vadd.f32 %v6767, 0.0009
    %v6776 = vadd.f32 %v6768, 0.0009
    %v6777 = vadd.f32 %v6769, 0.0009
    %v6778 = vadd.f32 %v6770, 0.0009
    %v6779 = vadd.f32 %v6771, 0.0009
    %v6780 = vadd.f32 %v6772, 0.0009
    %v6781 = vadd.f32 %v6773, 0.0009
    %v6782 = vmul.f32 %v6758, %v6774
    %v6783 = vmul.f32 %v6759, %v6775
    %v6784 = vmul.f32 %v6760, %v6776
    %v6785 = vmul.f32 %v6761, %v6777
    %v6786 = vmul.f32 %v6762, %v6778
    %v6787 = vmul.f32 %v6763, %v6779
    %v6788 = vmul.f32 %v6764, %v6780
    %v6789 = vmul.f32 %v6765, %v6781
    %v6790 = vadd.f32 %v6702, %v6710
    %v6791 = vadd.f32 %v6703, %v6711
    %v6792 = vadd.f32 %v6704, %v6712
    %v6793 = vadd.f32 %v6705, %v6713
    %v6794 = vadd.f32 %v6706, %v6714
    %v6795 = vadd.f32 %v6707, %v6715
    %v6796 = vadd.f32 %v6708, %v6716
    %v6797 = vadd.f32 %v6709, %v6717
    %v6798 = vadd.f32 %v6790, 0.0001
    %v6799 = vadd.f32 %v6791, 0.0001
    %v6800 = vadd.f32 %v6792, 0.0001
    %v6801 = vadd.f32 %v6793, 0.0001
    %v6802 = vadd.f32 %v6794, 0.0001
    %v6803 = vadd.f32 %v6795, 0.0001
    %v6804 = vadd.f32 %v6796, 0.0001
    %v6805 = vadd.f32 %v6797, 0.0001
    %v6806 = vadd.f32 %v6726, %v6734
    %v6807 = vadd.f32 %v6727, %v6735
    %v6808 = vadd.f32 %v6728, %v6736
    %v6809 = vadd.f32 %v6729, %v6737
    %v6810 = vadd.f32 %v6730, %v6738
    %v6811 = vadd.f32 %v6731, %v6739
    %v6812 = vadd.f32 %v6732, %v6740
    %v6813 = vadd.f32 %v6733, %v6741
    %v6814 = vadd.f32 %v6806, 0.0009
    %v6815 = vadd.f32 %v6807, 0.0009
    %v6816 = vadd.f32 %v6808, 0.0009
    %v6817 = vadd.f32 %v6809, 0.0009
    %v6818 = vadd.f32 %v6810, 0.0009
    %v6819 = vadd.f32 %v6811, 0.0009
    %v6820 = vadd.f32 %v6812, 0.0009
    %v6821 = vadd.f32 %v6813, 0.0009
    %v6822 = vmul.f32 %v6798, %v6814
    %v6823 = vmul.f32 %v6799, %v6815
    %v6824 = vmul.f32 %v6800, %v6816
    %v6825 = vmul.f32 %v6801, %v6817
    %v6826 = vmul.f32 %v6802, %v6818
    %v6827 = vmul.f32 %v6803, %v6819
    %v6828 = vmul.f32 %v6804, %v6820
    %v6829 = vmul.f32 %v6805, %v6821
    %v6830 = vrcp.pop %v6822
    %v6831 = vmul.f32 %v6782, %v6830
    %v6832 = vrcp.pop %v6823
    %v6833 = vmul.f32 %v6783, %v6832
    %v6834 = vrcp.pop %v6824
    %v6835 = vmul.f32 %v6784, %v6834
    %v6836 = vrcp.pop %v6825
    %v6837 = vmul.f32 %v6785, %v6836
    %v6838 = vrcp.pop %v6826
    %v6839 = vmul.f32 %v6786, %v6838
    %v6840 = vrcp.pop %v6827
    %v6841 = vmul.f32 %v6787, %v6840
    %v6842 = vrcp.pop %v6828
    %v6843 = vmul.f32 %v6788, %v6842
    %v6844 = vrcp.pop %v6829
    %v6845 = vmul.f32 %v6789, %v6844
    %vm6846 = vcmask 46080
    %v6847 = vsel %vm6846, %v6831, 0.0
    %v6848 = vsel %vm6846, %v6833, 0.0
    %v6849 = vadd.f32 %v6847, %v6848
    %v6850 = vsel %vm6846, %v6835, 0.0
    %v6851 = vadd.f32 %v6849, %v6850
    %v6852 = vsel %vm6846, %v6837, 0.0
    %v6853 = vadd.f32 %v6851, %v6852
    %v6854 = vsel %vm6846, %v6839, 0.0
    %v6855 = vadd.f32 %v6853, %v6854
    %v6856 = vsel %vm6846, %v6841, 0.0
    %v6857 = vadd.f32 %v6855, %v6856
    %v6858 = vsel %vm6846, %v6843, 0.0
    %v6859 = vadd.f32 %v6857, %v6858
    %v6860 = vsel %vm6846, %v6845, 0.0
    %v6861 = vadd.f32 %v6859, %v6860
    %6862 = vadd.xlane.f32.xlu0 %v6861
    %v6863 = vpop.xlane.xlu0 %6862
    %v6864 = vrot.slane %v6863, 4
    %v6865 = vadd.f32 %v6863, %v6864
    %v6866 = vrot.slane %v6865, 2
    %v6867 = vadd.f32 %v6865, %v6866
    %v6868 = vrot.slane %v6867, 1
    %v6869 = vadd.f32 %v6867, %v6868
    %s6870 = vtos %v6869
    %v6871 = vstv %s150
    %vm6872 = vcmask 0
    %6873 = vst.msk [vmem:[#allocation7] sm:$0x1] %vm6872, %v6871
    %v6874 = vstv %s6870
    %6875 = vst.msk [vmem:[#allocation8] sm:$0x1] %vm6872, %v6874
    // Predicated region
    $region22: #{generator_loss.1} parent=1 // pred_check
      _
    $region23: #{generator_loss.1} parent=1 // pred_check_branch
      %6877 = sbr.rel (0) target = $region25
    $region24: #{generator_loss.1} parent=1 // pred_region
      %s6879 = ssub.s32 16, 16
      %6880 = vsyncadd [#allocation4], %s6879
      %s6882 = sshll.u32 [#allocation7], 4
      %s6883 = int_to_ptr.vmem [resolvable:$true] %s6882
      %6885 = dma.vmem_to_hbm [thread:$0]  %s6883, 16, %s3, [#allocation4]
    $region25: #{generator_loss.1} parent=1 // pred_fallthru
      _
    // Predicated region
    $region26: #{generator_loss.1} parent=1 // pred_check
      _
    $region27: #{generator_loss.1} parent=1 // pred_check_branch
      %6887 = sbr.rel (0) target = $region29
    $region28: #{generator_loss.1} parent=1 // pred_region
      %s6889 = ssub.s32 16, 16
      %6890 = vsyncadd [#allocation9], %s6889
      %s6892 = sshll.u32 [#allocation8], 4
      %s6893 = int_to_ptr.vmem [resolvable:$true] %s6892
      %6895 = dma.vmem_to_hbm [thread:$0]  %s6893, 16, %s4, [#allocation9]
    $region29: #{generator_loss.1} parent=1 // pred_fallthru
      _
    // Predicated region
    $region30: #{generator_loss.1} parent=1 // pred_check
      _
    $region31: #{generator_loss.1} parent=1 // pred_check_branch
      %6897 = sbr.rel (0) target = $region33
    $region32: #{generator_loss.1} parent=1 // pred_region
      %6898 = dma.done [#allocation4], 16
    $region33: #{generator_loss.1} parent=1 // pred_fallthru
      _
    // Predicated region
    $region34: #{generator_loss.1} parent=1 // pred_check
      _
    $region35: #{generator_loss.1} parent=1 // pred_check_branch
      %6900 = sbr.rel (0) target = $region37
    $region36: #{generator_loss.1} parent=1 // pred_region
      %6901 = dma.done [#allocation9], 16
    $region37: #{generator_loss.1} parent=1 // pred_fallthru
      _
    %6902 = vsyncpa [#allocation3], 1
    %6903 = vsyncpa [#allocation6], 1
    %6904 = vsyncpa [#allocation4], 1
    %6905 = vsyncpa [#allocation9], 1

</llo_original>
